<compile_context>
chip_gen: v7x
topology: tpu7x:2x2x1
jax: 0.10.0
libtpu: 0.0.40
codegen_flags: <defaults>
</compile_context>

<pallas_src>
import jax
import jax.numpy as jnp
from jax import lax
from jax.experimental import pallas as pl
from jax.experimental.pallas import tpu as pltpu

# -----------------------------------------------------------------------------
# Config (small, deterministic, synthetic stand-in for peft_model / seq_cls_model)
# -----------------------------------------------------------------------------
VOCAB = 100
HIDDEN = 32
N_HEADS = 4
HEAD_DIM = HIDDEN // N_HEADS
INTERMEDIATE = 64
N_LAYERS = 2
MAX_POS = 64
TYPE_VOCAB = 2
NUM_LABELS = 3
NUM_VIRTUAL_TOKENS = 4   # prefix-tuning virtual tokens per layer
BATCH = 2
SEQ = 8
LN_EPS = 1e-12

SMALL_W = INTERMEDIATE   # widest packed small vector (b1)
OUT_LANES = 128          # lane-dense packed output row: [logits | nll | pad]


# -----------------------------------------------------------------------------
# In-kernel helpers (traced inside the fused kernel; all f32 elementwise)
# -----------------------------------------------------------------------------
def _ln(x, g, b):
    mu = jnp.mean(x, axis=-1, keepdims=True)
    var = jnp.mean(jnp.square(x - mu), axis=-1, keepdims=True)
    return (x - mu) * lax.rsqrt(var + LN_EPS) * g + b


def _gelu(x):
    # TODO(synk): HF BERT uses exact erf GELU; tanh approximation used here
    # (erf has no guaranteed Mosaic lowering) -> tiny systematic drift.
    return 0.5 * x * (1.0 + jnp.tanh(0.7978845608028654 * (x + 0.044715 * x * x * x)))


# -----------------------------------------------------------------------------
# Fused encoder + classifier + cross-entropy kernel
#   grid = (batch,); one program handles one batch element across ALL layers.
#   All weights are resident full-array VMEM blocks (fetched once per core).
# -----------------------------------------------------------------------------
def fused_encoder_kernel(
    # per-batch inputs
    x_emb_ref,     # (S, H)        f32   embeddings (pre-LN)
    bias_ref,      # (1, S)        f32   additive attention-mask bias (real tokens)
    labels_ref,    # (1, C)        f32   one-hot labels
    # full resident parameter stacks
    wqkv_ref,      # (L, 3nH, H, d) bf16  head-major fused QKV weights [Q|K|V]
    bqkv_ref,      # (L, 3nH, 1, d) f32   head-major QKV biases
    wo_ref,        # (L, nH, d, H)  bf16  output projection, per head
    w1_ref,        # (L, H, I)      bf16
    w2_ref,        # (L, I, H)      bf16
    pk_ref,        # (L, nH, P, d)  bf16  prefix keys   (PEFT past_key_values)
    pv_ref,        # (L, nH, P, d)  bf16  prefix values
    small_ref,     # (L+1, 8, SMALL_W) f32 packed small params
                   #   per layer l: row0 bo, 1 ln1_g, 2 ln1_b, 3 b1, 4 b2, 5 ln2_g, 6 ln2_b
                   #   slot L:      row0 emb_ln_g, 1 emb_ln_b, 2 cls_b
    clsw_ref,      # (H, C)        bf16  classifier weight
    # output
    out_ref,       # (1, OUT_LANES) f32  [logits(0:C) | nll(C) | zeros]
):
    bf16 = jnp.bfloat16
    f32 = jnp.float32
    S, H, I, C = SEQ, HIDDEN, INTERMEDIATE, NUM_LABELS
    nH, d = N_HEADS, HEAD_DIM
    scale = 1.0 / (d ** 0.5)

    # --- embedding layernorm ---------------------------------------------------
    gsm = small_ref[N_LAYERS]                          # (8, SMALL_W) global smalls
    x = _ln(x_emb_ref[...], gsm[0:1, 0:H], gsm[1:2, 0:H])       # (S, H) f32

    bias = bias_ref[...]                               # (1, S) f32

    # --- encoder layers (weights resident; static unrolled loop) ----------------
    for l in range(N_LAYERS):
        sm = small_ref[l]                              # (8, SMALL_W) per-layer smalls

        # Head-batched QKV projection: one batched MXU op, bf16 in / f32 acc.
        xh = jnp.broadcast_to(x.astype(bf16), (3 * nH, S, H))           # (3nH,S,H)
        qkv = lax.dot_general(xh, wqkv_ref[l],
                              (((2,), (1,)), ((0,), (0,))),
                              preferred_element_type=f32) + bqkv_ref[l]  # (3nH,S,d)
        q = qkv[0 * nH:1 * nH].astype(bf16)                              # (nH,S,d)
        k = qkv[1 * nH:2 * nH].astype(bf16)
        v = qkv[2 * nH:3 * nH].astype(bf16)

        # Scores vs real tokens (masked) and prefix tokens.  Prefix-tuning always
        # prepends ones to the attention mask, so prefix keys carry zero bias and
        # every softmax row has >=P unmasked entries (no NaN even if fully padded).
        s_self = lax.dot_general(q, k, (((2,), (2,)), ((0,), (0,))),
                                 preferred_element_type=f32) * scale + bias     # (nH,S,S)
        s_pref = lax.dot_general(q, pk_ref[l], (((2,), (2,)), ((0,), (0,))),
                                 preferred_element_type=f32) * scale            # (nH,S,P)

        # Joint (stable) softmax over [prefix | real] key positions.
        m = jnp.maximum(jnp.max(s_self, axis=-1, keepdims=True),
                        jnp.max(s_pref, axis=-1, keepdims=True))                # (nH,S,1)
        e_s = jnp.exp(s_self - m)
        e_p = jnp.exp(s_pref - m)
        inv = pl.reciprocal(jnp.sum(e_s, axis=-1, keepdims=True)
                            + jnp.sum(e_p, axis=-1, keepdims=True), approx=True)
        ctx = (lax.dot_general(e_s.astype(bf16), v,
                               (((2,), (1,)), ((0,), (0,))),
                               preferred_element_type=f32)
               + lax.dot_general(e_p.astype(bf16), pv_ref[l],
                                 (((2,), (1,)), ((0,), (0,))),
                                 preferred_element_type=f32)) * inv             # (nH,S,d)

        # Output projection:  concat_h(ctx_h) @ Wo == sum_h ctx_h @ Wo_h
        proj = lax.dot_general(ctx.astype(bf16), wo_ref[l],
                               (((2,), (1,)), ((0,), (0,))),
                               preferred_element_type=f32)                      # (nH,S,H)
        attn = jnp.sum(proj, axis=0) + sm[0:1, 0:H]                             # (S,H)

        x1 = _ln(x + attn, sm[1:2, 0:H], sm[2:3, 0:H])

        # Feed-forward
        ff = jnp.dot(x1.astype(bf16), w1_ref[l],
                     preferred_element_type=f32) + sm[3:4, 0:I]
        ff = _gelu(ff)
        ff = jnp.dot(ff.astype(bf16), w2_ref[l],
                     preferred_element_type=f32) + sm[4:5, 0:H]
        x = _ln(x1 + ff, sm[5:6, 0:H], sm[6:7, 0:H])

    # --- classifier head on CLS token + per-sample cross-entropy ----------------
    cls_b = gsm[2:3, 0:C]                                                    # (1,C)
    lg = jnp.dot(x[0:1, :].astype(bf16), clsw_ref[...],
                 preferred_element_type=f32) + cls_b                         # (1,C)
    mx = jnp.max(lg, axis=-1, keepdims=True)
    lse = jnp.log(jnp.sum(jnp.exp(lg - mx), axis=-1, keepdims=True)) + mx
    nll = -jnp.sum(labels_ref[...] * (lg - lse), axis=-1, keepdims=True)     # (1,1)

    # Lane-dense packed output row.
    out_ref[...] = jnp.zeros((1, OUT_LANES), f32)
    out_ref[0:1, 0:C] = lg
    out_ref[0:1, C:C + 1] = nll


# -----------------------------------------------------------------------------
# Deterministic parameter init (stacked per-layer, shapes of the synthetic model)
# -----------------------------------------------------------------------------
def init_params(key):
    keys = jax.random.split(key, 16)
    kit = iter(keys)

    def nrm(shape):
        return (0.02 * jax.random.normal(next(kit), shape)).astype(jnp.float32)

    L, H, I = N_LAYERS, HIDDEN, INTERMEDIATE
    return {
        "word_emb": nrm((VOCAB, H)),
        "pos_emb": nrm((MAX_POS, H)),
        "type_emb": nrm((TYPE_VOCAB, H)),
        "emb_ln_g": jnp.ones((1, H), jnp.float32),
        "emb_ln_b": jnp.zeros((1, H), jnp.float32),
        # prefix-tuning: per-layer key/value prefixes (PEFT past_key_values)
        "prefix_k": nrm((L, N_HEADS, NUM_VIRTUAL_TOKENS, HEAD_DIM)),
        "prefix_v": nrm((L, N_HEADS, NUM_VIRTUAL_TOKENS, HEAD_DIM)),
        # classifier head (get_classifier(seq_cls_model) -> Linear(H, num_labels))
        "cls_w": nrm((H, NUM_LABELS)),
        "cls_b": jnp.zeros((1, NUM_LABELS), jnp.float32),
        # encoder layers (fused QKV weight)
        "wqkv": nrm((L, H, 3 * H)), "bqkv": jnp.zeros((L, 1, 3 * H), jnp.float32),
        "wo": nrm((L, H, H)), "bo": jnp.zeros((L, 1, H), jnp.float32),
        "ln1_g": jnp.ones((L, 1, H), jnp.float32), "ln1_b": jnp.zeros((L, 1, H), jnp.float32),
        "w1": nrm((L, H, I)), "b1": jnp.zeros((L, 1, I), jnp.float32),
        "w2": nrm((L, I, H)), "b2": jnp.zeros((L, 1, H), jnp.float32),
        "ln2_g": jnp.ones((L, 1, H), jnp.float32), "ln2_b": jnp.zeros((L, 1, H), jnp.float32),
    }


# -----------------------------------------------------------------------------
# Forward pass (mirrors the "bert" branch of the PyTorch module)
# -----------------------------------------------------------------------------
def forward(params, input_ids, attention_mask, labels=None, token_type_ids=None):
    B, S = input_ids.shape
    if token_type_ids is None:
        token_type_ids = jnp.zeros((B, S), jnp.int32)
    pos_ids = jnp.arange(S)

    # Embedding gathers (glue).
    emb = (params["word_emb"][input_ids]
           + params["pos_emb"][pos_ids][None, :, :]
           + params["type_emb"][token_type_ids]).astype(jnp.float32)     # (B,S,H)

    # Prefix-tuning extends the mask with ones for virtual tokens -> their bias
    # is 0; only the real-token bias is passed.
    mask_bias = ((1.0 - attention_mask.astype(jnp.float32)) * -1e9).reshape(B, 1, S)

    if labels is not None:
        labels_oh = jax.nn.one_hot(labels, NUM_LABELS, dtype=jnp.float32)
    else:
        labels_oh = jnp.zeros((B, NUM_LABELS), jnp.float32)
    labels_oh = labels_oh.reshape(B, 1, NUM_LABELS)

    bf16 = jnp.bfloat16
    L, H, I, C = N_LAYERS, HIDDEN, INTERMEDIATE, NUM_LABELS
    nH, d, P = N_HEADS, HEAD_DIM, NUM_VIRTUAL_TOKENS

    # Head-major bf16 MXU inputs (computed once, outside the kernel).
    wqkv_h = (params["wqkv"].reshape(L, H, 3, nH, d)
              .transpose(0, 2, 3, 1, 4).reshape(L, 3 * nH, H, d).astype(bf16))
    bqkv_h = params["bqkv"].reshape(L, 3, nH, d).reshape(L, 3 * nH, 1, d)
    wo_h = params["wo"].reshape(L, nH, d, H).astype(bf16)
    w1 = params["w1"].astype(bf16)
    w2 = params["w2"].astype(bf16)
    pk = params["prefix_k"].astype(bf16)
    pv = params["prefix_v"].astype(bf16)
    cls_w = params["cls_w"].astype(bf16)

    # Pack all tiny f32 vectors into one (L+1, 8, SMALL_W) slab.
    small = jnp.zeros((L + 1, 8, SMALL_W), jnp.float32)
    small = small.at[:L, 0, :H].set(params["bo"][:, 0, :])
    small = small.at[:L, 1, :H].set(params["ln1_g"][:, 0, :])
    small = small.at[:L, 2, :H].set(params["ln1_b"][:, 0, :])
    small = small.at[:L, 3, :I].set(params["b1"][:, 0, :])
    small = small.at[:L, 4, :H].set(params["b2"][:, 0, :])
    small = small.at[:L, 5, :H].set(params["ln2_g"][:, 0, :])
    small = small.at[:L, 6, :H].set(params["ln2_b"][:, 0, :])
    small = small.at[L, 0, :H].set(params["emb_ln_g"][0])
    small = small.at[L, 1, :H].set(params["emb_ln_b"][0])
    small = small.at[L, 2, :C].set(params["cls_b"][0])

    packed = pl.pallas_call(
        fused_encoder_kernel,
        out_shape=jax.ShapeDtypeStruct((B, 1, OUT_LANES), jnp.float32),
        grid_spec=pltpu.PrefetchScalarGridSpec(
            num_scalar_prefetch=0,
            grid=(B,),
            in_specs=[
                # per-batch inputs
                pl.BlockSpec((None, S, H), lambda b: (b, 0, 0)),           # embeddings
                pl.BlockSpec((None, 1, S), lambda b: (b, 0, 0)),           # mask bias
                pl.BlockSpec((None, 1, C), lambda b: (b, 0, 0)),           # one-hot labels
                # resident parameter stacks (constant index_map -> DMA'd once per core)
                pl.BlockSpec((L, 3 * nH, H, d), lambda b: (0, 0, 0, 0)),   # wqkv (head-major)
                pl.BlockSpec((L, 3 * nH, 1, d), lambda b: (0, 0, 0, 0)),   # bqkv (head-major)
                pl.BlockSpec((L, nH, d, H), lambda b: (0, 0, 0, 0)),       # wo (per-head)
                pl.BlockSpec((L, H, I), lambda b: (0, 0, 0)),              # w1
                pl.BlockSpec((L, I, H), lambda b: (0, 0, 0)),              # w2
                pl.BlockSpec((L, nH, P, d), lambda b: (0, 0, 0, 0)),       # prefix_k (bf16)
                pl.BlockSpec((L, nH, P, d), lambda b: (0, 0, 0, 0)),       # prefix_v (bf16)
                pl.BlockSpec((L + 1, 8, SMALL_W), lambda b: (0, 0, 0)),    # packed small params
                pl.BlockSpec((H, C), lambda b: (0, 0)),                    # classifier weight
            ],
            out_specs=pl.BlockSpec((None, 1, OUT_LANES), lambda b: (b, 0, 0)),
        ),
        compiler_params=pltpu.CompilerParams(
            dimension_semantics=("parallel",)),       # v7x: batch split across both TCs
    )(emb, mask_bias, labels_oh,
      wqkv_h, bqkv_h, wo_h, w1, w2, pk, pv, small, cls_w)

    packed = packed.reshape(B, OUT_LANES)
    logits = packed[:, :NUM_LABELS]
    # CrossEntropyLoss default 'mean' reduction over the batch (per-sample NLL
    # computed inside the kernel; only the scalar mean happens here).
    loss = jnp.mean(packed[:, NUM_LABELS]) if labels is not None else None

    # TODO(synk): the HF output object also carries all hidden_states / attentions
    # (output_attentions=True, output_hidden_states=True); only loss/logits returned.
    return loss, logits


# -----------------------------------------------------------------------------
# Main
# -----------------------------------------------------------------------------
if __name__ == "__main__":
    key = jax.random.PRNGKey(0)
    pkey, dkey, lkey = jax.random.split(key, 3)

    params = init_params(pkey)
    input_ids = jax.random.randint(dkey, (BATCH, SEQ), 0, VOCAB, dtype=jnp.int32)
    attention_mask = jnp.ones((BATCH, SEQ), jnp.int32).at[:, SEQ - 2:].set(0)  # some padding
    labels = jax.random.randint(lkey, (BATCH,), 0, NUM_LABELS, dtype=jnp.int32)

    fwd = jax.jit(forward)
    loss, logits = fwd(params, input_ids, attention_mask, labels)
    jax.block_until_ready((loss, logits))

    print("loss:", float(loss))
    print("logits:", logits)
    print("KERNEL_OK")
</pallas_src>

<mosaic_0001>
module attributes {stable_mosaic.version = 11 : i64} {
  func.func @fused_encoder_kernel(%arg0: i32, %arg1: memref<1x8x32xf32, #tpu.memory_space<vmem>>, %arg2: memref<1x1x8xf32, #tpu.memory_space<vmem>>, %arg3: memref<1x1x3xf32, #tpu.memory_space<vmem>>, %arg4: memref<2x12x32x8xbf16, #tpu.memory_space<vmem>>, %arg5: memref<2x12x1x8xf32, #tpu.memory_space<vmem>>, %arg6: memref<2x4x8x32xbf16, #tpu.memory_space<vmem>>, %arg7: memref<2x32x64xbf16, #tpu.memory_space<vmem>>, %arg8: memref<2x64x32xbf16, #tpu.memory_space<vmem>>, %arg9: memref<2x4x4x8xbf16, #tpu.memory_space<vmem>>, %arg10: memref<2x4x4x8xbf16, #tpu.memory_space<vmem>>, %arg11: memref<3x8x64xf32, #tpu.memory_space<vmem>>, %arg12: memref<32x3xbf16, #tpu.memory_space<vmem>>, %arg13: memref<1x1x128xf32, #tpu.memory_space<vmem>>) attributes {dimension_semantics = [#tpu.dimension_semantics<parallel>], iteration_bounds = array<i64: 2>, scalar_prefetch = 0 : i64, scratch_operands = 0 : i64, tpu.core_type = #tpu.core_type<tc>, window_params = [{transform_indices = @transform_0, window_bounds = array<i64: 1, 8, 32>}, {transform_indices = @transform_1, window_bounds = array<i64: 1, 1, 8>}, {transform_indices = @transform_2, window_bounds = array<i64: 1, 1, 3>}, {pipeline_mode = #tpu.pipeline_mode<synchronous>, transform_indices = @transform_3, window_bounds = array<i64: 2, 12, 32, 8>}, {pipeline_mode = #tpu.pipeline_mode<synchronous>, transform_indices = @transform_4, window_bounds = array<i64: 2, 12, 1, 8>}, {pipeline_mode = #tpu.pipeline_mode<synchronous>, transform_indices = @transform_5, window_bounds = array<i64: 2, 4, 8, 32>}, {pipeline_mode = #tpu.pipeline_mode<synchronous>, transform_indices = @transform_6, window_bounds = array<i64: 2, 32, 64>}, {pipeline_mode = #tpu.pipeline_mode<synchronous>, transform_indices = @transform_7, window_bounds = array<i64: 2, 64, 32>}, {pipeline_mode = #tpu.pipeline_mode<synchronous>, transform_indices = @transform_8, window_bounds = array<i64: 2, 4, 4, 8>}, {pipeline_mode = #tpu.pipeline_mode<synchronous>, transform_indices = @transform_9, window_bounds = array<i64: 2, 4, 4, 8>}, {pipeline_mode = #tpu.pipeline_mode<synchronous>, transform_indices = @transform_10, window_bounds = array<i64: 3, 8, 64>}, {pipeline_mode = #tpu.pipeline_mode<synchronous>, transform_indices = @transform_11, window_bounds = array<i64: 32, 3>}, {transform_indices = @transform_12, window_bounds = array<i64: 1, 1, 128>}]} {
    %c2 = arith.constant 2 : index
    %c0 = arith.constant 0 : index
    %c0_0 = arith.constant 0 : index
    %0 = vector.load %arg11[%c2, %c0, %c0_0] : memref<3x8x64xf32, #tpu.memory_space<vmem>>, vector<1x8x64xf32>
    %1 = vector.shape_cast %0 : vector<1x8x64xf32> to vector<8x64xf32>
    %c0_1 = arith.constant 0 : index
    %c0_2 = arith.constant 0 : index
    %c0_3 = arith.constant 0 : index
    %2 = vector.load %arg1[%c0_1, %c0_2, %c0_3] : memref<1x8x32xf32, #tpu.memory_space<vmem>>, vector<1x8x32xf32>
    %3 = vector.shape_cast %2 : vector<1x8x32xf32> to vector<8x32xf32>
    %4 = vector.extract_strided_slice %1 {offsets = [0, 0], sizes = [1, 32], strides = [1, 1]} : vector<8x64xf32> to vector<1x32xf32>
    %5 = vector.extract_strided_slice %1 {offsets = [1, 0], sizes = [1, 32], strides = [1, 1]} : vector<8x64xf32> to vector<1x32xf32>
    %cst = arith.constant dense<0.000000e+00> : vector<8xf32>
    %6 = vector.multi_reduction <add>, %3, %cst [1] : vector<8x32xf32> to vector<8xf32>
    %7 = vector.shape_cast %6 : vector<8xf32> to vector<8x1xf32>
    %cst_4 = arith.constant 3.200000e+01 : f32
    %8 = vector.broadcast %cst_4 : f32 to vector<8x1xf32>
    %9 = arith.divf %7, %8 : vector<8x1xf32>
    %10 = vector.broadcast %9 : vector<8x1xf32> to vector<8x32xf32>
    %11 = arith.subf %3, %10 : vector<8x32xf32>
    %12 = arith.mulf %11, %11 : vector<8x32xf32>
    %cst_5 = arith.constant dense<0.000000e+00> : vector<8xf32>
    %13 = vector.multi_reduction <add>, %12, %cst_5 [1] : vector<8x32xf32> to vector<8xf32>
    %14 = vector.shape_cast %13 : vector<8xf32> to vector<8x1xf32>
    %cst_6 = arith.constant 3.200000e+01 : f32
    %15 = vector.broadcast %cst_6 : f32 to vector<8x1xf32>
    %16 = arith.divf %14, %15 : vector<8x1xf32>
    %17 = vector.broadcast %9 : vector<8x1xf32> to vector<8x32xf32>
    %18 = arith.subf %3, %17 : vector<8x32xf32>
    %cst_7 = arith.constant 9.99999996E-13 : f32
    %19 = vector.broadcast %cst_7 : f32 to vector<8x1xf32>
    %20 = arith.addf %16, %19 : vector<8x1xf32>
    %21 = math.rsqrt %20 : vector<8x1xf32>
    %22 = vector.broadcast %21 : vector<8x1xf32> to vector<8x32xf32>
    %23 = arith.mulf %18, %22 : vector<8x32xf32>
    %24 = vector.broadcast %4 : vector<1x32xf32> to vector<8x32xf32>
    %25 = arith.mulf %23, %24 : vector<8x32xf32>
    %26 = vector.broadcast %5 : vector<1x32xf32> to vector<8x32xf32>
    %27 = arith.addf %25, %26 : vector<8x32xf32>
    %c0_8 = arith.constant 0 : index
    %c0_9 = arith.constant 0 : index
    %c0_10 = arith.constant 0 : index
    %28 = vector.load %arg2[%c0_8, %c0_9, %c0_10] : memref<1x1x8xf32, #tpu.memory_space<vmem>>, vector<1x1x8xf32>
    %29 = vector.shape_cast %28 : vector<1x1x8xf32> to vector<1x8xf32>
    %c0_11 = arith.constant 0 : index
    %c0_12 = arith.constant 0 : index
    %c0_13 = arith.constant 0 : index
    %30 = vector.load %arg11[%c0_11, %c0_12, %c0_13] : memref<3x8x64xf32, #tpu.memory_space<vmem>>, vector<1x8x64xf32>
    %31 = vector.shape_cast %30 : vector<1x8x64xf32> to vector<8x64xf32>
    %32 = arith.truncf %27 : vector<8x32xf32> to vector<8x32xbf16>
    %33 = vector.shape_cast %32 : vector<8x32xbf16> to vector<1x8x32xbf16>
    %34 = vector.broadcast %33 : vector<1x8x32xbf16> to vector<12x8x32xbf16>
    %c0_14 = arith.constant 0 : index
    %c0_15 = arith.constant 0 : index
    %c0_16 = arith.constant 0 : index
    %c0_17 = arith.constant 0 : index
    %35 = vector.load %arg4[%c0_14, %c0_15, %c0_16, %c0_17] : memref<2x12x32x8xbf16, #tpu.memory_space<vmem>>, vector<1x12x32x8xbf16>
    %36 = vector.shape_cast %35 : vector<1x12x32x8xbf16> to vector<12x32x8xbf16>
    %cst_18 = arith.constant dense<0.000000e+00> : vector<12x8x8xf32>
    %37 = tpu.matmul %34, %36, %cst_18 {dimension_numbers = #tpu.dot_dimension_numbers<[2], [1], [1], [2], [0, 0, 0, 1, 1, 2], [0], [0]>} : vector<12x8x32xbf16>, vector<12x32x8xbf16>, vector<12x8x8xf32> -> vector<12x8x8xf32>
    %c0_19 = arith.constant 0 : index
    %c0_20 = arith.constant 0 : index
    %c0_21 = arith.constant 0 : index
    %c0_22 = arith.constant 0 : index
    %38 = vector.load %arg5[%c0_19, %c0_20, %c0_21, %c0_22] : memref<2x12x1x8xf32, #tpu.memory_space<vmem>>, vector<1x12x1x8xf32>
    %39 = vector.shape_cast %38 : vector<1x12x1x8xf32> to vector<12x1x8xf32>
    %40 = vector.broadcast %39 : vector<12x1x8xf32> to vector<12x8x8xf32>
    %41 = arith.addf %37, %40 : vector<12x8x8xf32>
    %42 = vector.extract_strided_slice %41 {offsets = [0, 0, 0], sizes = [4, 8, 8], strides = [1, 1, 1]} : vector<12x8x8xf32> to vector<4x8x8xf32>
    %43 = arith.truncf %42 : vector<4x8x8xf32> to vector<4x8x8xbf16>
    %44 = vector.extract_strided_slice %41 {offsets = [4, 0, 0], sizes = [4, 8, 8], strides = [1, 1, 1]} : vector<12x8x8xf32> to vector<4x8x8xf32>
    %45 = arith.truncf %44 : vector<4x8x8xf32> to vector<4x8x8xbf16>
    %46 = vector.extract_strided_slice %41 {offsets = [8, 0, 0], sizes = [4, 8, 8], strides = [1, 1, 1]} : vector<12x8x8xf32> to vector<4x8x8xf32>
    %47 = arith.truncf %46 : vector<4x8x8xf32> to vector<4x8x8xbf16>
    %cst_23 = arith.constant dense<0.000000e+00> : vector<4x8x8xf32>
    %48 = tpu.matmul %43, %45, %cst_23 {dimension_numbers = #tpu.dot_dimension_numbers<[2], [2], [1], [1], [0, 0, 0, 1, 1, 1], [0], [0]>} : vector<4x8x8xbf16>, vector<4x8x8xbf16>, vector<4x8x8xf32> -> vector<4x8x8xf32>
    %cst_24 = arith.constant 0.353553385 : f32
    %49 = vector.broadcast %cst_24 : f32 to vector<4x8x8xf32>
    %50 = arith.mulf %48, %49 : vector<4x8x8xf32>
    %51 = vector.shape_cast %29 : vector<1x8xf32> to vector<1x1x8xf32>
    %52 = vector.broadcast %51 : vector<1x1x8xf32> to vector<4x8x8xf32>
    %53 = arith.addf %50, %52 : vector<4x8x8xf32>
    %c0_25 = arith.constant 0 : index
    %c0_26 = arith.constant 0 : index
    %c0_27 = arith.constant 0 : index
    %c0_28 = arith.constant 0 : index
    %54 = vector.load %arg9[%c0_25, %c0_26, %c0_27, %c0_28] : memref<2x4x4x8xbf16, #tpu.memory_space<vmem>>, vector<1x4x4x8xbf16>
    %55 = vector.shape_cast %54 : vector<1x4x4x8xbf16> to vector<4x4x8xbf16>
    %cst_29 = arith.constant dense<0.000000e+00> : vector<4x8x4xf32>
    %56 = tpu.matmul %43, %55, %cst_29 {dimension_numbers = #tpu.dot_dimension_numbers<[2], [2], [1], [1], [0, 0, 0, 1, 1, 1], [0], [0]>} : vector<4x8x8xbf16>, vector<4x4x8xbf16>, vector<4x8x4xf32> -> vector<4x8x4xf32>
    %cst_30 = arith.constant 0.353553385 : f32
    %57 = vector.broadcast %cst_30 : f32 to vector<4x8x4xf32>
    %58 = arith.mulf %56, %57 : vector<4x8x4xf32>
    %cst_31 = arith.constant dense<0xFF800000> : vector<4x8xf32>
    %59 = vector.multi_reduction <maximumf>, %53, %cst_31 [2] : vector<4x8x8xf32> to vector<4x8xf32>
    %60 = vector.shape_cast %59 : vector<4x8xf32> to vector<4x8x1xf32>
    %cst_32 = arith.constant dense<0xFF800000> : vector<4x8xf32>
    %61 = vector.multi_reduction <maximumf>, %58, %cst_32 [2] : vector<4x8x4xf32> to vector<4x8xf32>
    %62 = vector.shape_cast %61 : vector<4x8xf32> to vector<4x8x1xf32>
    %63 = arith.maximumf %60, %62 : vector<4x8x1xf32>
    %64 = vector.broadcast %63 : vector<4x8x1xf32> to vector<4x8x8xf32>
    %65 = arith.subf %53, %64 : vector<4x8x8xf32>
    %66 = math.exp %65 : vector<4x8x8xf32>
    %67 = vector.broadcast %63 : vector<4x8x1xf32> to vector<4x8x4xf32>
    %68 = arith.subf %58, %67 : vector<4x8x4xf32>
    %69 = math.exp %68 : vector<4x8x4xf32>
    %cst_33 = arith.constant dense<0.000000e+00> : vector<4x8xf32>
    %70 = vector.multi_reduction <add>, %66, %cst_33 [2] : vector<4x8x8xf32> to vector<4x8xf32>
    %71 = vector.shape_cast %70 : vector<4x8xf32> to vector<4x8x1xf32>
    %cst_34 = arith.constant dense<0.000000e+00> : vector<4x8xf32>
    %72 = vector.multi_reduction <add>, %69, %cst_34 [2] : vector<4x8x4xf32> to vector<4x8xf32>
    %73 = vector.shape_cast %72 : vector<4x8xf32> to vector<4x8x1xf32>
    %74 = arith.addf %71, %73 : vector<4x8x1xf32>
    %75 = tpu.reciprocal %74 {approx = true} : vector<4x8x1xf32> -> vector<4x8x1xf32>
    %76 = arith.truncf %66 : vector<4x8x8xf32> to vector<4x8x8xbf16>
    %cst_35 = arith.constant dense<0.000000e+00> : vector<4x8x8xf32>
    %77 = tpu.matmul %76, %47, %cst_35 {dimension_numbers = #tpu.dot_dimension_numbers<[2], [1], [1], [2], [0, 0, 0, 1, 1, 2], [0], [0]>} : vector<4x8x8xbf16>, vector<4x8x8xbf16>, vector<4x8x8xf32> -> vector<4x8x8xf32>
    %78 = arith.truncf %69 : vector<4x8x4xf32> to vector<4x8x4xbf16>
    %c0_36 = arith.constant 0 : index
    %c0_37 = arith.constant 0 : index
    %c0_38 = arith.constant 0 : index
    %c0_39 = arith.constant 0 : index
    %79 = vector.load %arg10[%c0_36, %c0_37, %c0_38, %c0_39] : memref<2x4x4x8xbf16, #tpu.memory_space<vmem>>, vector<1x4x4x8xbf16>
    %80 = vector.shape_cast %79 : vector<1x4x4x8xbf16> to vector<4x4x8xbf16>
    %cst_40 = arith.constant dense<0.000000e+00> : vector<4x8x8xf32>
    %81 = tpu.matmul %78, %80, %cst_40 {dimension_numbers = #tpu.dot_dimension_numbers<[2], [1], [1], [2], [0, 0, 0, 1, 1, 2], [0], [0]>} : vector<4x8x4xbf16>, vector<4x4x8xbf16>, vector<4x8x8xf32> -> vector<4x8x8xf32>
    %82 = arith.addf %77, %81 : vector<4x8x8xf32>
    %83 = vector.broadcast %75 : vector<4x8x1xf32> to vector<4x8x8xf32>
    %84 = arith.mulf %82, %83 : vector<4x8x8xf32>
    %85 = arith.truncf %84 : vector<4x8x8xf32> to vector<4x8x8xbf16>
    %c0_41 = arith.constant 0 : index
    %c0_42 = arith.constant 0 : index
    %c0_43 = arith.constant 0 : index
    %c0_44 = arith.constant 0 : index
    %86 = vector.load %arg6[%c0_41, %c0_42, %c0_43, %c0_44] : memref<2x4x8x32xbf16, #tpu.memory_space<vmem>>, vector<1x4x8x32xbf16>
    %87 = vector.shape_cast %86 : vector<1x4x8x32xbf16> to vector<4x8x32xbf16>
    %cst_45 = arith.constant dense<0.000000e+00> : vector<4x8x32xf32>
    %88 = tpu.matmul %85, %87, %cst_45 {dimension_numbers = #tpu.dot_dimension_numbers<[2], [1], [1], [2], [0, 0, 0, 1, 1, 2], [0], [0]>} : vector<4x8x8xbf16>, vector<4x8x32xbf16>, vector<4x8x32xf32> -> vector<4x8x32xf32>
    %cst_46 = arith.constant dense<0.000000e+00> : vector<8x32xf32>
    %89 = vector.multi_reduction <add>, %88, %cst_46 [0] : vector<4x8x32xf32> to vector<8x32xf32>
    %90 = vector.extract_strided_slice %31 {offsets = [0, 0], sizes = [1, 32], strides = [1, 1]} : vector<8x64xf32> to vector<1x32xf32>
    %91 = vector.broadcast %90 : vector<1x32xf32> to vector<8x32xf32>
    %92 = arith.addf %89, %91 : vector<8x32xf32>
    %93 = arith.addf %27, %92 : vector<8x32xf32>
    %94 = vector.extract_strided_slice %31 {offsets = [1, 0], sizes = [1, 32], strides = [1, 1]} : vector<8x64xf32> to vector<1x32xf32>
    %95 = vector.extract_strided_slice %31 {offsets = [2, 0], sizes = [1, 32], strides = [1, 1]} : vector<8x64xf32> to vector<1x32xf32>
    %cst_47 = arith.constant dense<0.000000e+00> : vector<8xf32>
    %96 = vector.multi_reduction <add>, %93, %cst_47 [1] : vector<8x32xf32> to vector<8xf32>
    %97 = vector.shape_cast %96 : vector<8xf32> to vector<8x1xf32>
    %cst_48 = arith.constant 3.200000e+01 : f32
    %98 = vector.broadcast %cst_48 : f32 to vector<8x1xf32>
    %99 = arith.divf %97, %98 : vector<8x1xf32>
    %100 = vector.broadcast %99 : vector<8x1xf32> to vector<8x32xf32>
    %101 = arith.subf %93, %100 : vector<8x32xf32>
    %102 = arith.mulf %101, %101 : vector<8x32xf32>
    %cst_49 = arith.constant dense<0.000000e+00> : vector<8xf32>
    %103 = vector.multi_reduction <add>, %102, %cst_49 [1] : vector<8x32xf32> to vector<8xf32>
    %104 = vector.shape_cast %103 : vector<8xf32> to vector<8x1xf32>
    %cst_50 = arith.constant 3.200000e+01 : f32
    %105 = vector.broadcast %cst_50 : f32 to vector<8x1xf32>
    %106 = arith.divf %104, %105 : vector<8x1xf32>
    %107 = vector.broadcast %99 : vector<8x1xf32> to vector<8x32xf32>
    %108 = arith.subf %93, %107 : vector<8x32xf32>
    %cst_51 = arith.constant 9.99999996E-13 : f32
    %109 = vector.broadcast %cst_51 : f32 to vector<8x1xf32>
    %110 = arith.addf %106, %109 : vector<8x1xf32>
    %111 = math.rsqrt %110 : vector<8x1xf32>
    %112 = vector.broadcast %111 : vector<8x1xf32> to vector<8x32xf32>
    %113 = arith.mulf %108, %112 : vector<8x32xf32>
    %114 = vector.broadcast %94 : vector<1x32xf32> to vector<8x32xf32>
    %115 = arith.mulf %113, %114 : vector<8x32xf32>
    %116 = vector.broadcast %95 : vector<1x32xf32> to vector<8x32xf32>
    %117 = arith.addf %115, %116 : vector<8x32xf32>
    %118 = arith.truncf %117 : vector<8x32xf32> to vector<8x32xbf16>
    %c0_52 = arith.constant 0 : index
    %c0_53 = arith.constant 0 : index
    %c0_54 = arith.constant 0 : index
    %119 = vector.load %arg7[%c0_52, %c0_53, %c0_54] : memref<2x32x64xbf16, #tpu.memory_space<vmem>>, vector<1x32x64xbf16>
    %120 = vector.shape_cast %119 : vector<1x32x64xbf16> to vector<32x64xbf16>
    %cst_55 = arith.constant dense<0.000000e+00> : vector<8x64xf32>
    %121 = tpu.matmul %118, %120, %cst_55 {dimension_numbers = #tpu.dot_dimension_numbers<[1], [0], [0], [1], [0, 0, 1, 1], [], []>} : vector<8x32xbf16>, vector<32x64xbf16>, vector<8x64xf32> -> vector<8x64xf32>
    %122 = vector.extract_strided_slice %31 {offsets = [3, 0], sizes = [1, 64], strides = [1, 1]} : vector<8x64xf32> to vector<1x64xf32>
    %123 = vector.broadcast %122 : vector<1x64xf32> to vector<8x64xf32>
    %124 = arith.addf %121, %123 : vector<8x64xf32>
    %cst_56 = arith.constant 5.000000e-01 : f32
    %125 = vector.broadcast %cst_56 : f32 to vector<8x64xf32>
    %126 = arith.mulf %125, %124 : vector<8x64xf32>
    %cst_57 = arith.constant 4.471500e-02 : f32
    %127 = vector.broadcast %cst_57 : f32 to vector<8x64xf32>
    %128 = arith.mulf %127, %124 : vector<8x64xf32>
    %129 = arith.mulf %128, %124 : vector<8x64xf32>
    %130 = arith.mulf %129, %124 : vector<8x64xf32>
    %131 = arith.addf %124, %130 : vector<8x64xf32>
    %cst_58 = arith.constant 0.797884583 : f32
    %132 = vector.broadcast %cst_58 : f32 to vector<8x64xf32>
    %133 = arith.mulf %132, %131 : vector<8x64xf32>
    %134 = math.tanh %133 : vector<8x64xf32>
    %cst_59 = arith.constant 1.000000e+00 : f32
    %135 = vector.broadcast %cst_59 : f32 to vector<8x64xf32>
    %136 = arith.addf %135, %134 : vector<8x64xf32>
    %137 = arith.mulf %126, %136 : vector<8x64xf32>
    %138 = arith.truncf %137 : vector<8x64xf32> to vector<8x64xbf16>
    %c0_60 = arith.constant 0 : index
    %c0_61 = arith.constant 0 : index
    %c0_62 = arith.constant 0 : index
    %139 = vector.load %arg8[%c0_60, %c0_61, %c0_62] : memref<2x64x32xbf16, #tpu.memory_space<vmem>>, vector<1x64x32xbf16>
    %140 = vector.shape_cast %139 : vector<1x64x32xbf16> to vector<64x32xbf16>
    %cst_63 = arith.constant dense<0.000000e+00> : vector<8x32xf32>
    %141 = tpu.matmul %138, %140, %cst_63 {dimension_numbers = #tpu.dot_dimension_numbers<[1], [0], [0], [1], [0, 0, 1, 1], [], []>} : vector<8x64xbf16>, vector<64x32xbf16>, vector<8x32xf32> -> vector<8x32xf32>
    %142 = vector.extract_strided_slice %31 {offsets = [4, 0], sizes = [1, 32], strides = [1, 1]} : vector<8x64xf32> to vector<1x32xf32>
    %143 = vector.broadcast %142 : vector<1x32xf32> to vector<8x32xf32>
    %144 = arith.addf %141, %143 : vector<8x32xf32>
    %145 = arith.addf %117, %144 : vector<8x32xf32>
    %146 = vector.extract_strided_slice %31 {offsets = [5, 0], sizes = [1, 32], strides = [1, 1]} : vector<8x64xf32> to vector<1x32xf32>
    %147 = vector.extract_strided_slice %31 {offsets = [6, 0], sizes = [1, 32], strides = [1, 1]} : vector<8x64xf32> to vector<1x32xf32>
    %cst_64 = arith.constant dense<0.000000e+00> : vector<8xf32>
    %148 = vector.multi_reduction <add>, %145, %cst_64 [1] : vector<8x32xf32> to vector<8xf32>
    %149 = vector.shape_cast %148 : vector<8xf32> to vector<8x1xf32>
    %cst_65 = arith.constant 3.200000e+01 : f32
    %150 = vector.broadcast %cst_65 : f32 to vector<8x1xf32>
    %151 = arith.divf %149, %150 : vector<8x1xf32>
    %152 = vector.broadcast %151 : vector<8x1xf32> to vector<8x32xf32>
    %153 = arith.subf %145, %152 : vector<8x32xf32>
    %154 = arith.mulf %153, %153 : vector<8x32xf32>
    %cst_66 = arith.constant dense<0.000000e+00> : vector<8xf32>
    %155 = vector.multi_reduction <add>, %154, %cst_66 [1] : vector<8x32xf32> to vector<8xf32>
    %156 = vector.shape_cast %155 : vector<8xf32> to vector<8x1xf32>
    %cst_67 = arith.constant 3.200000e+01 : f32
    %157 = vector.broadcast %cst_67 : f32 to vector<8x1xf32>
    %158 = arith.divf %156, %157 : vector<8x1xf32>
    %159 = vector.broadcast %151 : vector<8x1xf32> to vector<8x32xf32>
    %160 = arith.subf %145, %159 : vector<8x32xf32>
    %cst_68 = arith.constant 9.99999996E-13 : f32
    %161 = vector.broadcast %cst_68 : f32 to vector<8x1xf32>
    %162 = arith.addf %158, %161 : vector<8x1xf32>
    %163 = math.rsqrt %162 : vector<8x1xf32>
    %164 = vector.broadcast %163 : vector<8x1xf32> to vector<8x32xf32>
    %165 = arith.mulf %160, %164 : vector<8x32xf32>
    %166 = vector.broadcast %146 : vector<1x32xf32> to vector<8x32xf32>
    %167 = arith.mulf %165, %166 : vector<8x32xf32>
    %168 = vector.broadcast %147 : vector<1x32xf32> to vector<8x32xf32>
    %169 = arith.addf %167, %168 : vector<8x32xf32>
    %c1 = arith.constant 1 : index
    %c0_69 = arith.constant 0 : index
    %c0_70 = arith.constant 0 : index
    %170 = vector.load %arg11[%c1, %c0_69, %c0_70] : memref<3x8x64xf32, #tpu.memory_space<vmem>>, vector<1x8x64xf32>
    %171 = vector.shape_cast %170 : vector<1x8x64xf32> to vector<8x64xf32>
    %172 = arith.truncf %169 : vector<8x32xf32> to vector<8x32xbf16>
    %173 = vector.shape_cast %172 : vector<8x32xbf16> to vector<1x8x32xbf16>
    %174 = vector.broadcast %173 : vector<1x8x32xbf16> to vector<12x8x32xbf16>
    %c1_71 = arith.constant 1 : index
    %c0_72 = arith.constant 0 : index
    %c0_73 = arith.constant 0 : index
    %c0_74 = arith.constant 0 : index
    %175 = vector.load %arg4[%c1_71, %c0_72, %c0_73, %c0_74] : memref<2x12x32x8xbf16, #tpu.memory_space<vmem>>, vector<1x12x32x8xbf16>
    %176 = vector.shape_cast %175 : vector<1x12x32x8xbf16> to vector<12x32x8xbf16>
    %cst_75 = arith.constant dense<0.000000e+00> : vector<12x8x8xf32>
    %177 = tpu.matmul %174, %176, %cst_75 {dimension_numbers = #tpu.dot_dimension_numbers<[2], [1], [1], [2], [0, 0, 0, 1, 1, 2], [0], [0]>} : vector<12x8x32xbf16>, vector<12x32x8xbf16>, vector<12x8x8xf32> -> vector<12x8x8xf32>
    %c1_76 = arith.constant 1 : index
    %c0_77 = arith.constant 0 : index
    %c0_78 = arith.constant 0 : index
    %c0_79 = arith.constant 0 : index
    %178 = vector.load %arg5[%c1_76, %c0_77, %c0_78, %c0_79] : memref<2x12x1x8xf32, #tpu.memory_space<vmem>>, vector<1x12x1x8xf32>
    %179 = vector.shape_cast %178 : vector<1x12x1x8xf32> to vector<12x1x8xf32>
    %180 = vector.broadcast %179 : vector<12x1x8xf32> to vector<12x8x8xf32>
    %181 = arith.addf %177, %180 : vector<12x8x8xf32>
    %182 = vector.extract_strided_slice %181 {offsets = [0, 0, 0], sizes = [4, 8, 8], strides = [1, 1, 1]} : vector<12x8x8xf32> to vector<4x8x8xf32>
    %183 = arith.truncf %182 : vector<4x8x8xf32> to vector<4x8x8xbf16>
    %184 = vector.extract_strided_slice %181 {offsets = [4, 0, 0], sizes = [4, 8, 8], strides = [1, 1, 1]} : vector<12x8x8xf32> to vector<4x8x8xf32>
    %185 = arith.truncf %184 : vector<4x8x8xf32> to vector<4x8x8xbf16>
    %186 = vector.extract_strided_slice %181 {offsets = [8, 0, 0], sizes = [4, 8, 8], strides = [1, 1, 1]} : vector<12x8x8xf32> to vector<4x8x8xf32>
    %187 = arith.truncf %186 : vector<4x8x8xf32> to vector<4x8x8xbf16>
    %cst_80 = arith.constant dense<0.000000e+00> : vector<4x8x8xf32>
    %188 = tpu.matmul %183, %185, %cst_80 {dimension_numbers = #tpu.dot_dimension_numbers<[2], [2], [1], [1], [0, 0, 0, 1, 1, 1], [0], [0]>} : vector<4x8x8xbf16>, vector<4x8x8xbf16>, vector<4x8x8xf32> -> vector<4x8x8xf32>
    %cst_81 = arith.constant 0.353553385 : f32
    %189 = vector.broadcast %cst_81 : f32 to vector<4x8x8xf32>
    %190 = arith.mulf %188, %189 : vector<4x8x8xf32>
    %191 = vector.shape_cast %29 : vector<1x8xf32> to vector<1x1x8xf32>
    %192 = vector.broadcast %191 : vector<1x1x8xf32> to vector<4x8x8xf32>
    %193 = arith.addf %190, %192 : vector<4x8x8xf32>
    %c1_82 = arith.constant 1 : index
    %c0_83 = arith.constant 0 : index
    %c0_84 = arith.constant 0 : index
    %c0_85 = arith.constant 0 : index
    %194 = vector.load %arg9[%c1_82, %c0_83, %c0_84, %c0_85] : memref<2x4x4x8xbf16, #tpu.memory_space<vmem>>, vector<1x4x4x8xbf16>
    %195 = vector.shape_cast %194 : vector<1x4x4x8xbf16> to vector<4x4x8xbf16>
    %cst_86 = arith.constant dense<0.000000e+00> : vector<4x8x4xf32>
    %196 = tpu.matmul %183, %195, %cst_86 {dimension_numbers = #tpu.dot_dimension_numbers<[2], [2], [1], [1], [0, 0, 0, 1, 1, 1], [0], [0]>} : vector<4x8x8xbf16>, vector<4x4x8xbf16>, vector<4x8x4xf32> -> vector<4x8x4xf32>
    %cst_87 = arith.constant 0.353553385 : f32
    %197 = vector.broadcast %cst_87 : f32 to vector<4x8x4xf32>
    %198 = arith.mulf %196, %197 : vector<4x8x4xf32>
    %cst_88 = arith.constant dense<0xFF800000> : vector<4x8xf32>
    %199 = vector.multi_reduction <maximumf>, %193, %cst_88 [2] : vector<4x8x8xf32> to vector<4x8xf32>
    %200 = vector.shape_cast %199 : vector<4x8xf32> to vector<4x8x1xf32>
    %cst_89 = arith.constant dense<0xFF800000> : vector<4x8xf32>
    %201 = vector.multi_reduction <maximumf>, %198, %cst_89 [2] : vector<4x8x4xf32> to vector<4x8xf32>
    %202 = vector.shape_cast %201 : vector<4x8xf32> to vector<4x8x1xf32>
    %203 = arith.maximumf %200, %202 : vector<4x8x1xf32>
    %204 = vector.broadcast %203 : vector<4x8x1xf32> to vector<4x8x8xf32>
    %205 = arith.subf %193, %204 : vector<4x8x8xf32>
    %206 = math.exp %205 : vector<4x8x8xf32>
    %207 = vector.broadcast %203 : vector<4x8x1xf32> to vector<4x8x4xf32>
    %208 = arith.subf %198, %207 : vector<4x8x4xf32>
    %209 = math.exp %208 : vector<4x8x4xf32>
    %cst_90 = arith.constant dense<0.000000e+00> : vector<4x8xf32>
    %210 = vector.multi_reduction <add>, %206, %cst_90 [2] : vector<4x8x8xf32> to vector<4x8xf32>
    %211 = vector.shape_cast %210 : vector<4x8xf32> to vector<4x8x1xf32>
    %cst_91 = arith.constant dense<0.000000e+00> : vector<4x8xf32>
    %212 = vector.multi_reduction <add>, %209, %cst_91 [2] : vector<4x8x4xf32> to vector<4x8xf32>
    %213 = vector.shape_cast %212 : vector<4x8xf32> to vector<4x8x1xf32>
    %214 = arith.addf %211, %213 : vector<4x8x1xf32>
    %215 = tpu.reciprocal %214 {approx = true} : vector<4x8x1xf32> -> vector<4x8x1xf32>
    %216 = arith.truncf %206 : vector<4x8x8xf32> to vector<4x8x8xbf16>
    %cst_92 = arith.constant dense<0.000000e+00> : vector<4x8x8xf32>
    %217 = tpu.matmul %216, %187, %cst_92 {dimension_numbers = #tpu.dot_dimension_numbers<[2], [1], [1], [2], [0, 0, 0, 1, 1, 2], [0], [0]>} : vector<4x8x8xbf16>, vector<4x8x8xbf16>, vector<4x8x8xf32> -> vector<4x8x8xf32>
    %218 = arith.truncf %209 : vector<4x8x4xf32> to vector<4x8x4xbf16>
    %c1_93 = arith.constant 1 : index
    %c0_94 = arith.constant 0 : index
    %c0_95 = arith.constant 0 : index
    %c0_96 = arith.constant 0 : index
    %219 = vector.load %arg10[%c1_93, %c0_94, %c0_95, %c0_96] : memref<2x4x4x8xbf16, #tpu.memory_space<vmem>>, vector<1x4x4x8xbf16>
    %220 = vector.shape_cast %219 : vector<1x4x4x8xbf16> to vector<4x4x8xbf16>
    %cst_97 = arith.constant dense<0.000000e+00> : vector<4x8x8xf32>
    %221 = tpu.matmul %218, %220, %cst_97 {dimension_numbers = #tpu.dot_dimension_numbers<[2], [1], [1], [2], [0, 0, 0, 1, 1, 2], [0], [0]>} : vector<4x8x4xbf16>, vector<4x4x8xbf16>, vector<4x8x8xf32> -> vector<4x8x8xf32>
    %222 = arith.addf %217, %221 : vector<4x8x8xf32>
    %223 = vector.broadcast %215 : vector<4x8x1xf32> to vector<4x8x8xf32>
    %224 = arith.mulf %222, %223 : vector<4x8x8xf32>
    %225 = arith.truncf %224 : vector<4x8x8xf32> to vector<4x8x8xbf16>
    %c1_98 = arith.constant 1 : index
    %c0_99 = arith.constant 0 : index
    %c0_100 = arith.constant 0 : index
    %c0_101 = arith.constant 0 : index
    %226 = vector.load %arg6[%c1_98, %c0_99, %c0_100, %c0_101] : memref<2x4x8x32xbf16, #tpu.memory_space<vmem>>, vector<1x4x8x32xbf16>
    %227 = vector.shape_cast %226 : vector<1x4x8x32xbf16> to vector<4x8x32xbf16>
    %cst_102 = arith.constant dense<0.000000e+00> : vector<4x8x32xf32>
    %228 = tpu.matmul %225, %227, %cst_102 {dimension_numbers = #tpu.dot_dimension_numbers<[2], [1], [1], [2], [0, 0, 0, 1, 1, 2], [0], [0]>} : vector<4x8x8xbf16>, vector<4x8x32xbf16>, vector<4x8x32xf32> -> vector<4x8x32xf32>
    %cst_103 = arith.constant dense<0.000000e+00> : vector<8x32xf32>
    %229 = vector.multi_reduction <add>, %228, %cst_103 [0] : vector<4x8x32xf32> to vector<8x32xf32>
    %230 = vector.extract_strided_slice %171 {offsets = [0, 0], sizes = [1, 32], strides = [1, 1]} : vector<8x64xf32> to vector<1x32xf32>
    %231 = vector.broadcast %230 : vector<1x32xf32> to vector<8x32xf32>
    %232 = arith.addf %229, %231 : vector<8x32xf32>
    %233 = arith.addf %169, %232 : vector<8x32xf32>
    %234 = vector.extract_strided_slice %171 {offsets = [1, 0], sizes = [1, 32], strides = [1, 1]} : vector<8x64xf32> to vector<1x32xf32>
    %235 = vector.extract_strided_slice %171 {offsets = [2, 0], sizes = [1, 32], strides = [1, 1]} : vector<8x64xf32> to vector<1x32xf32>
    %cst_104 = arith.constant dense<0.000000e+00> : vector<8xf32>
    %236 = vector.multi_reduction <add>, %233, %cst_104 [1] : vector<8x32xf32> to vector<8xf32>
    %237 = vector.shape_cast %236 : vector<8xf32> to vector<8x1xf32>
    %cst_105 = arith.constant 3.200000e+01 : f32
    %238 = vector.broadcast %cst_105 : f32 to vector<8x1xf32>
    %239 = arith.divf %237, %238 : vector<8x1xf32>
    %240 = vector.broadcast %239 : vector<8x1xf32> to vector<8x32xf32>
    %241 = arith.subf %233, %240 : vector<8x32xf32>
    %242 = arith.mulf %241, %241 : vector<8x32xf32>
    %cst_106 = arith.constant dense<0.000000e+00> : vector<8xf32>
    %243 = vector.multi_reduction <add>, %242, %cst_106 [1] : vector<8x32xf32> to vector<8xf32>
    %244 = vector.shape_cast %243 : vector<8xf32> to vector<8x1xf32>
    %cst_107 = arith.constant 3.200000e+01 : f32
    %245 = vector.broadcast %cst_107 : f32 to vector<8x1xf32>
    %246 = arith.divf %244, %245 : vector<8x1xf32>
    %247 = vector.broadcast %239 : vector<8x1xf32> to vector<8x32xf32>
    %248 = arith.subf %233, %247 : vector<8x32xf32>
    %cst_108 = arith.constant 9.99999996E-13 : f32
    %249 = vector.broadcast %cst_108 : f32 to vector<8x1xf32>
    %250 = arith.addf %246, %249 : vector<8x1xf32>
    %251 = math.rsqrt %250 : vector<8x1xf32>
    %252 = vector.broadcast %251 : vector<8x1xf32> to vector<8x32xf32>
    %253 = arith.mulf %248, %252 : vector<8x32xf32>
    %254 = vector.broadcast %234 : vector<1x32xf32> to vector<8x32xf32>
    %255 = arith.mulf %253, %254 : vector<8x32xf32>
    %256 = vector.broadcast %235 : vector<1x32xf32> to vector<8x32xf32>
    %257 = arith.addf %255, %256 : vector<8x32xf32>
    %258 = arith.truncf %257 : vector<8x32xf32> to vector<8x32xbf16>
    %c1_109 = arith.constant 1 : index
    %c0_110 = arith.constant 0 : index
    %c0_111 = arith.constant 0 : index
    %259 = vector.load %arg7[%c1_109, %c0_110, %c0_111] : memref<2x32x64xbf16, #tpu.memory_space<vmem>>, vector<1x32x64xbf16>
    %260 = vector.shape_cast %259 : vector<1x32x64xbf16> to vector<32x64xbf16>
    %cst_112 = arith.constant dense<0.000000e+00> : vector<8x64xf32>
    %261 = tpu.matmul %258, %260, %cst_112 {dimension_numbers = #tpu.dot_dimension_numbers<[1], [0], [0], [1], [0, 0, 1, 1], [], []>} : vector<8x32xbf16>, vector<32x64xbf16>, vector<8x64xf32> -> vector<8x64xf32>
    %262 = vector.extract_strided_slice %171 {offsets = [3, 0], sizes = [1, 64], strides = [1, 1]} : vector<8x64xf32> to vector<1x64xf32>
    %263 = vector.broadcast %262 : vector<1x64xf32> to vector<8x64xf32>
    %264 = arith.addf %261, %263 : vector<8x64xf32>
    %cst_113 = arith.constant 5.000000e-01 : f32
    %265 = vector.broadcast %cst_113 : f32 to vector<8x64xf32>
    %266 = arith.mulf %265, %264 : vector<8x64xf32>
    %cst_114 = arith.constant 4.471500e-02 : f32
    %267 = vector.broadcast %cst_114 : f32 to vector<8x64xf32>
    %268 = arith.mulf %267, %264 : vector<8x64xf32>
    %269 = arith.mulf %268, %264 : vector<8x64xf32>
    %270 = arith.mulf %269, %264 : vector<8x64xf32>
    %271 = arith.addf %264, %270 : vector<8x64xf32>
    %cst_115 = arith.constant 0.797884583 : f32
    %272 = vector.broadcast %cst_115 : f32 to vector<8x64xf32>
    %273 = arith.mulf %272, %271 : vector<8x64xf32>
    %274 = math.tanh %273 : vector<8x64xf32>
    %cst_116 = arith.constant 1.000000e+00 : f32
    %275 = vector.broadcast %cst_116 : f32 to vector<8x64xf32>
    %276 = arith.addf %275, %274 : vector<8x64xf32>
    %277 = arith.mulf %266, %276 : vector<8x64xf32>
    %278 = arith.truncf %277 : vector<8x64xf32> to vector<8x64xbf16>
    %c1_117 = arith.constant 1 : index
    %c0_118 = arith.constant 0 : index
    %c0_119 = arith.constant 0 : index
    %279 = vector.load %arg8[%c1_117, %c0_118, %c0_119] : memref<2x64x32xbf16, #tpu.memory_space<vmem>>, vector<1x64x32xbf16>
    %280 = vector.shape_cast %279 : vector<1x64x32xbf16> to vector<64x32xbf16>
    %cst_120 = arith.constant dense<0.000000e+00> : vector<8x32xf32>
    %281 = tpu.matmul %278, %280, %cst_120 {dimension_numbers = #tpu.dot_dimension_numbers<[1], [0], [0], [1], [0, 0, 1, 1], [], []>} : vector<8x64xbf16>, vector<64x32xbf16>, vector<8x32xf32> -> vector<8x32xf32>
    %282 = vector.extract_strided_slice %171 {offsets = [4, 0], sizes = [1, 32], strides = [1, 1]} : vector<8x64xf32> to vector<1x32xf32>
    %283 = vector.broadcast %282 : vector<1x32xf32> to vector<8x32xf32>
    %284 = arith.addf %281, %283 : vector<8x32xf32>
    %285 = arith.addf %257, %284 : vector<8x32xf32>
    %286 = vector.extract_strided_slice %171 {offsets = [5, 0], sizes = [1, 32], strides = [1, 1]} : vector<8x64xf32> to vector<1x32xf32>
    %287 = vector.extract_strided_slice %171 {offsets = [6, 0], sizes = [1, 32], strides = [1, 1]} : vector<8x64xf32> to vector<1x32xf32>
    %cst_121 = arith.constant dense<0.000000e+00> : vector<8xf32>
    %288 = vector.multi_reduction <add>, %285, %cst_121 [1] : vector<8x32xf32> to vector<8xf32>
    %289 = vector.shape_cast %288 : vector<8xf32> to vector<8x1xf32>
    %cst_122 = arith.constant 3.200000e+01 : f32
    %290 = vector.broadcast %cst_122 : f32 to vector<8x1xf32>
    %291 = arith.divf %289, %290 : vector<8x1xf32>
    %292 = vector.broadcast %291 : vector<8x1xf32> to vector<8x32xf32>
    %293 = arith.subf %285, %292 : vector<8x32xf32>
    %294 = arith.mulf %293, %293 : vector<8x32xf32>
    %cst_123 = arith.constant dense<0.000000e+00> : vector<8xf32>
    %295 = vector.multi_reduction <add>, %294, %cst_123 [1] : vector<8x32xf32> to vector<8xf32>
    %296 = vector.shape_cast %295 : vector<8xf32> to vector<8x1xf32>
    %cst_124 = arith.constant 3.200000e+01 : f32
    %297 = vector.broadcast %cst_124 : f32 to vector<8x1xf32>
    %298 = arith.divf %296, %297 : vector<8x1xf32>
    %299 = vector.broadcast %291 : vector<8x1xf32> to vector<8x32xf32>
    %300 = arith.subf %285, %299 : vector<8x32xf32>
    %cst_125 = arith.constant 9.99999996E-13 : f32
    %301 = vector.broadcast %cst_125 : f32 to vector<8x1xf32>
    %302 = arith.addf %298, %301 : vector<8x1xf32>
    %303 = math.rsqrt %302 : vector<8x1xf32>
    %304 = vector.broadcast %303 : vector<8x1xf32> to vector<8x32xf32>
    %305 = arith.mulf %300, %304 : vector<8x32xf32>
    %306 = vector.broadcast %286 : vector<1x32xf32> to vector<8x32xf32>
    %307 = arith.mulf %305, %306 : vector<8x32xf32>
    %308 = vector.broadcast %287 : vector<1x32xf32> to vector<8x32xf32>
    %309 = arith.addf %307, %308 : vector<8x32xf32>
    %310 = vector.extract_strided_slice %1 {offsets = [2, 0], sizes = [1, 3], strides = [1, 1]} : vector<8x64xf32> to vector<1x3xf32>
    %311 = vector.extract_strided_slice %309 {offsets = [0, 0], sizes = [1, 32], strides = [1, 1]} : vector<8x32xf32> to vector<1x32xf32>
    %312 = arith.truncf %311 : vector<1x32xf32> to vector<1x32xbf16>
    %c0_126 = arith.constant 0 : index
    %c0_127 = arith.constant 0 : index
    %313 = vector.load %arg12[%c0_126, %c0_127] : memref<32x3xbf16, #tpu.memory_space<vmem>>, vector<32x3xbf16>
    %cst_128 = arith.constant dense<0.000000e+00> : vector<1x3xf32>
    %314 = tpu.matmul %312, %313, %cst_128 {dimension_numbers = #tpu.dot_dimension_numbers<[1], [0], [0], [1], [0, 0, 1, 1], [], []>} : vector<1x32xbf16>, vector<32x3xbf16>, vector<1x3xf32> -> vector<1x3xf32>
    %315 = arith.addf %314, %310 : vector<1x3xf32>
    %cst_129 = arith.constant dense<0xFF800000> : vector<1xf32>
    %316 = vector.multi_reduction <maximumf>, %315, %cst_129 [1] : vector<1x3xf32> to vector<1xf32>
    %317 = vector.shape_cast %316 : vector<1xf32> to vector<1x1xf32>
    %318 = vector.broadcast %317 : vector<1x1xf32> to vector<1x3xf32>
    %319 = arith.subf %315, %318 : vector<1x3xf32>
    %320 = math.exp %319 : vector<1x3xf32>
    %cst_130 = arith.constant dense<0.000000e+00> : vector<1xf32>
    %321 = vector.multi_reduction <add>, %320, %cst_130 [1] : vector<1x3xf32> to vector<1xf32>
    %322 = vector.shape_cast %321 : vector<1xf32> to vector<1x1xf32>
    %323 = math.log %322 : vector<1x1xf32>
    %324 = arith.addf %323, %317 : vector<1x1xf32>
    %c0_131 = arith.constant 0 : index
    %c0_132 = arith.constant 0 : index
    %c0_133 = arith.constant 0 : index
    %325 = vector.load %arg3[%c0_131, %c0_132, %c0_133] : memref<1x1x3xf32, #tpu.memory_space<vmem>>, vector<1x1x3xf32>
    %326 = vector.shape_cast %325 : vector<1x1x3xf32> to vector<1x3xf32>
    %327 = vector.broadcast %324 : vector<1x1xf32> to vector<1x3xf32>
    %328 = arith.subf %315, %327 : vector<1x3xf32>
    %329 = arith.mulf %326, %328 : vector<1x3xf32>
    %cst_134 = arith.constant dense<0.000000e+00> : vector<1xf32>
    %330 = vector.multi_reduction <add>, %329, %cst_134 [1] : vector<1x3xf32> to vector<1xf32>
    %331 = vector.shape_cast %330 : vector<1xf32> to vector<1x1xf32>
    %cst_135 = arith.constant 0.000000e+00 : f32
    %332 = vector.broadcast %cst_135 : f32 to vector<1x1xf32>
    %333 = arith.subf %332, %331 : vector<1x1xf32>
    %cst_136 = arith.constant 0.000000e+00 : f32
    %334 = vector.broadcast %cst_136 : f32 to vector<1x128xf32>
    %c0_137 = arith.constant 0 : index
    %c0_138 = arith.constant 0 : index
    %c0_139 = arith.constant 0 : index
    %335 = vector.load %arg13[%c0_137, %c0_138, %c0_139] : memref<1x1x128xf32, #tpu.memory_space<vmem>>, vector<1x1x128xf32>
    %336 = vector.shape_cast %335 : vector<1x1x128xf32> to vector<1x128xf32>
    %337 = vector.shape_cast %334 : vector<1x128xf32> to vector<1x1x128xf32>
    tpu.vector_store %arg13[%c0_137, %c0_138, %c0_139], %337 {strides = array<i32>} : memref<1x1x128xf32, #tpu.memory_space<vmem>>, vector<1x1x128xf32>,
    %c0_140 = arith.constant 0 : index
    %c0_141 = arith.constant 0 : index
    %c0_142 = arith.constant 0 : index
    %338 = vector.load %arg13[%c0_140, %c0_141, %c0_142] : memref<1x1x128xf32, #tpu.memory_space<vmem>>, vector<1x1x3xf32>
    %339 = vector.shape_cast %338 : vector<1x1x3xf32> to vector<1x3xf32>
    %340 = vector.shape_cast %315 : vector<1x3xf32> to vector<1x1x3xf32>
    tpu.vector_store %arg13[%c0_140, %c0_141, %c0_142], %340 {strides = array<i32>} : memref<1x1x128xf32, #tpu.memory_space<vmem>>, vector<1x1x3xf32>,
    %c0_143 = arith.constant 0 : index
    %c0_144 = arith.constant 0 : index
    %c3 = arith.constant 3 : index
    %341 = vector.load %arg13[%c0_143, %c0_144, %c3] : memref<1x1x128xf32, #tpu.memory_space<vmem>>, vector<1x1x1xf32>
    %342 = vector.shape_cast %341 : vector<1x1x1xf32> to vector<1x1xf32>
    %343 = vector.shape_cast %333 : vector<1x1xf32> to vector<1x1x1xf32>
    tpu.vector_store %arg13[%c0_143, %c0_144, %c3], %343 {strides = array<i32>} : memref<1x1x128xf32, #tpu.memory_space<vmem>>, vector<1x1x1xf32>,
    return
  }
  func.func @transform_0(%arg0: i32) -> (i32, i32, i32) {
    %c0_i32 = arith.constant 0 : i32
    %c0_i32_0 = arith.constant 0 : i32
    %c0_i32_1 = arith.constant 0 : i32
    return %arg0, %c0_i32, %c0_i32_0 : i32, i32, i32
  }
  func.func @transform_1(%arg0: i32) -> (i32, i32, i32) {
    %c0_i32 = arith.constant 0 : i32
    %c0_i32_0 = arith.constant 0 : i32
    %c0_i32_1 = arith.constant 0 : i32
    return %arg0, %c0_i32, %c0_i32_0 : i32, i32, i32
  }
  func.func @transform_2(%arg0: i32) -> (i32, i32, i32) {
    %c0_i32 = arith.constant 0 : i32
    %c0_i32_0 = arith.constant 0 : i32
    %c0_i32_1 = arith.constant 0 : i32
    return %arg0, %c0_i32, %c0_i32_0 : i32, i32, i32
  }
  func.func @transform_3(%arg0: i32) -> (i32, i32, i32, i32) {
    %c0_i32 = arith.constant 0 : i32
    %c0_i32_0 = arith.constant 0 : i32
    %c0_i32_1 = arith.constant 0 : i32
    %c0_i32_2 = arith.constant 0 : i32
    %c0_i32_3 = arith.constant 0 : i32
    return %c0_i32, %c0_i32_0, %c0_i32_1, %c0_i32_2 : i32, i32, i32, i32
  }
  func.func @transform_4(%arg0: i32) -> (i32, i32, i32, i32) {
    %c0_i32 = arith.constant 0 : i32
    %c0_i32_0 = arith.constant 0 : i32
    %c0_i32_1 = arith.constant 0 : i32
    %c0_i32_2 = arith.constant 0 : i32
    %c0_i32_3 = arith.constant 0 : i32
    return %c0_i32, %c0_i32_0, %c0_i32_1, %c0_i32_2 : i32, i32, i32, i32
  }
  func.func @transform_5(%arg0: i32) -> (i32, i32, i32, i32) {
    %c0_i32 = arith.constant 0 : i32
    %c0_i32_0 = arith.constant 0 : i32
    %c0_i32_1 = arith.constant 0 : i32
    %c0_i32_2 = arith.constant 0 : i32
    %c0_i32_3 = arith.constant 0 : i32
    return %c0_i32, %c0_i32_0, %c0_i32_1, %c0_i32_2 : i32, i32, i32, i32
  }
  func.func @transform_6(%arg0: i32) -> (i32, i32, i32) {
    %c0_i32 = arith.constant 0 : i32
    %c0_i32_0 = arith.constant 0 : i32
    %c0_i32_1 = arith.constant 0 : i32
    %c0_i32_2 = arith.constant 0 : i32
    return %c0_i32, %c0_i32_0, %c0_i32_1 : i32, i32, i32
  }
  func.func @transform_7(%arg0: i32) -> (i32, i32, i32) {
    %c0_i32 = arith.constant 0 : i32
    %c0_i32_0 = arith.constant 0 : i32
    %c0_i32_1 = arith.constant 0 : i32
    %c0_i32_2 = arith.constant 0 : i32
    return %c0_i32, %c0_i32_0, %c0_i32_1 : i32, i32, i32
  }
  func.func @transform_8(%arg0: i32) -> (i32, i32, i32, i32) {
    %c0_i32 = arith.constant 0 : i32
    %c0_i32_0 = arith.constant 0 : i32
    %c0_i32_1 = arith.constant 0 : i32
    %c0_i32_2 = arith.constant 0 : i32
    %c0_i32_3 = arith.constant 0 : i32
    return %c0_i32, %c0_i32_0, %c0_i32_1, %c0_i32_2 : i32, i32, i32, i32
  }
  func.func @transform_9(%arg0: i32) -> (i32, i32, i32, i32) {
    %c0_i32 = arith.constant 0 : i32
    %c0_i32_0 = arith.constant 0 : i32
    %c0_i32_1 = arith.constant 0 : i32
    %c0_i32_2 = arith.constant 0 : i32
    %c0_i32_3 = arith.constant 0 : i32
    return %c0_i32, %c0_i32_0, %c0_i32_1, %c0_i32_2 : i32, i32, i32, i32
  }
  func.func @transform_10(%arg0: i32) -> (i32, i32, i32) {
    %c0_i32 = arith.constant 0 : i32
    %c0_i32_0 = arith.constant 0 : i32
    %c0_i32_1 = arith.constant 0 : i32
    %c0_i32_2 = arith.constant 0 : i32
    return %c0_i32, %c0_i32_0, %c0_i32_1 : i32, i32, i32
  }
  func.func @transform_11(%arg0: i32) -> (i32, i32) {
    %c0_i32 = arith.constant 0 : i32
    %c0_i32_0 = arith.constant 0 : i32
    %c0_i32_1 = arith.constant 0 : i32
    return %c0_i32, %c0_i32_0 : i32, i32
  }
  func.func @transform_12(%arg0: i32) -> (i32, i32, i32) {
    %c0_i32 = arith.constant 0 : i32
    %c0_i32_0 = arith.constant 0 : i32
    %c0_i32_1 = arith.constant 0 : i32
    return %arg0, %c0_i32, %c0_i32_0 : i32, i32, i32
  }
}

</mosaic_0001>

<llo_original>
// kernel: forward.1
$region0: #{forward.1}
  #allocation0 [shape = 'u32[]', space=smem, size = 0x4, offset = 0x4, fixed_abs, tag = 'smem constant byte address 0x4 - core index']
  #allocation1 [shape = 'u32[144,128]{1,0:T(1,128)}', space=vmem, size = 0x12000, scoped, tag = 'internal scratch']
  %s0 = inlined_call_operand.vmem [shape: f32[2,8,32], index: 0, kind: input, shape index: {}]
  %s1 = inlined_call_operand.vmem [shape: f32[2,1,8], index: 1, kind: input, shape index: {}]
  %s2 = inlined_call_operand.vmem [shape: f32[2,1,3], index: 2, kind: input, shape index: {}]
  %s3 = inlined_call_operand.vmem [shape: bf16[2,12,32,8], index: 3, kind: input, shape index: {}]
  %s4 = inlined_call_operand.vmem [shape: f32[2,12,1,8], index: 4, kind: input, shape index: {}]
  %s5 = inlined_call_operand.vmem [shape: bf16[2,4,8,32], index: 5, kind: input, shape index: {}]
  %s6 = inlined_call_operand.vmem [shape: bf16[2,32,64], index: 6, kind: input, shape index: {}]
  %s7 = inlined_call_operand.vmem [shape: bf16[2,64,32], index: 7, kind: input, shape index: {}]
  %s8 = inlined_call_operand.vmem [shape: bf16[2,4,4,8], index: 8, kind: input, shape index: {}]
  %s9 = inlined_call_operand.vmem [shape: bf16[2,4,4,8], index: 9, kind: input, shape index: {}]
  %s10 = inlined_call_operand.vmem [shape: f32[3,8,64], index: 10, kind: input, shape index: {}]
  %s11 = inlined_call_operand.vmem [shape: bf16[32,3], index: 11, kind: input, shape index: {}]
  %s12 = inlined_call_operand.vmem [shape: f32[2,1,128], index: 12, kind: output, shape index: {}]
  %s13 = sld [smem:[#allocation0]]
  $region81: #{forward.1} parent=0
    _
  %s15 = ssub.s32 1, %s13
  %s16 = scalar_select 0, %s15, %s13
  loop: start=0, step=1, limit=4
  $region2: #{forward.1} parent=0 // loop_pre_header
    _
  $region3: #{forward.1} parent=0 // loop_header
    %s18 = sphi 0, %s22
    %p19 = scmp.ge.s32.totalorder %s18, 4
    %s28 = sphi 0, %s30
    %s31 = sphi 0, %s28
    %s32 = sphi 0, %s31
    %s48 = sphi 0, %s32
    %s54 = sphi 0, %s56
    %s57 = sphi 0, %s54
    %s58 = sphi 0, %s57
    %s74 = sphi 0, %s58
    %s80 = sphi 0, %s82
    %s83 = sphi 0, %s80
    %s84 = sphi 0, %s83
    %s100 = sphi 0, %s84
    %s104 = sphi 0, %s104
    %s106 = sphi 0, %s104
    %s107 = sphi 0, %s106
    %s121 = sphi 0, %s107
    %s125 = sphi 0, %s125
    %s127 = sphi 0, %s125
    %s128 = sphi 0, %s127
    %s142 = sphi 0, %s128
    %s146 = sphi 0, %s146
    %s148 = sphi 0, %s146
    %s149 = sphi 0, %s148
    %s163 = sphi 0, %s149
    %s167 = sphi 0, %s167
    %s169 = sphi 0, %s167
    %s170 = sphi 0, %s169
    %s184 = sphi 0, %s170
    %s188 = sphi 0, %s188
    %s190 = sphi 0, %s188
    %s191 = sphi 0, %s190
    %s205 = sphi 0, %s191
    %s209 = sphi 0, %s209
    %s211 = sphi 0, %s209
    %s212 = sphi 0, %s211
    %s226 = sphi 0, %s212
    %s230 = sphi 0, %s230
    %s232 = sphi 0, %s230
    %s233 = sphi 0, %s232
    %s247 = sphi 0, %s233
    %s251 = sphi 0, %s251
    %s253 = sphi 0, %s251
    %s254 = sphi 0, %s253
    %s268 = sphi 0, %s254
    %s272 = sphi 0, %s272
    %s274 = sphi 0, %s272
    %s275 = sphi 0, %s274
    %s289 = sphi 0, %s275
    %s295 = sphi 0, %s297
    %s298 = sphi 0, %s295
    %s299 = sphi 0, %s298
    %s315 = sphi 0, %s299
  $region4: #{forward.1} parent=0 // loop_header_branch
    %21 = sbr.rel (%p19) target = $region8
  $region5: #{forward.1} parent=0 // loop_body
    %s23 = ssub.s32 %s18, 1
    %s24 = ssub.s32 %s18, 2
    %s25 = sadd.s32 %s18, 1
    %s26 = ssub.s32 %s18, %s25
    %p27 = scmp.eq.s32.totalorder %s26, 0
    %s29 = sadd.s32 %s28, 1
    %s30 = scalar_select %p27, %s28, %s29
    %p33 = pneg %p27
    %p34 = scmp.eq.s32.totalorder %s18, 1
    %p35 = por %p33, %p34
    %p36 = scmp.ne.s32.totalorder %s28, %s31
    %p37 = scmp.eq.s32.totalorder %s18, 0
    %p38 = por %p36, %p37
    %p39 = scmp.ne.s32.totalorder %s28, %s31
    %p40 = scmp.eq.s32.totalorder %s23, 1
    %p41 = por %p39, %p40
    %p42 = scmp.ne.s32.totalorder %s31, %s32
    %p43 = scmp.eq.s32.totalorder %s23, 0
    %p44 = por %p42, %p43
    %p45 = scmp.ne.s32.totalorder %s31, %s32
    %p46 = scmp.eq.s32.totalorder %s24, 1
    %p47 = por %p45, %p46
    %p49 = scmp.ne.s32.totalorder %s32, %s48
    %p50 = scmp.eq.s32.totalorder %s24, 0
    %p51 = por %p49, %p50
    %s52 = ssub.s32 %s18, %s25
    %p53 = scmp.eq.s32.totalorder %s52, 0
    %s55 = sadd.s32 %s54, 1
    %s56 = scalar_select %p53, %s54, %s55
    %p59 = pneg %p53
    %p60 = scmp.eq.s32.totalorder %s18, 1
    %p61 = por %p59, %p60
    %p62 = scmp.ne.s32.totalorder %s54, %s57
    %p63 = scmp.eq.s32.totalorder %s18, 0
    %p64 = por %p62, %p63
    %p65 = scmp.ne.s32.totalorder %s54, %s57
    %p66 = scmp.eq.s32.totalorder %s23, 1
    %p67 = por %p65, %p66
    %p68 = scmp.ne.s32.totalorder %s57, %s58
    %p69 = scmp.eq.s32.totalorder %s23, 0
    %p70 = por %p68, %p69
    %p71 = scmp.ne.s32.totalorder %s57, %s58
    %p72 = scmp.eq.s32.totalorder %s24, 1
    %p73 = por %p71, %p72
    %p75 = scmp.ne.s32.totalorder %s58, %s74
    %p76 = scmp.eq.s32.totalorder %s24, 0
    %p77 = por %p75, %p76
    %s78 = ssub.s32 %s18, %s25
    %p79 = scmp.eq.s32.totalorder %s78, 0
    %s81 = sadd.s32 %s80, 1
    %s82 = scalar_select %p79, %s80, %s81
    %p85 = pneg %p79
    %p86 = scmp.eq.s32.totalorder %s18, 1
    %p87 = por %p85, %p86
    %p88 = scmp.ne.s32.totalorder %s80, %s83
    %p89 = scmp.eq.s32.totalorder %s18, 0
    %p90 = por %p88, %p89
    %p91 = scmp.ne.s32.totalorder %s80, %s83
    %p92 = scmp.eq.s32.totalorder %s23, 1
    %p93 = por %p91, %p92
    %p94 = scmp.ne.s32.totalorder %s83, %s84
    %p95 = scmp.eq.s32.totalorder %s23, 0
    %p96 = por %p94, %p95
    %p97 = scmp.ne.s32.totalorder %s83, %s84
    %p98 = scmp.eq.s32.totalorder %s24, 1
    %p99 = por %p97, %p98
    %p101 = scmp.ne.s32.totalorder %s84, %s100
    %p102 = scmp.eq.s32.totalorder %s24, 0
    %p103 = por %p101, %p102
    %s105 = sadd.s32 %s104, 1
    %p108 = scmp.eq.s32.totalorder %s18, 1
    %p109 = scmp.ne.s32.totalorder %s104, %s106
    %p110 = scmp.eq.s32.totalorder %s18, 0
    %p111 = por %p109, %p110
    %p112 = scmp.ne.s32.totalorder %s104, %s106
    %p113 = scmp.eq.s32.totalorder %s23, 1
    %p114 = por %p112, %p113
    %p115 = scmp.ne.s32.totalorder %s106, %s107
    %p116 = scmp.eq.s32.totalorder %s23, 0
    %p117 = por %p115, %p116
    %p118 = scmp.ne.s32.totalorder %s106, %s107
    %p119 = scmp.eq.s32.totalorder %s24, 1
    %p120 = por %p118, %p119
    %p122 = scmp.ne.s32.totalorder %s107, %s121
    %p123 = scmp.eq.s32.totalorder %s24, 0
    %p124 = por %p122, %p123
    %s126 = sadd.s32 %s125, 1
    %p129 = scmp.eq.s32.totalorder %s18, 1
    %p130 = scmp.ne.s32.totalorder %s125, %s127
    %p131 = scmp.eq.s32.totalorder %s18, 0
    %p132 = por %p130, %p131
    %p133 = scmp.ne.s32.totalorder %s125, %s127
    %p134 = scmp.eq.s32.totalorder %s23, 1
    %p135 = por %p133, %p134
    %p136 = scmp.ne.s32.totalorder %s127, %s128
    %p137 = scmp.eq.s32.totalorder %s23, 0
    %p138 = por %p136, %p137
    %p139 = scmp.ne.s32.totalorder %s127, %s128
    %p140 = scmp.eq.s32.totalorder %s24, 1
    %p141 = por %p139, %p140
    %p143 = scmp.ne.s32.totalorder %s128, %s142
    %p144 = scmp.eq.s32.totalorder %s24, 0
    %p145 = por %p143, %p144
    %s147 = sadd.s32 %s146, 1
    %p150 = scmp.eq.s32.totalorder %s18, 1
    %p151 = scmp.ne.s32.totalorder %s146, %s148
    %p152 = scmp.eq.s32.totalorder %s18, 0
    %p153 = por %p151, %p152
    %p154 = scmp.ne.s32.totalorder %s146, %s148
    %p155 = scmp.eq.s32.totalorder %s23, 1
    %p156 = por %p154, %p155
    %p157 = scmp.ne.s32.totalorder %s148, %s149
    %p158 = scmp.eq.s32.totalorder %s23, 0
    %p159 = por %p157, %p158
    %p160 = scmp.ne.s32.totalorder %s148, %s149
    %p161 = scmp.eq.s32.totalorder %s24, 1
    %p162 = por %p160, %p161
    %p164 = scmp.ne.s32.totalorder %s149, %s163
    %p165 = scmp.eq.s32.totalorder %s24, 0
    %p166 = por %p164, %p165
    %s168 = sadd.s32 %s167, 1
    %p171 = scmp.eq.s32.totalorder %s18, 1
    %p172 = scmp.ne.s32.totalorder %s167, %s169
    %p173 = scmp.eq.s32.totalorder %s18, 0
    %p174 = por %p172, %p173
    %p175 = scmp.ne.s32.totalorder %s167, %s169
    %p176 = scmp.eq.s32.totalorder %s23, 1
    %p177 = por %p175, %p176
    %p178 = scmp.ne.s32.totalorder %s169, %s170
    %p179 = scmp.eq.s32.totalorder %s23, 0
    %p180 = por %p178, %p179
    %p181 = scmp.ne.s32.totalorder %s169, %s170
    %p182 = scmp.eq.s32.totalorder %s24, 1
    %p183 = por %p181, %p182
    %p185 = scmp.ne.s32.totalorder %s170, %s184
    %p186 = scmp.eq.s32.totalorder %s24, 0
    %p187 = por %p185, %p186
    %s189 = sadd.s32 %s188, 1
    %p192 = scmp.eq.s32.totalorder %s18, 1
    %p193 = scmp.ne.s32.totalorder %s188, %s190
    %p194 = scmp.eq.s32.totalorder %s18, 0
    %p195 = por %p193, %p194
    %p196 = scmp.ne.s32.totalorder %s188, %s190
    %p197 = scmp.eq.s32.totalorder %s23, 1
    %p198 = por %p196, %p197
    %p199 = scmp.ne.s32.totalorder %s190, %s191
    %p200 = scmp.eq.s32.totalorder %s23, 0
    %p201 = por %p199, %p200
    %p202 = scmp.ne.s32.totalorder %s190, %s191
    %p203 = scmp.eq.s32.totalorder %s24, 1
    %p204 = por %p202, %p203
    %p206 = scmp.ne.s32.totalorder %s191, %s205
    %p207 = scmp.eq.s32.totalorder %s24, 0
    %p208 = por %p206, %p207
    %s210 = sadd.s32 %s209, 1
    %p213 = scmp.eq.s32.totalorder %s18, 1
    %p214 = scmp.ne.s32.totalorder %s209, %s211
    %p215 = scmp.eq.s32.totalorder %s18, 0
    %p216 = por %p214, %p215
    %p217 = scmp.ne.s32.totalorder %s209, %s211
    %p218 = scmp.eq.s32.totalorder %s23, 1
    %p219 = por %p217, %p218
    %p220 = scmp.ne.s32.totalorder %s211, %s212
    %p221 = scmp.eq.s32.totalorder %s23, 0
    %p222 = por %p220, %p221
    %p223 = scmp.ne.s32.totalorder %s211, %s212
    %p224 = scmp.eq.s32.totalorder %s24, 1
    %p225 = por %p223, %p224
    %p227 = scmp.ne.s32.totalorder %s212, %s226
    %p228 = scmp.eq.s32.totalorder %s24, 0
    %p229 = por %p227, %p228
    %s231 = sadd.s32 %s230, 1
    %p234 = scmp.eq.s32.totalorder %s18, 1
    %p235 = scmp.ne.s32.totalorder %s230, %s232
    %p236 = scmp.eq.s32.totalorder %s18, 0
    %p237 = por %p235, %p236
    %p238 = scmp.ne.s32.totalorder %s230, %s232
    %p239 = scmp.eq.s32.totalorder %s23, 1
    %p240 = por %p238, %p239
    %p241 = scmp.ne.s32.totalorder %s232, %s233
    %p242 = scmp.eq.s32.totalorder %s23, 0
    %p243 = por %p241, %p242
    %p244 = scmp.ne.s32.totalorder %s232, %s233
    %p245 = scmp.eq.s32.totalorder %s24, 1
    %p246 = por %p244, %p245
    %p248 = scmp.ne.s32.totalorder %s233, %s247
    %p249 = scmp.eq.s32.totalorder %s24, 0
    %p250 = por %p248, %p249
    %s252 = sadd.s32 %s251, 1
    %p255 = scmp.eq.s32.totalorder %s18, 1
    %p256 = scmp.ne.s32.totalorder %s251, %s253
    %p257 = scmp.eq.s32.totalorder %s18, 0
    %p258 = por %p256, %p257
    %p259 = scmp.ne.s32.totalorder %s251, %s253
    %p260 = scmp.eq.s32.totalorder %s23, 1
    %p261 = por %p259, %p260
    %p262 = scmp.ne.s32.totalorder %s253, %s254
    %p263 = scmp.eq.s32.totalorder %s23, 0
    %p264 = por %p262, %p263
    %p265 = scmp.ne.s32.totalorder %s253, %s254
    %p266 = scmp.eq.s32.totalorder %s24, 1
    %p267 = por %p265, %p266
    %p269 = scmp.ne.s32.totalorder %s254, %s268
    %p270 = scmp.eq.s32.totalorder %s24, 0
    %p271 = por %p269, %p270
    %s273 = sadd.s32 %s272, 1
    %p276 = scmp.eq.s32.totalorder %s18, 1
    %p277 = scmp.ne.s32.totalorder %s272, %s274
    %p278 = scmp.eq.s32.totalorder %s18, 0
    %p279 = por %p277, %p278
    %p280 = scmp.ne.s32.totalorder %s272, %s274
    %p281 = scmp.eq.s32.totalorder %s23, 1
    %p282 = por %p280, %p281
    %p283 = scmp.ne.s32.totalorder %s274, %s275
    %p284 = scmp.eq.s32.totalorder %s23, 0
    %p285 = por %p283, %p284
    %p286 = scmp.ne.s32.totalorder %s274, %s275
    %p287 = scmp.eq.s32.totalorder %s24, 1
    %p288 = por %p286, %p287
    %p290 = scmp.ne.s32.totalorder %s275, %s289
    %p291 = scmp.eq.s32.totalorder %s24, 0
    %p292 = por %p290, %p291
    %s293 = ssub.s32 %s18, %s25
    %p294 = scmp.eq.s32.totalorder %s293, 0
    %s296 = sadd.s32 %s295, 1
    %s297 = scalar_select %p294, %s295, %s296
    %p300 = pneg %p294
    %p301 = scmp.eq.s32.totalorder %s18, 1
    %p302 = por %p300, %p301
    %p303 = scmp.ne.s32.totalorder %s295, %s298
    %p304 = scmp.eq.s32.totalorder %s18, 0
    %p305 = por %p303, %p304
    %p306 = scmp.ne.s32.totalorder %s295, %s298
    %p307 = scmp.eq.s32.totalorder %s23, 1
    %p308 = por %p306, %p307
    %p309 = scmp.ne.s32.totalorder %s298, %s299
    %p310 = scmp.eq.s32.totalorder %s23, 0
    %p311 = por %p309, %p310
    %p312 = scmp.ne.s32.totalorder %s298, %s299
    %p313 = scmp.eq.s32.totalorder %s24, 1
    %p314 = por %p312, %p313
    %p316 = scmp.ne.s32.totalorder %s299, %s315
    %p317 = scmp.eq.s32.totalorder %s24, 0
    %p318 = por %p316, %p317
    %p319 = scmp.le.s32.totalorder 1, %s18
    %p320 = scmp.lt.s32.totalorder %s18, 3
    %p321 = pnand %p319, %p320
    %p322 = pneg %p321
    // Predicated region
    $region9: #{forward.1} parent=5 // pred_check
      _
    $region10: #{forward.1} parent=5 // pred_check_branch
      %324 = sbr.rel (%p321) target = $region12
    $region11: #{forward.1} parent=5 // pred_region
      %s325 = ssub.s32 %s18, 1
      // Predicated region
      $region13: #{forward.1} parent=11 // pred_check
        %p326 = pneg %p117
      $region14: #{forward.1} parent=11 // pred_check_branch
        %328 = sbr.rel (%p326) target = $region16
      $region15: #{forward.1} parent=11 // pred_region
        _
      $region16: #{forward.1} parent=11 // pred_fallthru
        _
      // Predicated region
      $region17: #{forward.1} parent=11 // pred_check
        %p329 = pneg %p138
      $region18: #{forward.1} parent=11 // pred_check_branch
        %331 = sbr.rel (%p329) target = $region20
      $region19: #{forward.1} parent=11 // pred_region
        _
      $region20: #{forward.1} parent=11 // pred_fallthru
        _
      // Predicated region
      $region21: #{forward.1} parent=11 // pred_check
        %p332 = pneg %p159
      $region22: #{forward.1} parent=11 // pred_check_branch
        %334 = sbr.rel (%p332) target = $region24
      $region23: #{forward.1} parent=11 // pred_region
        _
      $region24: #{forward.1} parent=11 // pred_fallthru
        _
      // Predicated region
      $region25: #{forward.1} parent=11 // pred_check
        %p335 = pneg %p180
      $region26: #{forward.1} parent=11 // pred_check_branch
        %337 = sbr.rel (%p335) target = $region28
      $region27: #{forward.1} parent=11 // pred_region
        _
      $region28: #{forward.1} parent=11 // pred_fallthru
        _
      // Predicated region
      $region29: #{forward.1} parent=11 // pred_check
        %p338 = pneg %p201
      $region30: #{forward.1} parent=11 // pred_check_branch
        %340 = sbr.rel (%p338) target = $region32
      $region31: #{forward.1} parent=11 // pred_region
        _
      $region32: #{forward.1} parent=11 // pred_fallthru
        _
      // Predicated region
      $region33: #{forward.1} parent=11 // pred_check
        %p341 = pneg %p222
      $region34: #{forward.1} parent=11 // pred_check_branch
        %343 = sbr.rel (%p341) target = $region36
      $region35: #{forward.1} parent=11 // pred_region
        _
      $region36: #{forward.1} parent=11 // pred_fallthru
        _
      // Predicated region
      $region37: #{forward.1} parent=11 // pred_check
        %p344 = pneg %p243
      $region38: #{forward.1} parent=11 // pred_check_branch
        %346 = sbr.rel (%p344) target = $region40
      $region39: #{forward.1} parent=11 // pred_region
        _
      $region40: #{forward.1} parent=11 // pred_fallthru
        _
      // Predicated region
      $region41: #{forward.1} parent=11 // pred_check
        %p347 = pneg %p264
      $region42: #{forward.1} parent=11 // pred_check_branch
        %349 = sbr.rel (%p347) target = $region44
      $region43: #{forward.1} parent=11 // pred_region
        _
      $region44: #{forward.1} parent=11 // pred_fallthru
        _
      // Predicated region
      $region45: #{forward.1} parent=11 // pred_check
        %p350 = pneg %p285
      $region46: #{forward.1} parent=11 // pred_check_branch
        %352 = sbr.rel (%p350) target = $region48
      $region47: #{forward.1} parent=11 // pred_region
        _
      $region48: #{forward.1} parent=11 // pred_fallthru
        _
    $region12: #{forward.1} parent=5 // pred_fallthru
      _
    %p353 = scmp.lt.s32.totalorder %s18, 2
    // Predicated region
    $region49: #{forward.1} parent=5 // pred_check
      %p354 = pneg %p353
    $region50: #{forward.1} parent=5 // pred_check_branch
      %356 = sbr.rel (%p354) target = $region52
    $region51: #{forward.1} parent=5 // pred_region
      // Predicated region
      $region53: #{forward.1} parent=51 // pred_check
        %p357 = pneg %p38
      $region54: #{forward.1} parent=51 // pred_check_branch
        %359 = sbr.rel (%p357) target = $region56
      $region55: #{forward.1} parent=51 // pred_region
        %p360 = scmp.lt.s32.totalorder %s18, 1
        %s361 = scalar_select %p360, %s18, 1
        %s362 = smul.addr %s361, 8
        %s363 = scalar_lea.vmem %s0, %s362
      $region56: #{forward.1} parent=51 // pred_fallthru
        _
      // Predicated region
      $region57: #{forward.1} parent=51 // pred_check
        %p364 = pneg %p64
      $region58: #{forward.1} parent=51 // pred_check_branch
        %366 = sbr.rel (%p364) target = $region60
      $region59: #{forward.1} parent=51 // pred_region
        %p367 = scmp.lt.s32.totalorder %s18, 1
        %s368 = scalar_select %p367, %s18, 1
        %s369 = scalar_lea.vmem %s1, %s368
      $region60: #{forward.1} parent=51 // pred_fallthru
        _
      // Predicated region
      $region61: #{forward.1} parent=51 // pred_check
        %p370 = pneg %p90
      $region62: #{forward.1} parent=51 // pred_check_branch
        %372 = sbr.rel (%p370) target = $region64
      $region63: #{forward.1} parent=51 // pred_region
        %p373 = scmp.lt.s32.totalorder %s18, 1
        %s374 = scalar_select %p373, %s18, 1
        %s375 = scalar_lea.vmem %s2, %s374
      $region64: #{forward.1} parent=51 // pred_fallthru
        _
    $region52: #{forward.1} parent=5 // pred_fallthru
      _
    %p376 = scmp.le.s32.totalorder 1, %s18
    %p377 = scmp.lt.s32.totalorder %s18, 3
    %p378 = pnand %p376, %p377
    %p379 = pneg %p378
    // Predicated region
    $region65: #{forward.1} parent=5 // pred_check
      _
    $region66: #{forward.1} parent=5 // pred_check_branch
      %381 = sbr.rel (%p378) target = $region68
    $region67: #{forward.1} parent=5 // pred_region
      %s382 = ssub.s32 %s18, 1
      %p383 = scmp.lt.s32.totalorder %s23, 1
      %s384 = scalar_select %p383, %s23, 1
      %s385 = smul.addr %s384, 8
      %s386 = scalar_lea.vmem %s0, %s385
      %p387 = pneg %p44
      %p388 = pneg %p41
      %p389 = scmp.lt.s32.totalorder %s23, 1
      %s390 = scalar_select %p389, %s23, 1
      %s391 = scalar_lea.vmem %s1, %s390
      %p392 = pneg %p70
      %p393 = pneg %p67
      %p394 = scmp.lt.s32.totalorder %s23, 1
      %s395 = scalar_select %p394, %s23, 1
      %s396 = scalar_lea.vmem %s2, %s395
      %p397 = pneg %p96
      %p398 = pneg %p93
      %p399 = pneg %p117
      %p400 = pneg %p114
      %p401 = pneg %p138
      %p402 = pneg %p135
      %p403 = pneg %p159
      %p404 = pneg %p156
      %p405 = pneg %p180
      %p406 = pneg %p177
      %p407 = pneg %p201
      %p408 = pneg %p198
      %p409 = pneg %p222
      %p410 = pneg %p219
      %p411 = pneg %p243
      %p412 = pneg %p240
      %p413 = pneg %p264
      %p414 = pneg %p261
      %p415 = pneg %p285
      %p416 = pneg %p282
      %p417 = pneg %p311
      %p418 = pneg %p308
      %p419 = scmp.lt.s32.totalorder %s23, 1
      %s420 = scalar_select %p419, %s23, 1
      %s421 = scalar_lea.vmem %s12, %s420
      %p422 = scmp.lt.s32.totalorder %s23, 1
      %s423 = scalar_select %p422, %s23, 1
      %s424 = smul.addr %s423, 8
      %s425 = scalar_lea.vmem %s0, %s424
      %p426 = scmp.lt.s32.totalorder %s23, 1
      %s427 = scalar_select %p426, %s23, 1
      %s428 = scalar_lea.vmem %s1, %s427
      %p429 = scmp.lt.s32.totalorder %s23, 1
      %s430 = scalar_select %p429, %s23, 1
      %s431 = scalar_lea.vmem %s2, %s430
      %p432 = scmp.lt.s32.totalorder %s23, 1
      %s433 = scalar_select %p432, %s23, 1
      %s434 = scalar_lea.vmem %s12, %s433
      %s436 = scalar_lea.vmem %s10, 16
      %v437 = vld [vmem:[%s436] sm:$0xff]
      %v438 = vld [vmem:[%s425] sm:$0xff]
      %vm439 = vcmask 261120
      %v440 = vsel %vm439, %v438, 0.0
      %441 = vadd.xlane.f32.xlu0 %v440
      %v442 = vpop.xlane.xlu0 %441
      %v443 = vrcp.pop 32.0
      %v444 = vmul.f32 %v442, %v443
      %v445 = vsub.f32 %v438, %v444
      %v446 = vmul.f32 %v445, %v445
      %v447 = vsel %vm439, %v446, 0.0
      %448 = vadd.xlane.f32.xlu0 %v447
      %v449 = vpop.xlane.xlu0 %448
      %v450 = vmul.f32 %v449, %v443
      %v451 = vadd.f32 %v450, 1e-12
      %v452 = vrsqrt.pop %v451
      %v453 = vmul.f32 %v445, %v452
      %v454 = vlaneseq
      %v455 = vshrl.u32 %v454, 7
      %v456 = vsub.s32 0, %v455
      %v457 = vrot.slane %v437, %v456
      %v458 = vmul.f32 %v453, %v457
      %v459 = vlaneseq
      %v460 = vshrl.u32 %v459, 7
      %v461 = vsub.s32 1, %v460
      %v462 = vrot.slane %v437, %v461
      %v463 = vadd.f32 %v458, %v462
      %v464 = vld [vmem:[%s428] sm:$0x1]
      %v465 = vld [vmem:[%s10] sm:$0xff]
      %v466 = vpack.c.bf16 %v463, %v463
      %v467 = vld [vmem:[%s3] sm:$0xf]
      %v468 = vld [vmem:[%s3 + $0x4] sm:$0xf]
      %v469 = vld [vmem:[%s3 + $0x8] sm:$0xf]
      %v470 = vld [vmem:[%s3 + $0xc] sm:$0xf]
      %v471 = vld [vmem:[%s3 + $0x10] sm:$0xf]
      %v472 = vld [vmem:[%s3 + $0x14] sm:$0xf]
      %v473 = vld [vmem:[%s3 + $0x18] sm:$0xf]
      %v474 = vld [vmem:[%s3 + $0x1c] sm:$0xf]
      %v475 = vld [vmem:[%s3 + $0x20] sm:$0xf]
      %v476 = vld [vmem:[%s3 + $0x24] sm:$0xf]
      %v477 = vld [vmem:[%s3 + $0x28] sm:$0xf]
      %v478 = vld [vmem:[%s3 + $0x2c] sm:$0xf]
      %v479 = vld [vmem:[%s3 + $0x30] sm:$0xf]
      %v480 = vld [vmem:[%s3 + $0x34] sm:$0xf]
      %v481 = vld [vmem:[%s3 + $0x38] sm:$0xf]
      %v482 = vld [vmem:[%s3 + $0x3c] sm:$0xf]
      %v483 = vld [vmem:[%s3 + $0x40] sm:$0xf]
      %v484 = vld [vmem:[%s3 + $0x44] sm:$0xf]
      %v485 = vld [vmem:[%s3 + $0x48] sm:$0xf]
      %v486 = vld [vmem:[%s3 + $0x4c] sm:$0xf]
      %v487 = vld [vmem:[%s3 + $0x50] sm:$0xf]
      %v488 = vld [vmem:[%s3 + $0x54] sm:$0xf]
      %v489 = vld [vmem:[%s3 + $0x58] sm:$0xf]
      %v490 = vld [vmem:[%s3 + $0x5c] sm:$0xf]
      %v491 = vld [vmem:[%s3 + $0x60] sm:$0xf]
      %v492 = vld [vmem:[%s3 + $0x64] sm:$0xf]
      %v493 = vld [vmem:[%s3 + $0x68] sm:$0xf]
      %v494 = vld [vmem:[%s3 + $0x6c] sm:$0xf]
      %v495 = vld [vmem:[%s3 + $0x70] sm:$0xf]
      %v496 = vld [vmem:[%s3 + $0x74] sm:$0xf]
      %v497 = vld [vmem:[%s3 + $0x78] sm:$0xf]
      %v498 = vld [vmem:[%s3 + $0x7c] sm:$0xf]
      %v499 = vld [vmem:[%s3 + $0x80] sm:$0xf]
      %v500 = vld [vmem:[%s3 + $0x84] sm:$0xf]
      %v501 = vld [vmem:[%s3 + $0x88] sm:$0xf]
      %v502 = vld [vmem:[%s3 + $0x8c] sm:$0xf]
      %v503 = vld [vmem:[%s3 + $0x90] sm:$0xf]
      %v504 = vld [vmem:[%s3 + $0x94] sm:$0xf]
      %v505 = vld [vmem:[%s3 + $0x98] sm:$0xf]
      %v506 = vld [vmem:[%s3 + $0x9c] sm:$0xf]
      %v507 = vld [vmem:[%s3 + $0xa0] sm:$0xf]
      %v508 = vld [vmem:[%s3 + $0xa4] sm:$0xf]
      %v509 = vld [vmem:[%s3 + $0xa8] sm:$0xf]
      %v510 = vld [vmem:[%s3 + $0xac] sm:$0xf]
      %v511 = vld [vmem:[%s3 + $0xb0] sm:$0xf]
      %v512 = vld [vmem:[%s3 + $0xb4] sm:$0xf]
      %v513 = vld [vmem:[%s3 + $0xb8] sm:$0xf]
      %v514 = vld [vmem:[%s3 + $0xbc] sm:$0xf]
      %v515 = vld [vmem:[%s4] sm:$0x1]
      %v516 = vld [vmem:[%s4 + $0x1] sm:$0x1]
      %v517 = vld [vmem:[%s4 + $0x2] sm:$0x1]
      %v518 = vld [vmem:[%s4 + $0x3] sm:$0x1]
      %v519 = vld [vmem:[%s4 + $0x4] sm:$0x1]
      %v520 = vld [vmem:[%s4 + $0x5] sm:$0x1]
      %v521 = vld [vmem:[%s4 + $0x6] sm:$0x1]
      %v522 = vld [vmem:[%s4 + $0x7] sm:$0x1]
      %v523 = vld [vmem:[%s4 + $0x8] sm:$0x1]
      %v524 = vld [vmem:[%s4 + $0x9] sm:$0x1]
      %v525 = vld [vmem:[%s4 + $0xa] sm:$0x1]
      %v526 = vld [vmem:[%s4 + $0xb] sm:$0x1]
      %v539 = vlaneseq
      %v540 = vshrl.u32 %v539, 7
      %v541 = vsub.s32 0, %v540
      %v542 = vrot.slane %v515, %v541
      %v543 = vlaneseq
      %v544 = vshrl.u32 %v543, 7
      %v545 = vsub.s32 0, %v544
      %v546 = vrot.slane %v516, %v545
      %v547 = vlaneseq
      %v548 = vshrl.u32 %v547, 7
      %v549 = vsub.s32 0, %v548
      %v550 = vrot.slane %v517, %v549
      %v551 = vlaneseq
      %v552 = vshrl.u32 %v551, 7
      %v553 = vsub.s32 0, %v552
      %v554 = vrot.slane %v518, %v553
      %v555 = vlaneseq
      %v556 = vshrl.u32 %v555, 7
      %v557 = vsub.s32 0, %v556
      %v558 = vrot.slane %v519, %v557
      %v559 = vlaneseq
      %v560 = vshrl.u32 %v559, 7
      %v561 = vsub.s32 0, %v560
      %v562 = vrot.slane %v520, %v561
      %v563 = vlaneseq
      %v564 = vshrl.u32 %v563, 7
      %v565 = vsub.s32 0, %v564
      %v566 = vrot.slane %v521, %v565
      %v567 = vlaneseq
      %v568 = vshrl.u32 %v567, 7
      %v569 = vsub.s32 0, %v568
      %v570 = vrot.slane %v522, %v569
      %v571 = vlaneseq
      %v572 = vshrl.u32 %v571, 7
      %v573 = vsub.s32 0, %v572
      %v574 = vrot.slane %v523, %v573
      %v575 = vlaneseq
      %v576 = vshrl.u32 %v575, 7
      %v577 = vsub.s32 0, %v576
      %v578 = vrot.slane %v524, %v577
      %v579 = vlaneseq
      %v580 = vshrl.u32 %v579, 7
      %v581 = vsub.s32 0, %v580
      %v582 = vrot.slane %v525, %v581
      %v583 = vlaneseq
      %v584 = vshrl.u32 %v583, 7
      %v585 = vsub.s32 0, %v584
      %v586 = vrot.slane %v526, %v585
      %v603 = vunpack.c.l.b16 %v467
      %v604 = vunpack.c.l.b16 %v468
      %v605 = vunpack.c.l.b16 %v469
      %v606 = vunpack.c.l.b16 %v470
      %v607 = vpack.c.b16 %v604, %v603
      %v608 = vpack.c.b16 %v606, %v605
      %v612 = vsel %vm439, %v466, 0
      %614 = vmatprep.subr.bf16.mxu0 0
      %615 = vmatpush1.bf16.msra.mxu0 %v607
      %616 = vmatprep.subr.bf16.mxu0 0
      %617 = vmatpush1.bf16.msra.mxu0 %v608
      %618 = vmatprep.subr.bf16.mxu0 0
      %619 = vmatpush1.bf16.msra.mxu0 0
      %620 = vmatprep.subr.bf16.mxu0 0
      %621 = vmatpush1.bf16.msra.mxu0 0
      %622 = vmatprep.subr.bf16.mxu0 0
      %623 = vmatpush1.bf16.msra.mxu0 0
      %624 = vmatprep.subr.bf16.mxu0 0
      %625 = vmatpush1.bf16.msra.mxu0 0
      %626 = vmatprep.subr.bf16.mxu0 0
      %627 = vmatpush1.bf16.msra.mxu0 0
      %628 = vmatprep.subr.bf16.mxu0 0
      %629 = vmatpush1.bf16.msra.mxu0 0
      %630 = vmatprep.subr.bf16.mxu0 0
      %631 = vmatpush1.bf16.msra.mxu0 0
      %632 = vmatprep.subr.bf16.mxu0 0
      %633 = vmatpush1.bf16.msra.mxu0 0
      %634 = vmatprep.subr.bf16.mxu0 0
      %635 = vmatpush1.bf16.msra.mxu0 0
      %636 = vmatprep.subr.bf16.mxu0 0
      %637 = vmatpush1.bf16.msra.mxu0 0
      %638 = vmatprep.subr.bf16.mxu0 0
      %639 = vmatpush1.bf16.msra.mxu0 0
      %640 = vmatprep.subr.bf16.mxu0 0
      %641 = vmatpush1.bf16.msra.mxu0 0
      %642 = vmatprep.subr.bf16.mxu0 0
      %643 = vmatpush1.bf16.msra.mxu0 0
      %644 = vmatprep.subr.bf16.mxu0 0
      %645 = vmatpush1.bf16.msra.mxu0 0
      %646 = vmatprep.mubr.bf16.mxu0 0
      %647 = vmatmul.mubr.bf16.gmra.mrb[0].mxu0 %v612
      %v648 = vpop.f32.mrb[0].mxu0
      %v649 = vadd.f32 %v542, %v648
      %v650 = vpop.f32.mrb[0].mxu0
      %v651 = vpop.f32.mrb[0].mxu0
      %v652 = vpop.f32.mrb[0].mxu0
      %653 = vdwg.mxu0
      %v658 = vunpack.c.l.b16 %v471
      %v659 = vunpack.c.l.b16 %v472
      %v660 = vunpack.c.l.b16 %v473
      %v661 = vunpack.c.l.b16 %v474
      %v662 = vpack.c.b16 %v659, %v658
      %v663 = vpack.c.b16 %v661, %v660
      %666 = vmatprep.subr.bf16.mxu0 0
      %667 = vmatpush1.bf16.msra.mxu0 %v662
      %668 = vmatprep.subr.bf16.mxu0 0
      %669 = vmatpush1.bf16.msra.mxu0 %v663
      %670 = vmatprep.subr.bf16.mxu0 0
      %671 = vmatpush1.bf16.msra.mxu0 0
      %672 = vmatprep.subr.bf16.mxu0 0
      %673 = vmatpush1.bf16.msra.mxu0 0
      %674 = vmatprep.subr.bf16.mxu0 0
      %675 = vmatpush1.bf16.msra.mxu0 0
      %676 = vmatprep.subr.bf16.mxu0 0
      %677 = vmatpush1.bf16.msra.mxu0 0
      %678 = vmatprep.subr.bf16.mxu0 0
      %679 = vmatpush1.bf16.msra.mxu0 0
      %680 = vmatprep.subr.bf16.mxu0 0
      %681 = vmatpush1.bf16.msra.mxu0 0
      %682 = vmatprep.subr.bf16.mxu0 0
      %683 = vmatpush1.bf16.msra.mxu0 0
      %684 = vmatprep.subr.bf16.mxu0 0
      %685 = vmatpush1.bf16.msra.mxu0 0
      %686 = vmatprep.subr.bf16.mxu0 0
      %687 = vmatpush1.bf16.msra.mxu0 0
      %688 = vmatprep.subr.bf16.mxu0 0
      %689 = vmatpush1.bf16.msra.mxu0 0
      %690 = vmatprep.subr.bf16.mxu0 0
      %691 = vmatpush1.bf16.msra.mxu0 0
      %692 = vmatprep.subr.bf16.mxu0 0
      %693 = vmatpush1.bf16.msra.mxu0 0
      %694 = vmatprep.subr.bf16.mxu0 0
      %695 = vmatpush1.bf16.msra.mxu0 0
      %696 = vmatprep.subr.bf16.mxu0 0
      %697 = vmatpush1.bf16.msra.mxu0 0
      %698 = vmatprep.mubr.bf16.mxu0 0
      %699 = vmatmul.mubr.bf16.gmra.mrb[0].mxu0 %v612
      %v700 = vpop.f32.mrb[0].mxu0
      %v701 = vadd.f32 %v546, %v700
      %v702 = vpop.f32.mrb[0].mxu0
      %v703 = vpop.f32.mrb[0].mxu0
      %v704 = vpop.f32.mrb[0].mxu0
      %705 = vdwg.mxu0
      %v710 = vunpack.c.l.b16 %v475
      %v711 = vunpack.c.l.b16 %v476
      %v712 = vunpack.c.l.b16 %v477
      %v713 = vunpack.c.l.b16 %v478
      %v714 = vpack.c.b16 %v711, %v710
      %v715 = vpack.c.b16 %v713, %v712
      %718 = vmatprep.subr.bf16.mxu0 0
      %719 = vmatpush1.bf16.msra.mxu0 %v714
      %720 = vmatprep.subr.bf16.mxu0 0
      %721 = vmatpush1.bf16.msra.mxu0 %v715
      %722 = vmatprep.subr.bf16.mxu0 0
      %723 = vmatpush1.bf16.msra.mxu0 0
      %724 = vmatprep.subr.bf16.mxu0 0
      %725 = vmatpush1.bf16.msra.mxu0 0
      %726 = vmatprep.subr.bf16.mxu0 0
      %727 = vmatpush1.bf16.msra.mxu0 0
      %728 = vmatprep.subr.bf16.mxu0 0
      %729 = vmatpush1.bf16.msra.mxu0 0
      %730 = vmatprep.subr.bf16.mxu0 0
      %731 = vmatpush1.bf16.msra.mxu0 0
      %732 = vmatprep.subr.bf16.mxu0 0
      %733 = vmatpush1.bf16.msra.mxu0 0
      %734 = vmatprep.subr.bf16.mxu0 0
      %735 = vmatpush1.bf16.msra.mxu0 0
      %736 = vmatprep.subr.bf16.mxu0 0
      %737 = vmatpush1.bf16.msra.mxu0 0
      %738 = vmatprep.subr.bf16.mxu0 0
      %739 = vmatpush1.bf16.msra.mxu0 0
      %740 = vmatprep.subr.bf16.mxu0 0
      %741 = vmatpush1.bf16.msra.mxu0 0
      %742 = vmatprep.subr.bf16.mxu0 0
      %743 = vmatpush1.bf16.msra.mxu0 0
      %744 = vmatprep.subr.bf16.mxu0 0
      %745 = vmatpush1.bf16.msra.mxu0 0
      %746 = vmatprep.subr.bf16.mxu0 0
      %747 = vmatpush1.bf16.msra.mxu0 0
      %748 = vmatprep.subr.bf16.mxu0 0
      %749 = vmatpush1.bf16.msra.mxu0 0
      %750 = vmatprep.mubr.bf16.mxu0 0
      %751 = vmatmul.mubr.bf16.gmra.mrb[0].mxu0 %v612
      %v752 = vpop.f32.mrb[0].mxu0
      %v753 = vadd.f32 %v550, %v752
      %v754 = vpop.f32.mrb[0].mxu0
      %v755 = vpop.f32.mrb[0].mxu0
      %v756 = vpop.f32.mrb[0].mxu0
      %757 = vdwg.mxu0
      %v762 = vunpack.c.l.b16 %v479
      %v763 = vunpack.c.l.b16 %v480
      %v764 = vunpack.c.l.b16 %v481
      %v765 = vunpack.c.l.b16 %v482
      %v766 = vpack.c.b16 %v763, %v762
      %v767 = vpack.c.b16 %v765, %v764
      %770 = vmatprep.subr.bf16.mxu0 0
      %771 = vmatpush1.bf16.msra.mxu0 %v766
      %772 = vmatprep.subr.bf16.mxu0 0
      %773 = vmatpush1.bf16.msra.mxu0 %v767
      %774 = vmatprep.subr.bf16.mxu0 0
      %775 = vmatpush1.bf16.msra.mxu0 0
      %776 = vmatprep.subr.bf16.mxu0 0
      %777 = vmatpush1.bf16.msra.mxu0 0
      %778 = vmatprep.subr.bf16.mxu0 0
      %779 = vmatpush1.bf16.msra.mxu0 0
      %780 = vmatprep.subr.bf16.mxu0 0
      %781 = vmatpush1.bf16.msra.mxu0 0
      %782 = vmatprep.subr.bf16.mxu0 0
      %783 = vmatpush1.bf16.msra.mxu0 0
      %784 = vmatprep.subr.bf16.mxu0 0
      %785 = vmatpush1.bf16.msra.mxu0 0
      %786 = vmatprep.subr.bf16.mxu0 0
      %787 = vmatpush1.bf16.msra.mxu0 0
      %788 = vmatprep.subr.bf16.mxu0 0
      %789 = vmatpush1.bf16.msra.mxu0 0
      %790 = vmatprep.subr.bf16.mxu0 0
      %791 = vmatpush1.bf16.msra.mxu0 0
      %792 = vmatprep.subr.bf16.mxu0 0
      %793 = vmatpush1.bf16.msra.mxu0 0
      %794 = vmatprep.subr.bf16.mxu0 0
      %795 = vmatpush1.bf16.msra.mxu0 0
      %796 = vmatprep.subr.bf16.mxu0 0
      %797 = vmatpush1.bf16.msra.mxu0 0
      %798 = vmatprep.subr.bf16.mxu0 0
      %799 = vmatpush1.bf16.msra.mxu0 0
      %800 = vmatprep.subr.bf16.mxu0 0
      %801 = vmatpush1.bf16.msra.mxu0 0
      %802 = vmatprep.mubr.bf16.mxu0 0
      %803 = vmatmul.mubr.bf16.gmra.mrb[0].mxu0 %v612
      %v804 = vpop.f32.mrb[0].mxu0
      %v805 = vadd.f32 %v554, %v804
      %v806 = vpop.f32.mrb[0].mxu0
      %v807 = vpop.f32.mrb[0].mxu0
      %v808 = vpop.f32.mrb[0].mxu0
      %809 = vdwg.mxu0
      %v814 = vunpack.c.l.b16 %v483
      %v815 = vunpack.c.l.b16 %v484
      %v816 = vunpack.c.l.b16 %v485
      %v817 = vunpack.c.l.b16 %v486
      %v818 = vpack.c.b16 %v815, %v814
      %v819 = vpack.c.b16 %v817, %v816
      %822 = vmatprep.subr.bf16.mxu0 0
      %823 = vmatpush1.bf16.msra.mxu0 %v818
      %824 = vmatprep.subr.bf16.mxu0 0
      %825 = vmatpush1.bf16.msra.mxu0 %v819
      %826 = vmatprep.subr.bf16.mxu0 0
      %827 = vmatpush1.bf16.msra.mxu0 0
      %828 = vmatprep.subr.bf16.mxu0 0
      %829 = vmatpush1.bf16.msra.mxu0 0
      %830 = vmatprep.subr.bf16.mxu0 0
      %831 = vmatpush1.bf16.msra.mxu0 0
      %832 = vmatprep.subr.bf16.mxu0 0
      %833 = vmatpush1.bf16.msra.mxu0 0
      %834 = vmatprep.subr.bf16.mxu0 0
      %835 = vmatpush1.bf16.msra.mxu0 0
      %836 = vmatprep.subr.bf16.mxu0 0
      %837 = vmatpush1.bf16.msra.mxu0 0
      %838 = vmatprep.subr.bf16.mxu0 0
      %839 = vmatpush1.bf16.msra.mxu0 0
      %840 = vmatprep.subr.bf16.mxu0 0
      %841 = vmatpush1.bf16.msra.mxu0 0
      %842 = vmatprep.subr.bf16.mxu0 0
      %843 = vmatpush1.bf16.msra.mxu0 0
      %844 = vmatprep.subr.bf16.mxu0 0
      %845 = vmatpush1.bf16.msra.mxu0 0
      %846 = vmatprep.subr.bf16.mxu0 0
      %847 = vmatpush1.bf16.msra.mxu0 0
      %848 = vmatprep.subr.bf16.mxu0 0
      %849 = vmatpush1.bf16.msra.mxu0 0
      %850 = vmatprep.subr.bf16.mxu0 0
      %851 = vmatpush1.bf16.msra.mxu0 0
      %852 = vmatprep.subr.bf16.mxu0 0
      %853 = vmatpush1.bf16.msra.mxu0 0
      %854 = vmatprep.mubr.bf16.mxu0 0
      %855 = vmatmul.mubr.bf16.gmra.mrb[0].mxu0 %v612
      %v856 = vpop.f32.mrb[0].mxu0
      %v857 = vadd.f32 %v558, %v856
      %v858 = vpop.f32.mrb[0].mxu0
      %v859 = vpop.f32.mrb[0].mxu0
      %v860 = vpop.f32.mrb[0].mxu0
      %861 = vdwg.mxu0
      %v866 = vunpack.c.l.b16 %v487
      %v867 = vunpack.c.l.b16 %v488
      %v868 = vunpack.c.l.b16 %v489
      %v869 = vunpack.c.l.b16 %v490
      %v870 = vpack.c.b16 %v867, %v866
      %v871 = vpack.c.b16 %v869, %v868
      %874 = vmatprep.subr.bf16.mxu0 0
      %875 = vmatpush1.bf16.msra.mxu0 %v870
      %876 = vmatprep.subr.bf16.mxu0 0
      %877 = vmatpush1.bf16.msra.mxu0 %v871
      %878 = vmatprep.subr.bf16.mxu0 0
      %879 = vmatpush1.bf16.msra.mxu0 0
      %880 = vmatprep.subr.bf16.mxu0 0
      %881 = vmatpush1.bf16.msra.mxu0 0
      %882 = vmatprep.subr.bf16.mxu0 0
      %883 = vmatpush1.bf16.msra.mxu0 0
      %884 = vmatprep.subr.bf16.mxu0 0
      %885 = vmatpush1.bf16.msra.mxu0 0
      %886 = vmatprep.subr.bf16.mxu0 0
      %887 = vmatpush1.bf16.msra.mxu0 0
      %888 = vmatprep.subr.bf16.mxu0 0
      %889 = vmatpush1.bf16.msra.mxu0 0
      %890 = vmatprep.subr.bf16.mxu0 0
      %891 = vmatpush1.bf16.msra.mxu0 0
      %892 = vmatprep.subr.bf16.mxu0 0
      %893 = vmatpush1.bf16.msra.mxu0 0
      %894 = vmatprep.subr.bf16.mxu0 0
      %895 = vmatpush1.bf16.msra.mxu0 0
      %896 = vmatprep.subr.bf16.mxu0 0
      %897 = vmatpush1.bf16.msra.mxu0 0
      %898 = vmatprep.subr.bf16.mxu0 0
      %899 = vmatpush1.bf16.msra.mxu0 0
      %900 = vmatprep.subr.bf16.mxu0 0
      %901 = vmatpush1.bf16.msra.mxu0 0
      %902 = vmatprep.subr.bf16.mxu0 0
      %903 = vmatpush1.bf16.msra.mxu0 0
      %904 = vmatprep.subr.bf16.mxu0 0
      %905 = vmatpush1.bf16.msra.mxu0 0
      %906 = vmatprep.mubr.bf16.mxu0 0
      %907 = vmatmul.mubr.bf16.gmra.mrb[0].mxu0 %v612
      %v908 = vpop.f32.mrb[0].mxu0
      %v909 = vadd.f32 %v562, %v908
      %v910 = vpop.f32.mrb[0].mxu0
      %v911 = vpop.f32.mrb[0].mxu0
      %v912 = vpop.f32.mrb[0].mxu0
      %913 = vdwg.mxu0
      %v918 = vunpack.c.l.b16 %v491
      %v919 = vunpack.c.l.b16 %v492
      %v920 = vunpack.c.l.b16 %v493
      %v921 = vunpack.c.l.b16 %v494
      %v922 = vpack.c.b16 %v919, %v918
      %v923 = vpack.c.b16 %v921, %v920
      %926 = vmatprep.subr.bf16.mxu0 0
      %927 = vmatpush1.bf16.msra.mxu0 %v922
      %928 = vmatprep.subr.bf16.mxu0 0
      %929 = vmatpush1.bf16.msra.mxu0 %v923
      %930 = vmatprep.subr.bf16.mxu0 0
      %931 = vmatpush1.bf16.msra.mxu0 0
      %932 = vmatprep.subr.bf16.mxu0 0
      %933 = vmatpush1.bf16.msra.mxu0 0
      %934 = vmatprep.subr.bf16.mxu0 0
      %935 = vmatpush1.bf16.msra.mxu0 0
      %936 = vmatprep.subr.bf16.mxu0 0
      %937 = vmatpush1.bf16.msra.mxu0 0
      %938 = vmatprep.subr.bf16.mxu0 0
      %939 = vmatpush1.bf16.msra.mxu0 0
      %940 = vmatprep.subr.bf16.mxu0 0
      %941 = vmatpush1.bf16.msra.mxu0 0
      %942 = vmatprep.subr.bf16.mxu0 0
      %943 = vmatpush1.bf16.msra.mxu0 0
      %944 = vmatprep.subr.bf16.mxu0 0
      %945 = vmatpush1.bf16.msra.mxu0 0
      %946 = vmatprep.subr.bf16.mxu0 0
      %947 = vmatpush1.bf16.msra.mxu0 0
      %948 = vmatprep.subr.bf16.mxu0 0
      %949 = vmatpush1.bf16.msra.mxu0 0
      %950 = vmatprep.subr.bf16.mxu0 0
      %951 = vmatpush1.bf16.msra.mxu0 0
      %952 = vmatprep.subr.bf16.mxu0 0
      %953 = vmatpush1.bf16.msra.mxu0 0
      %954 = vmatprep.subr.bf16.mxu0 0
      %955 = vmatpush1.bf16.msra.mxu0 0
      %956 = vmatprep.subr.bf16.mxu0 0
      %957 = vmatpush1.bf16.msra.mxu0 0
      %958 = vmatprep.mubr.bf16.mxu0 0
      %959 = vmatmul.mubr.bf16.gmra.mrb[0].mxu0 %v612
      %v960 = vpop.f32.mrb[0].mxu0
      %v961 = vadd.f32 %v566, %v960
      %v962 = vpop.f32.mrb[0].mxu0
      %v963 = vpop.f32.mrb[0].mxu0
      %v964 = vpop.f32.mrb[0].mxu0
      %965 = vdwg.mxu0
      %v970 = vunpack.c.l.b16 %v495
      %v971 = vunpack.c.l.b16 %v496
      %v972 = vunpack.c.l.b16 %v497
      %v973 = vunpack.c.l.b16 %v498
      %v974 = vpack.c.b16 %v971, %v970
      %v975 = vpack.c.b16 %v973, %v972
      %978 = vmatprep.subr.bf16.mxu0 0
      %979 = vmatpush1.bf16.msra.mxu0 %v974
      %980 = vmatprep.subr.bf16.mxu0 0
      %981 = vmatpush1.bf16.msra.mxu0 %v975
      %982 = vmatprep.subr.bf16.mxu0 0
      %983 = vmatpush1.bf16.msra.mxu0 0
      %984 = vmatprep.subr.bf16.mxu0 0
      %985 = vmatpush1.bf16.msra.mxu0 0
      %986 = vmatprep.subr.bf16.mxu0 0
      %987 = vmatpush1.bf16.msra.mxu0 0
      %988 = vmatprep.subr.bf16.mxu0 0
      %989 = vmatpush1.bf16.msra.mxu0 0
      %990 = vmatprep.subr.bf16.mxu0 0
      %991 = vmatpush1.bf16.msra.mxu0 0
      %992 = vmatprep.subr.bf16.mxu0 0
      %993 = vmatpush1.bf16.msra.mxu0 0
      %994 = vmatprep.subr.bf16.mxu0 0
      %995 = vmatpush1.bf16.msra.mxu0 0
      %996 = vmatprep.subr.bf16.mxu0 0
      %997 = vmatpush1.bf16.msra.mxu0 0
      %998 = vmatprep.subr.bf16.mxu0 0
      %999 = vmatpush1.bf16.msra.mxu0 0
      %1000 = vmatprep.subr.bf16.mxu0 0
      %1001 = vmatpush1.bf16.msra.mxu0 0
      %1002 = vmatprep.subr.bf16.mxu0 0
      %1003 = vmatpush1.bf16.msra.mxu0 0
      %1004 = vmatprep.subr.bf16.mxu0 0
      %1005 = vmatpush1.bf16.msra.mxu0 0
      %1006 = vmatprep.subr.bf16.mxu0 0
      %1007 = vmatpush1.bf16.msra.mxu0 0
      %1008 = vmatprep.subr.bf16.mxu0 0
      %1009 = vmatpush1.bf16.msra.mxu0 0
      %1010 = vmatprep.mubr.bf16.mxu0 0
      %1011 = vmatmul.mubr.bf16.gmra.mrb[0].mxu0 %v612
      %v1012 = vpop.f32.mrb[0].mxu0
      %v1013 = vadd.f32 %v570, %v1012
      %v1014 = vpop.f32.mrb[0].mxu0
      %v1015 = vpop.f32.mrb[0].mxu0
      %v1016 = vpop.f32.mrb[0].mxu0
      %1017 = vdwg.mxu0
      %v1022 = vunpack.c.l.b16 %v499
      %v1023 = vunpack.c.l.b16 %v500
      %v1024 = vunpack.c.l.b16 %v501
      %v1025 = vunpack.c.l.b16 %v502
      %v1026 = vpack.c.b16 %v1023, %v1022
      %v1027 = vpack.c.b16 %v1025, %v1024
      %1030 = vmatprep.subr.bf16.mxu0 0
      %1031 = vmatpush1.bf16.msra.mxu0 %v1026
      %1032 = vmatprep.subr.bf16.mxu0 0
      %1033 = vmatpush1.bf16.msra.mxu0 %v1027
      %1034 = vmatprep.subr.bf16.mxu0 0
      %1035 = vmatpush1.bf16.msra.mxu0 0
      %1036 = vmatprep.subr.bf16.mxu0 0
      %1037 = vmatpush1.bf16.msra.mxu0 0
      %1038 = vmatprep.subr.bf16.mxu0 0
      %1039 = vmatpush1.bf16.msra.mxu0 0
      %1040 = vmatprep.subr.bf16.mxu0 0
      %1041 = vmatpush1.bf16.msra.mxu0 0
      %1042 = vmatprep.subr.bf16.mxu0 0
      %1043 = vmatpush1.bf16.msra.mxu0 0
      %1044 = vmatprep.subr.bf16.mxu0 0
      %1045 = vmatpush1.bf16.msra.mxu0 0
      %1046 = vmatprep.subr.bf16.mxu0 0
      %1047 = vmatpush1.bf16.msra.mxu0 0
      %1048 = vmatprep.subr.bf16.mxu0 0
      %1049 = vmatpush1.bf16.msra.mxu0 0
      %1050 = vmatprep.subr.bf16.mxu0 0
      %1051 = vmatpush1.bf16.msra.mxu0 0
      %1052 = vmatprep.subr.bf16.mxu0 0
      %1053 = vmatpush1.bf16.msra.mxu0 0
      %1054 = vmatprep.subr.bf16.mxu0 0
      %1055 = vmatpush1.bf16.msra.mxu0 0
      %1056 = vmatprep.subr.bf16.mxu0 0
      %1057 = vmatpush1.bf16.msra.mxu0 0
      %1058 = vmatprep.subr.bf16.mxu0 0
      %1059 = vmatpush1.bf16.msra.mxu0 0
      %1060 = vmatprep.subr.bf16.mxu0 0
      %1061 = vmatpush1.bf16.msra.mxu0 0
      %1062 = vmatprep.mubr.bf16.mxu0 0
      %1063 = vmatmul.mubr.bf16.gmra.mrb[0].mxu0 %v612
      %v1064 = vpop.f32.mrb[0].mxu0
      %v1065 = vadd.f32 %v574, %v1064
      %v1066 = vpop.f32.mrb[0].mxu0
      %v1067 = vpop.f32.mrb[0].mxu0
      %v1068 = vpop.f32.mrb[0].mxu0
      %1069 = vdwg.mxu0
      %v1074 = vunpack.c.l.b16 %v503
      %v1075 = vunpack.c.l.b16 %v504
      %v1076 = vunpack.c.l.b16 %v505
      %v1077 = vunpack.c.l.b16 %v506
      %v1078 = vpack.c.b16 %v1075, %v1074
      %v1079 = vpack.c.b16 %v1077, %v1076
      %1082 = vmatprep.subr.bf16.mxu0 0
      %1083 = vmatpush1.bf16.msra.mxu0 %v1078
      %1084 = vmatprep.subr.bf16.mxu0 0
      %1085 = vmatpush1.bf16.msra.mxu0 %v1079
      %1086 = vmatprep.subr.bf16.mxu0 0
      %1087 = vmatpush1.bf16.msra.mxu0 0
      %1088 = vmatprep.subr.bf16.mxu0 0
      %1089 = vmatpush1.bf16.msra.mxu0 0
      %1090 = vmatprep.subr.bf16.mxu0 0
      %1091 = vmatpush1.bf16.msra.mxu0 0
      %1092 = vmatprep.subr.bf16.mxu0 0
      %1093 = vmatpush1.bf16.msra.mxu0 0
      %1094 = vmatprep.subr.bf16.mxu0 0
      %1095 = vmatpush1.bf16.msra.mxu0 0
      %1096 = vmatprep.subr.bf16.mxu0 0
      %1097 = vmatpush1.bf16.msra.mxu0 0
      %1098 = vmatprep.subr.bf16.mxu0 0
      %1099 = vmatpush1.bf16.msra.mxu0 0
      %1100 = vmatprep.subr.bf16.mxu0 0
      %1101 = vmatpush1.bf16.msra.mxu0 0
      %1102 = vmatprep.subr.bf16.mxu0 0
      %1103 = vmatpush1.bf16.msra.mxu0 0
      %1104 = vmatprep.subr.bf16.mxu0 0
      %1105 = vmatpush1.bf16.msra.mxu0 0
      %1106 = vmatprep.subr.bf16.mxu0 0
      %1107 = vmatpush1.bf16.msra.mxu0 0
      %1108 = vmatprep.subr.bf16.mxu0 0
      %1109 = vmatpush1.bf16.msra.mxu0 0
      %1110 = vmatprep.subr.bf16.mxu0 0
      %1111 = vmatpush1.bf16.msra.mxu0 0
      %1112 = vmatprep.subr.bf16.mxu0 0
      %1113 = vmatpush1.bf16.msra.mxu0 0
      %1114 = vmatprep.mubr.bf16.mxu0 0
      %1115 = vmatmul.mubr.bf16.gmra.mrb[0].mxu0 %v612
      %v1116 = vpop.f32.mrb[0].mxu0
      %v1117 = vadd.f32 %v578, %v1116
      %v1118 = vpop.f32.mrb[0].mxu0
      %v1119 = vpop.f32.mrb[0].mxu0
      %v1120 = vpop.f32.mrb[0].mxu0
      %1121 = vdwg.mxu0
      %v1126 = vunpack.c.l.b16 %v507
      %v1127 = vunpack.c.l.b16 %v508
      %v1128 = vunpack.c.l.b16 %v509
      %v1129 = vunpack.c.l.b16 %v510
      %v1130 = vpack.c.b16 %v1127, %v1126
      %v1131 = vpack.c.b16 %v1129, %v1128
      %1134 = vmatprep.subr.bf16.mxu0 0
      %1135 = vmatpush1.bf16.msra.mxu0 %v1130
      %1136 = vmatprep.subr.bf16.mxu0 0
      %1137 = vmatpush1.bf16.msra.mxu0 %v1131
      %1138 = vmatprep.subr.bf16.mxu0 0
      %1139 = vmatpush1.bf16.msra.mxu0 0
      %1140 = vmatprep.subr.bf16.mxu0 0
      %1141 = vmatpush1.bf16.msra.mxu0 0
      %1142 = vmatprep.subr.bf16.mxu0 0
      %1143 = vmatpush1.bf16.msra.mxu0 0
      %1144 = vmatprep.subr.bf16.mxu0 0
      %1145 = vmatpush1.bf16.msra.mxu0 0
      %1146 = vmatprep.subr.bf16.mxu0 0
      %1147 = vmatpush1.bf16.msra.mxu0 0
      %1148 = vmatprep.subr.bf16.mxu0 0
      %1149 = vmatpush1.bf16.msra.mxu0 0
      %1150 = vmatprep.subr.bf16.mxu0 0
      %1151 = vmatpush1.bf16.msra.mxu0 0
      %1152 = vmatprep.subr.bf16.mxu0 0
      %1153 = vmatpush1.bf16.msra.mxu0 0
      %1154 = vmatprep.subr.bf16.mxu0 0
      %1155 = vmatpush1.bf16.msra.mxu0 0
      %1156 = vmatprep.subr.bf16.mxu0 0
      %1157 = vmatpush1.bf16.msra.mxu0 0
      %1158 = vmatprep.subr.bf16.mxu0 0
      %1159 = vmatpush1.bf16.msra.mxu0 0
      %1160 = vmatprep.subr.bf16.mxu0 0
      %1161 = vmatpush1.bf16.msra.mxu0 0
      %1162 = vmatprep.subr.bf16.mxu0 0
      %1163 = vmatpush1.bf16.msra.mxu0 0
      %1164 = vmatprep.subr.bf16.mxu0 0
      %1165 = vmatpush1.bf16.msra.mxu0 0
      %1166 = vmatprep.mubr.bf16.mxu0 0
      %1167 = vmatmul.mubr.bf16.gmra.mrb[0].mxu0 %v612
      %v1168 = vpop.f32.mrb[0].mxu0
      %v1169 = vadd.f32 %v582, %v1168
      %v1170 = vpop.f32.mrb[0].mxu0
      %v1171 = vpop.f32.mrb[0].mxu0
      %v1172 = vpop.f32.mrb[0].mxu0
      %1173 = vdwg.mxu0
      %v1178 = vunpack.c.l.b16 %v511
      %v1179 = vunpack.c.l.b16 %v512
      %v1180 = vunpack.c.l.b16 %v513
      %v1181 = vunpack.c.l.b16 %v514
      %v1182 = vpack.c.b16 %v1179, %v1178
      %v1183 = vpack.c.b16 %v1181, %v1180
      %1186 = vmatprep.subr.bf16.mxu0 0
      %1187 = vmatpush1.bf16.msra.mxu0 %v1182
      %1188 = vmatprep.subr.bf16.mxu0 0
      %1189 = vmatpush1.bf16.msra.mxu0 %v1183
      %1190 = vmatprep.subr.bf16.mxu0 0
      %1191 = vmatpush1.bf16.msra.mxu0 0
      %1192 = vmatprep.subr.bf16.mxu0 0
      %1193 = vmatpush1.bf16.msra.mxu0 0
      %1194 = vmatprep.subr.bf16.mxu0 0
      %1195 = vmatpush1.bf16.msra.mxu0 0
      %1196 = vmatprep.subr.bf16.mxu0 0
      %1197 = vmatpush1.bf16.msra.mxu0 0
      %1198 = vmatprep.subr.bf16.mxu0 0
      %1199 = vmatpush1.bf16.msra.mxu0 0
      %1200 = vmatprep.subr.bf16.mxu0 0
      %1201 = vmatpush1.bf16.msra.mxu0 0
      %1202 = vmatprep.subr.bf16.mxu0 0
      %1203 = vmatpush1.bf16.msra.mxu0 0
      %1204 = vmatprep.subr.bf16.mxu0 0
      %1205 = vmatpush1.bf16.msra.mxu0 0
      %1206 = vmatprep.subr.bf16.mxu0 0
      %1207 = vmatpush1.bf16.msra.mxu0 0
      %1208 = vmatprep.subr.bf16.mxu0 0
      %1209 = vmatpush1.bf16.msra.mxu0 0
      %1210 = vmatprep.subr.bf16.mxu0 0
      %1211 = vmatpush1.bf16.msra.mxu0 0
      %1212 = vmatprep.subr.bf16.mxu0 0
      %1213 = vmatpush1.bf16.msra.mxu0 0
      %1214 = vmatprep.subr.bf16.mxu0 0
      %1215 = vmatpush1.bf16.msra.mxu0 0
      %1216 = vmatprep.subr.bf16.mxu0 0
      %1217 = vmatpush1.bf16.msra.mxu0 0
      %1218 = vmatprep.mubr.bf16.mxu0 0
      %1219 = vmatmul.mubr.bf16.gmra.mrb[0].mxu0 %v612
      %v1220 = vpop.f32.mrb[0].mxu0
      %v1221 = vadd.f32 %v586, %v1220
      %v1222 = vpop.f32.mrb[0].mxu0
      %v1223 = vpop.f32.mrb[0].mxu0
      %v1224 = vpop.f32.mrb[0].mxu0
      %1225 = vdwg.mxu0
      %v1226 = vpack.c.bf16 %v649, %v649
      %v1227 = vpack.c.bf16 %v701, %v701
      %v1228 = vpack.c.bf16 %v753, %v753
      %v1229 = vpack.c.bf16 %v805, %v805
      %v1230 = vpack.c.bf16 %v857, %v857
      %v1231 = vpack.c.bf16 %v909, %v909
      %v1232 = vpack.c.bf16 %v961, %v961
      %v1233 = vpack.c.bf16 %v1013, %v1013
      %v1234 = vpack.c.bf16 %v1065, %v1065
      %v1235 = vpack.c.bf16 %v1117, %v1117
      %v1236 = vpack.c.bf16 %v1169, %v1169
      %v1237 = vpack.c.bf16 %v1221, %v1221
      %vm1238 = vcmask 64512
      %v1240 = vsel %vm1238, %v1226, 0
      %v1243 = vsel %vm1238, %v1230, 0
      %1245 = vmatprep.subr.bf16.mxu0 0
      %1246 = vmatpush1.bf16.xpose.msra.mxu0 %v1243
      %1247 = vmatprep.subr.bf16.mxu0 0
      %1248 = vmatpush1.bf16.xpose.msra.mxu0 0
      %1249 = vmatprep.subr.bf16.mxu0 0
      %1250 = vmatpush1.bf16.xpose.msra.mxu0 0
      %1251 = vmatprep.subr.bf16.mxu0 0
      %1252 = vmatpush1.bf16.xpose.msra.mxu0 0
      %1253 = vmatprep.subr.bf16.mxu0 0
      %1254 = vmatpush1.bf16.xpose.msra.mxu0 0
      %1255 = vmatprep.subr.bf16.mxu0 0
      %1256 = vmatpush1.bf16.xpose.msra.mxu0 0
      %1257 = vmatprep.subr.bf16.mxu0 0
      %1258 = vmatpush1.bf16.xpose.msra.mxu0 0
      %1259 = vmatprep.subr.bf16.mxu0 0
      %1260 = vmatpush1.bf16.xpose.msra.mxu0 0
      %1261 = vmatprep.subr.bf16.mxu0 0
      %1262 = vmatpush1.bf16.xpose.msra.mxu0 0
      %1263 = vmatprep.subr.bf16.mxu0 0
      %1264 = vmatpush1.bf16.xpose.msra.mxu0 0
      %1265 = vmatprep.subr.bf16.mxu0 0
      %1266 = vmatpush1.bf16.xpose.msra.mxu0 0
      %1267 = vmatprep.subr.bf16.mxu0 0
      %1268 = vmatpush1.bf16.xpose.msra.mxu0 0
      %1269 = vmatprep.subr.bf16.mxu0 0
      %1270 = vmatpush1.bf16.xpose.msra.mxu0 0
      %1271 = vmatprep.subr.bf16.mxu0 0
      %1272 = vmatpush1.bf16.xpose.msra.mxu0 0
      %1273 = vmatprep.subr.bf16.mxu0 0
      %1274 = vmatpush1.bf16.xpose.msra.mxu0 0
      %1275 = vmatprep.subr.bf16.mxu0 0
      %1276 = vmatpush1.bf16.xpose.msra.mxu0 0
      %1277 = vmatprep.mubr.bf16.mxu0 0
      %1278 = vmatmul.mubr.bf16.gmra.mrb[0].mxu0 %v1240
      %v1279 = vpop.f32.mrb[0].mxu0
      %v1280 = vadd.f32 0.0, %v1279
      %v1281 = vpop.f32.mrb[0].mxu0
      %v1282 = vpop.f32.mrb[0].mxu0
      %v1283 = vpop.f32.mrb[0].mxu0
      %1284 = vdwg.mxu0
      %v1286 = vsel %vm1238, %v1227, 0
      %v1289 = vsel %vm1238, %v1231, 0
      %1291 = vmatprep.subr.bf16.mxu0 0
      %1292 = vmatpush1.bf16.xpose.msra.mxu0 %v1289
      %1293 = vmatprep.subr.bf16.mxu0 0
      %1294 = vmatpush1.bf16.xpose.msra.mxu0 0
      %1295 = vmatprep.subr.bf16.mxu0 0
      %1296 = vmatpush1.bf16.xpose.msra.mxu0 0
      %1297 = vmatprep.subr.bf16.mxu0 0
      %1298 = vmatpush1.bf16.xpose.msra.mxu0 0
      %1299 = vmatprep.subr.bf16.mxu0 0
      %1300 = vmatpush1.bf16.xpose.msra.mxu0 0
      %1301 = vmatprep.subr.bf16.mxu0 0
      %1302 = vmatpush1.bf16.xpose.msra.mxu0 0
      %1303 = vmatprep.subr.bf16.mxu0 0
      %1304 = vmatpush1.bf16.xpose.msra.mxu0 0
      %1305 = vmatprep.subr.bf16.mxu0 0
      %1306 = vmatpush1.bf16.xpose.msra.mxu0 0
      %1307 = vmatprep.subr.bf16.mxu0 0
      %1308 = vmatpush1.bf16.xpose.msra.mxu0 0
      %1309 = vmatprep.subr.bf16.mxu0 0
      %1310 = vmatpush1.bf16.xpose.msra.mxu0 0
      %1311 = vmatprep.subr.bf16.mxu0 0
      %1312 = vmatpush1.bf16.xpose.msra.mxu0 0
      %1313 = vmatprep.subr.bf16.mxu0 0
      %1314 = vmatpush1.bf16.xpose.msra.mxu0 0
      %1315 = vmatprep.subr.bf16.mxu0 0
      %1316 = vmatpush1.bf16.xpose.msra.mxu0 0
      %1317 = vmatprep.subr.bf16.mxu0 0
      %1318 = vmatpush1.bf16.xpose.msra.mxu0 0
      %1319 = vmatprep.subr.bf16.mxu0 0
      %1320 = vmatpush1.bf16.xpose.msra.mxu0 0
      %1321 = vmatprep.subr.bf16.mxu0 0
      %1322 = vmatpush1.bf16.xpose.msra.mxu0 0
      %1323 = vmatprep.mubr.bf16.mxu0 0
      %1324 = vmatmul.mubr.bf16.gmra.mrb[0].mxu0 %v1286
      %v1325 = vpop.f32.mrb[0].mxu0
      %v1326 = vadd.f32 0.0, %v1325
      %v1327 = vpop.f32.mrb[0].mxu0
      %v1328 = vpop.f32.mrb[0].mxu0
      %v1329 = vpop.f32.mrb[0].mxu0
      %1330 = vdwg.mxu0
      %v1332 = vsel %vm1238, %v1228, 0
      %v1335 = vsel %vm1238, %v1232, 0
      %1337 = vmatprep.subr.bf16.mxu0 0
      %1338 = vmatpush1.bf16.xpose.msra.mxu0 %v1335
      %1339 = vmatprep.subr.bf16.mxu0 0
      %1340 = vmatpush1.bf16.xpose.msra.mxu0 0
      %1341 = vmatprep.subr.bf16.mxu0 0
      %1342 = vmatpush1.bf16.xpose.msra.mxu0 0
      %1343 = vmatprep.subr.bf16.mxu0 0
      %1344 = vmatpush1.bf16.xpose.msra.mxu0 0
      %1345 = vmatprep.subr.bf16.mxu0 0
      %1346 = vmatpush1.bf16.xpose.msra.mxu0 0
      %1347 = vmatprep.subr.bf16.mxu0 0
      %1348 = vmatpush1.bf16.xpose.msra.mxu0 0
      %1349 = vmatprep.subr.bf16.mxu0 0
      %1350 = vmatpush1.bf16.xpose.msra.mxu0 0
      %1351 = vmatprep.subr.bf16.mxu0 0
      %1352 = vmatpush1.bf16.xpose.msra.mxu0 0
      %1353 = vmatprep.subr.bf16.mxu0 0
      %1354 = vmatpush1.bf16.xpose.msra.mxu0 0
      %1355 = vmatprep.subr.bf16.mxu0 0
      %1356 = vmatpush1.bf16.xpose.msra.mxu0 0
      %1357 = vmatprep.subr.bf16.mxu0 0
      %1358 = vmatpush1.bf16.xpose.msra.mxu0 0
      %1359 = vmatprep.subr.bf16.mxu0 0
      %1360 = vmatpush1.bf16.xpose.msra.mxu0 0
      %1361 = vmatprep.subr.bf16.mxu0 0
      %1362 = vmatpush1.bf16.xpose.msra.mxu0 0
      %1363 = vmatprep.subr.bf16.mxu0 0
      %1364 = vmatpush1.bf16.xpose.msra.mxu0 0
      %1365 = vmatprep.subr.bf16.mxu0 0
      %1366 = vmatpush1.bf16.xpose.msra.mxu0 0
      %1367 = vmatprep.subr.bf16.mxu0 0
      %1368 = vmatpush1.bf16.xpose.msra.mxu0 0
      %1369 = vmatprep.mubr.bf16.mxu0 0
      %1370 = vmatmul.mubr.bf16.gmra.mrb[0].mxu0 %v1332
      %v1371 = vpop.f32.mrb[0].mxu0
      %v1372 = vadd.f32 0.0, %v1371
      %v1373 = vpop.f32.mrb[0].mxu0
      %v1374 = vpop.f32.mrb[0].mxu0
      %v1375 = vpop.f32.mrb[0].mxu0
      %1376 = vdwg.mxu0
      %v1378 = vsel %vm1238, %v1229, 0
      %v1381 = vsel %vm1238, %v1233, 0
      %1383 = vmatprep.subr.bf16.mxu0 0
      %1384 = vmatpush1.bf16.xpose.msra.mxu0 %v1381
      %1385 = vmatprep.subr.bf16.mxu0 0
      %1386 = vmatpush1.bf16.xpose.msra.mxu0 0
      %1387 = vmatprep.subr.bf16.mxu0 0
      %1388 = vmatpush1.bf16.xpose.msra.mxu0 0
      %1389 = vmatprep.subr.bf16.mxu0 0
      %1390 = vmatpush1.bf16.xpose.msra.mxu0 0
      %1391 = vmatprep.subr.bf16.mxu0 0
      %1392 = vmatpush1.bf16.xpose.msra.mxu0 0
      %1393 = vmatprep.subr.bf16.mxu0 0
      %1394 = vmatpush1.bf16.xpose.msra.mxu0 0
      %1395 = vmatprep.subr.bf16.mxu0 0
      %1396 = vmatpush1.bf16.xpose.msra.mxu0 0
      %1397 = vmatprep.subr.bf16.mxu0 0
      %1398 = vmatpush1.bf16.xpose.msra.mxu0 0
      %1399 = vmatprep.subr.bf16.mxu0 0
      %1400 = vmatpush1.bf16.xpose.msra.mxu0 0
      %1401 = vmatprep.subr.bf16.mxu0 0
      %1402 = vmatpush1.bf16.xpose.msra.mxu0 0
      %1403 = vmatprep.subr.bf16.mxu0 0
      %1404 = vmatpush1.bf16.xpose.msra.mxu0 0
      %1405 = vmatprep.subr.bf16.mxu0 0
      %1406 = vmatpush1.bf16.xpose.msra.mxu0 0
      %1407 = vmatprep.subr.bf16.mxu0 0
      %1408 = vmatpush1.bf16.xpose.msra.mxu0 0
      %1409 = vmatprep.subr.bf16.mxu0 0
      %1410 = vmatpush1.bf16.xpose.msra.mxu0 0
      %1411 = vmatprep.subr.bf16.mxu0 0
      %1412 = vmatpush1.bf16.xpose.msra.mxu0 0
      %1413 = vmatprep.subr.bf16.mxu0 0
      %1414 = vmatpush1.bf16.xpose.msra.mxu0 0
      %1415 = vmatprep.mubr.bf16.mxu0 0
      %1416 = vmatmul.mubr.bf16.gmra.mrb[0].mxu0 %v1378
      %v1417 = vpop.f32.mrb[0].mxu0
      %v1418 = vadd.f32 0.0, %v1417
      %v1419 = vpop.f32.mrb[0].mxu0
      %v1420 = vpop.f32.mrb[0].mxu0
      %v1421 = vpop.f32.mrb[0].mxu0
      %1422 = vdwg.mxu0
      %v1423 = vmul.f32 %v1280, 0.35355338
      %v1424 = vmul.f32 %v1326, 0.35355338
      %v1425 = vmul.f32 %v1372, 0.35355338
      %v1426 = vmul.f32 %v1418, 0.35355338
      %v1428 = vlaneseq
      %v1429 = vshrl.u32 %v1428, 7
      %v1430 = vsub.s32 0, %v1429
      %v1431 = vrot.slane %v464, %v1430
      %v1433 = vadd.f32 %v1423, %v1431
      %v1434 = vadd.f32 %v1424, %v1431
      %v1435 = vadd.f32 %v1425, %v1431
      %v1436 = vadd.f32 %v1426, %v1431
      %v1437 = vld [vmem:[%s8] sm:$0x3]
      %v1438 = vld [vmem:[%s8 + $0x2] sm:$0x3]
      %v1439 = vld [vmem:[%s8 + $0x4] sm:$0x3]
      %v1440 = vld [vmem:[%s8 + $0x6] sm:$0x3]
      %v1442 = vsel %vm1238, %v1437, 0
      %1444 = vmatprep.subr.bf16.mxu0 0
      %1445 = vmatpush1.bf16.xpose.msra.mxu0 %v1442
      %1446 = vmatprep.subr.bf16.mxu0 0
      %1447 = vmatpush1.bf16.xpose.msra.mxu0 0
      %1448 = vmatprep.subr.bf16.mxu0 0
      %1449 = vmatpush1.bf16.xpose.msra.mxu0 0
      %1450 = vmatprep.subr.bf16.mxu0 0
      %1451 = vmatpush1.bf16.xpose.msra.mxu0 0
      %1452 = vmatprep.subr.bf16.mxu0 0
      %1453 = vmatpush1.bf16.xpose.msra.mxu0 0
      %1454 = vmatprep.subr.bf16.mxu0 0
      %1455 = vmatpush1.bf16.xpose.msra.mxu0 0
      %1456 = vmatprep.subr.bf16.mxu0 0
      %1457 = vmatpush1.bf16.xpose.msra.mxu0 0
      %1458 = vmatprep.subr.bf16.mxu0 0
      %1459 = vmatpush1.bf16.xpose.msra.mxu0 0
      %1460 = vmatprep.subr.bf16.mxu0 0
      %1461 = vmatpush1.bf16.xpose.msra.mxu0 0
      %1462 = vmatprep.subr.bf16.mxu0 0
      %1463 = vmatpush1.bf16.xpose.msra.mxu0 0
      %1464 = vmatprep.subr.bf16.mxu0 0
      %1465 = vmatpush1.bf16.xpose.msra.mxu0 0
      %1466 = vmatprep.subr.bf16.mxu0 0
      %1467 = vmatpush1.bf16.xpose.msra.mxu0 0
      %1468 = vmatprep.subr.bf16.mxu0 0
      %1469 = vmatpush1.bf16.xpose.msra.mxu0 0
      %1470 = vmatprep.subr.bf16.mxu0 0
      %1471 = vmatpush1.bf16.xpose.msra.mxu0 0
      %1472 = vmatprep.subr.bf16.mxu0 0
      %1473 = vmatpush1.bf16.xpose.msra.mxu0 0
      %1474 = vmatprep.subr.bf16.mxu0 0
      %1475 = vmatpush1.bf16.xpose.msra.mxu0 0
      %1476 = vmatprep.mubr.bf16.mxu0 0
      %1477 = vmatmul.mubr.bf16.gmra.mrb[0].mxu0 %v1240
      %v1478 = vpop.f32.mrb[0].mxu0
      %v1479 = vadd.f32 0.0, %v1478
      %v1480 = vpop.f32.mrb[0].mxu0
      %v1481 = vpop.f32.mrb[0].mxu0
      %v1482 = vpop.f32.mrb[0].mxu0
      %1483 = vdwg.mxu0
      %v1485 = vsel %vm1238, %v1438, 0
      %1487 = vmatprep.subr.bf16.mxu0 0
      %1488 = vmatpush1.bf16.xpose.msra.mxu0 %v1485
      %1489 = vmatprep.subr.bf16.mxu0 0
      %1490 = vmatpush1.bf16.xpose.msra.mxu0 0
      %1491 = vmatprep.subr.bf16.mxu0 0
      %1492 = vmatpush1.bf16.xpose.msra.mxu0 0
      %1493 = vmatprep.subr.bf16.mxu0 0
      %1494 = vmatpush1.bf16.xpose.msra.mxu0 0
      %1495 = vmatprep.subr.bf16.mxu0 0
      %1496 = vmatpush1.bf16.xpose.msra.mxu0 0
      %1497 = vmatprep.subr.bf16.mxu0 0
      %1498 = vmatpush1.bf16.xpose.msra.mxu0 0
      %1499 = vmatprep.subr.bf16.mxu0 0
      %1500 = vmatpush1.bf16.xpose.msra.mxu0 0
      %1501 = vmatprep.subr.bf16.mxu0 0
      %1502 = vmatpush1.bf16.xpose.msra.mxu0 0
      %1503 = vmatprep.subr.bf16.mxu0 0
      %1504 = vmatpush1.bf16.xpose.msra.mxu0 0
      %1505 = vmatprep.subr.bf16.mxu0 0
      %1506 = vmatpush1.bf16.xpose.msra.mxu0 0
      %1507 = vmatprep.subr.bf16.mxu0 0
      %1508 = vmatpush1.bf16.xpose.msra.mxu0 0
      %1509 = vmatprep.subr.bf16.mxu0 0
      %1510 = vmatpush1.bf16.xpose.msra.mxu0 0
      %1511 = vmatprep.subr.bf16.mxu0 0
      %1512 = vmatpush1.bf16.xpose.msra.mxu0 0
      %1513 = vmatprep.subr.bf16.mxu0 0
      %1514 = vmatpush1.bf16.xpose.msra.mxu0 0
      %1515 = vmatprep.subr.bf16.mxu0 0
      %1516 = vmatpush1.bf16.xpose.msra.mxu0 0
      %1517 = vmatprep.subr.bf16.mxu0 0
      %1518 = vmatpush1.bf16.xpose.msra.mxu0 0
      %1519 = vmatprep.mubr.bf16.mxu0 0
      %1520 = vmatmul.mubr.bf16.gmra.mrb[0].mxu0 %v1286
      %v1521 = vpop.f32.mrb[0].mxu0
      %v1522 = vadd.f32 0.0, %v1521
      %v1523 = vpop.f32.mrb[0].mxu0
      %v1524 = vpop.f32.mrb[0].mxu0
      %v1525 = vpop.f32.mrb[0].mxu0
      %1526 = vdwg.mxu0
      %v1528 = vsel %vm1238, %v1439, 0
      %1530 = vmatprep.subr.bf16.mxu0 0
      %1531 = vmatpush1.bf16.xpose.msra.mxu0 %v1528
      %1532 = vmatprep.subr.bf16.mxu0 0
      %1533 = vmatpush1.bf16.xpose.msra.mxu0 0
      %1534 = vmatprep.subr.bf16.mxu0 0
      %1535 = vmatpush1.bf16.xpose.msra.mxu0 0
      %1536 = vmatprep.subr.bf16.mxu0 0
      %1537 = vmatpush1.bf16.xpose.msra.mxu0 0
      %1538 = vmatprep.subr.bf16.mxu0 0
      %1539 = vmatpush1.bf16.xpose.msra.mxu0 0
      %1540 = vmatprep.subr.bf16.mxu0 0
      %1541 = vmatpush1.bf16.xpose.msra.mxu0 0
      %1542 = vmatprep.subr.bf16.mxu0 0
      %1543 = vmatpush1.bf16.xpose.msra.mxu0 0
      %1544 = vmatprep.subr.bf16.mxu0 0
      %1545 = vmatpush1.bf16.xpose.msra.mxu0 0
      %1546 = vmatprep.subr.bf16.mxu0 0
      %1547 = vmatpush1.bf16.xpose.msra.mxu0 0
      %1548 = vmatprep.subr.bf16.mxu0 0
      %1549 = vmatpush1.bf16.xpose.msra.mxu0 0
      %1550 = vmatprep.subr.bf16.mxu0 0
      %1551 = vmatpush1.bf16.xpose.msra.mxu0 0
      %1552 = vmatprep.subr.bf16.mxu0 0
      %1553 = vmatpush1.bf16.xpose.msra.mxu0 0
      %1554 = vmatprep.subr.bf16.mxu0 0
      %1555 = vmatpush1.bf16.xpose.msra.mxu0 0
      %1556 = vmatprep.subr.bf16.mxu0 0
      %1557 = vmatpush1.bf16.xpose.msra.mxu0 0
      %1558 = vmatprep.subr.bf16.mxu0 0
      %1559 = vmatpush1.bf16.xpose.msra.mxu0 0
      %1560 = vmatprep.subr.bf16.mxu0 0
      %1561 = vmatpush1.bf16.xpose.msra.mxu0 0
      %1562 = vmatprep.mubr.bf16.mxu0 0
      %1563 = vmatmul.mubr.bf16.gmra.mrb[0].mxu0 %v1332
      %v1564 = vpop.f32.mrb[0].mxu0
      %v1565 = vadd.f32 0.0, %v1564
      %v1566 = vpop.f32.mrb[0].mxu0
      %v1567 = vpop.f32.mrb[0].mxu0
      %v1568 = vpop.f32.mrb[0].mxu0
      %1569 = vdwg.mxu0
      %v1571 = vsel %vm1238, %v1440, 0
      %1573 = vmatprep.subr.bf16.mxu0 0
      %1574 = vmatpush1.bf16.xpose.msra.mxu0 %v1571
      %1575 = vmatprep.subr.bf16.mxu0 0
      %1576 = vmatpush1.bf16.xpose.msra.mxu0 0
      %1577 = vmatprep.subr.bf16.mxu0 0
      %1578 = vmatpush1.bf16.xpose.msra.mxu0 0
      %1579 = vmatprep.subr.bf16.mxu0 0
      %1580 = vmatpush1.bf16.xpose.msra.mxu0 0
      %1581 = vmatprep.subr.bf16.mxu0 0
      %1582 = vmatpush1.bf16.xpose.msra.mxu0 0
      %1583 = vmatprep.subr.bf16.mxu0 0
      %1584 = vmatpush1.bf16.xpose.msra.mxu0 0
      %1585 = vmatprep.subr.bf16.mxu0 0
      %1586 = vmatpush1.bf16.xpose.msra.mxu0 0
      %1587 = vmatprep.subr.bf16.mxu0 0
      %1588 = vmatpush1.bf16.xpose.msra.mxu0 0
      %1589 = vmatprep.subr.bf16.mxu0 0
      %1590 = vmatpush1.bf16.xpose.msra.mxu0 0
      %1591 = vmatprep.subr.bf16.mxu0 0
      %1592 = vmatpush1.bf16.xpose.msra.mxu0 0
      %1593 = vmatprep.subr.bf16.mxu0 0
      %1594 = vmatpush1.bf16.xpose.msra.mxu0 0
      %1595 = vmatprep.subr.bf16.mxu0 0
      %1596 = vmatpush1.bf16.xpose.msra.mxu0 0
      %1597 = vmatprep.subr.bf16.mxu0 0
      %1598 = vmatpush1.bf16.xpose.msra.mxu0 0
      %1599 = vmatprep.subr.bf16.mxu0 0
      %1600 = vmatpush1.bf16.xpose.msra.mxu0 0
      %1601 = vmatprep.subr.bf16.mxu0 0
      %1602 = vmatpush1.bf16.xpose.msra.mxu0 0
      %1603 = vmatprep.subr.bf16.mxu0 0
      %1604 = vmatpush1.bf16.xpose.msra.mxu0 0
      %1605 = vmatprep.mubr.bf16.mxu0 0
      %1606 = vmatmul.mubr.bf16.gmra.mrb[0].mxu0 %v1378
      %v1607 = vpop.f32.mrb[0].mxu0
      %v1608 = vadd.f32 0.0, %v1607
      %v1609 = vpop.f32.mrb[0].mxu0
      %v1610 = vpop.f32.mrb[0].mxu0
      %v1611 = vpop.f32.mrb[0].mxu0
      %1612 = vdwg.mxu0
      %v1613 = vmul.f32 %v1479, 0.35355338
      %v1614 = vmul.f32 %v1522, 0.35355338
      %v1615 = vmul.f32 %v1565, 0.35355338
      %v1616 = vmul.f32 %v1608, 0.35355338
      %v1617 = vsel %vm1238, %v1433, -inf
      %1618 = vmax.xlane.f32.xlu0 %v1617
      %v1619 = vpop.xlane.xlu0 %1618
      %v1620 = vsel %vm1238, %v1434, -inf
      %1621 = vmax.xlane.f32.xlu0 %v1620
      %v1622 = vpop.xlane.xlu0 %1621
      %v1623 = vsel %vm1238, %v1435, -inf
      %1624 = vmax.xlane.f32.xlu0 %v1623
      %v1625 = vpop.xlane.xlu0 %1624
      %v1626 = vsel %vm1238, %v1436, -inf
      %1627 = vmax.xlane.f32.xlu0 %v1626
      %v1628 = vpop.xlane.xlu0 %1627
      %vm1629 = vcmask 31744
      %v1630 = vsel %vm1629, %v1613, -inf
      %1631 = vmax.xlane.f32.xlu0 %v1630
      %v1632 = vpop.xlane.xlu0 %1631
      %v1633 = vsel %vm1629, %v1614, -inf
      %1634 = vmax.xlane.f32.xlu0 %v1633
      %v1635 = vpop.xlane.xlu0 %1634
      %v1636 = vsel %vm1629, %v1615, -inf
      %1637 = vmax.xlane.f32.xlu0 %v1636
      %v1638 = vpop.xlane.xlu0 %1637
      %v1639 = vsel %vm1629, %v1616, -inf
      %1640 = vmax.xlane.f32.xlu0 %v1639
      %v1641 = vpop.xlane.xlu0 %1640
      %v1642 = vmax.f32 %v1619, %v1632
      %v1643 = vmax.f32 %v1622, %v1635
      %v1644 = vmax.f32 %v1625, %v1638
      %v1645 = vmax.f32 %v1628, %v1641
      %v1646 = vsub.f32 %v1433, %v1642
      %v1647 = vsub.f32 %v1434, %v1643
      %v1648 = vsub.f32 %v1435, %v1644
      %v1649 = vsub.f32 %v1436, %v1645
      %v1650 = vmul.f32 %v1646, 1.442695
      %v1651 = vpow.pop %v1650
      %v1652 = vmul.f32 %v1647, 1.442695
      %v1653 = vpow.pop %v1652
      %v1654 = vmul.f32 %v1648, 1.442695
      %v1655 = vpow.pop %v1654
      %v1656 = vmul.f32 %v1649, 1.442695
      %v1657 = vpow.pop %v1656
      %v1658 = vsub.f32 %v1613, %v1642
      %v1659 = vsub.f32 %v1614, %v1643
      %v1660 = vsub.f32 %v1615, %v1644
      %v1661 = vsub.f32 %v1616, %v1645
      %v1662 = vmul.f32 %v1658, 1.442695
      %v1663 = vpow.pop %v1662
      %v1664 = vmul.f32 %v1659, 1.442695
      %v1665 = vpow.pop %v1664
      %v1666 = vmul.f32 %v1660, 1.442695
      %v1667 = vpow.pop %v1666
      %v1668 = vmul.f32 %v1661, 1.442695
      %v1669 = vpow.pop %v1668
      %v1670 = vsel %vm1238, %v1651, 0.0
      %1671 = vadd.xlane.f32.xlu0 %v1670
      %v1672 = vpop.xlane.xlu0 %1671
      %v1673 = vsel %vm1238, %v1653, 0.0
      %1674 = vadd.xlane.f32.xlu0 %v1673
      %v1675 = vpop.xlane.xlu0 %1674
      %v1676 = vsel %vm1238, %v1655, 0.0
      %1677 = vadd.xlane.f32.xlu0 %v1676
      %v1678 = vpop.xlane.xlu0 %1677
      %v1679 = vsel %vm1238, %v1657, 0.0
      %1680 = vadd.xlane.f32.xlu0 %v1679
      %v1681 = vpop.xlane.xlu0 %1680
      %v1682 = vsel %vm1629, %v1663, 0.0
      %1683 = vadd.xlane.f32.xlu0 %v1682
      %v1684 = vpop.xlane.xlu0 %1683
      %v1685 = vsel %vm1629, %v1665, 0.0
      %1686 = vadd.xlane.f32.xlu0 %v1685
      %v1687 = vpop.xlane.xlu0 %1686
      %v1688 = vsel %vm1629, %v1667, 0.0
      %1689 = vadd.xlane.f32.xlu0 %v1688
      %v1690 = vpop.xlane.xlu0 %1689
      %v1691 = vsel %vm1629, %v1669, 0.0
      %1692 = vadd.xlane.f32.xlu0 %v1691
      %v1693 = vpop.xlane.xlu0 %1692
      %v1694 = vadd.f32 %v1672, %v1684
      %v1695 = vadd.f32 %v1675, %v1687
      %v1696 = vadd.f32 %v1678, %v1690
      %v1697 = vadd.f32 %v1681, %v1693
      %v1698 = vrcp.pop %v1694
      %v1699 = vrcp.pop %v1695
      %v1700 = vrcp.pop %v1696
      %v1701 = vrcp.pop %v1697
      %v1702 = vpack.c.bf16 %v1651, %v1651
      %v1703 = vpack.c.bf16 %v1653, %v1653
      %v1704 = vpack.c.bf16 %v1655, %v1655
      %v1705 = vpack.c.bf16 %v1657, %v1657
      %v1706 = vpack.c.bf16 %v1663, %v1663
      %v1707 = vpack.c.bf16 %v1665, %v1665
      %v1708 = vpack.c.bf16 %v1667, %v1667
      %v1709 = vpack.c.bf16 %v1669, %v1669
      %v1710 = vld [vmem:[%s9] sm:$0x3]
      %v1711 = vld [vmem:[%s9 + $0x2] sm:$0x3]
      %v1712 = vld [vmem:[%s9 + $0x4] sm:$0x3]
      %v1713 = vld [vmem:[%s9 + $0x6] sm:$0x3]
      %v1715 = vsel %vm1629, %v1706, 0
      %vm1717 = vcmask 1041408
      %v1719 = vsel %vm1717, %v1710, 0
      %1721 = vmatprep.subr.bf16.mxu0 0
      %1722 = vmatpush1.bf16.msra.mxu0 %v1719
      %1723 = vmatprep.subr.bf16.mxu0 0
      %1724 = vmatpush1.bf16.msra.mxu0 0
      %1725 = vmatprep.subr.bf16.mxu0 0
      %1726 = vmatpush1.bf16.msra.mxu0 0
      %1727 = vmatprep.subr.bf16.mxu0 0
      %1728 = vmatpush1.bf16.msra.mxu0 0
      %1729 = vmatprep.subr.bf16.mxu0 0
      %1730 = vmatpush1.bf16.msra.mxu0 0
      %1731 = vmatprep.subr.bf16.mxu0 0
      %1732 = vmatpush1.bf16.msra.mxu0 0
      %1733 = vmatprep.subr.bf16.mxu0 0
      %1734 = vmatpush1.bf16.msra.mxu0 0
      %1735 = vmatprep.subr.bf16.mxu0 0
      %1736 = vmatpush1.bf16.msra.mxu0 0
      %1737 = vmatprep.subr.bf16.mxu0 0
      %1738 = vmatpush1.bf16.msra.mxu0 0
      %1739 = vmatprep.subr.bf16.mxu0 0
      %1740 = vmatpush1.bf16.msra.mxu0 0
      %1741 = vmatprep.subr.bf16.mxu0 0
      %1742 = vmatpush1.bf16.msra.mxu0 0
      %1743 = vmatprep.subr.bf16.mxu0 0
      %1744 = vmatpush1.bf16.msra.mxu0 0
      %1745 = vmatprep.subr.bf16.mxu0 0
      %1746 = vmatpush1.bf16.msra.mxu0 0
      %1747 = vmatprep.subr.bf16.mxu0 0
      %1748 = vmatpush1.bf16.msra.mxu0 0
      %1749 = vmatprep.subr.bf16.mxu0 0
      %1750 = vmatpush1.bf16.msra.mxu0 0
      %1751 = vmatprep.subr.bf16.mxu0 0
      %1752 = vmatpush1.bf16.msra.mxu0 0
      %1753 = vmatprep.mubr.bf16.mxu0 0
      %1754 = vmatmul.mubr.bf16.gmra.mrb[0].mxu0 %v1715
      %v1755 = vpop.f32.mrb[0].mxu0
      %v1756 = vadd.f32 0.0, %v1755
      %v1757 = vpop.f32.mrb[0].mxu0
      %v1758 = vpop.f32.mrb[0].mxu0
      %v1759 = vpop.f32.mrb[0].mxu0
      %1760 = vdwg.mxu0
      %v1762 = vsel %vm1629, %v1707, 0
      %v1765 = vsel %vm1717, %v1711, 0
      %1767 = vmatprep.subr.bf16.mxu0 0
      %1768 = vmatpush1.bf16.msra.mxu0 %v1765
      %1769 = vmatprep.subr.bf16.mxu0 0
      %1770 = vmatpush1.bf16.msra.mxu0 0
      %1771 = vmatprep.subr.bf16.mxu0 0
      %1772 = vmatpush1.bf16.msra.mxu0 0
      %1773 = vmatprep.subr.bf16.mxu0 0
      %1774 = vmatpush1.bf16.msra.mxu0 0
      %1775 = vmatprep.subr.bf16.mxu0 0
      %1776 = vmatpush1.bf16.msra.mxu0 0
      %1777 = vmatprep.subr.bf16.mxu0 0
      %1778 = vmatpush1.bf16.msra.mxu0 0
      %1779 = vmatprep.subr.bf16.mxu0 0
      %1780 = vmatpush1.bf16.msra.mxu0 0
      %1781 = vmatprep.subr.bf16.mxu0 0
      %1782 = vmatpush1.bf16.msra.mxu0 0
      %1783 = vmatprep.subr.bf16.mxu0 0
      %1784 = vmatpush1.bf16.msra.mxu0 0
      %1785 = vmatprep.subr.bf16.mxu0 0
      %1786 = vmatpush1.bf16.msra.mxu0 0
      %1787 = vmatprep.subr.bf16.mxu0 0
      %1788 = vmatpush1.bf16.msra.mxu0 0
      %1789 = vmatprep.subr.bf16.mxu0 0
      %1790 = vmatpush1.bf16.msra.mxu0 0
      %1791 = vmatprep.subr.bf16.mxu0 0
      %1792 = vmatpush1.bf16.msra.mxu0 0
      %1793 = vmatprep.subr.bf16.mxu0 0
      %1794 = vmatpush1.bf16.msra.mxu0 0
      %1795 = vmatprep.subr.bf16.mxu0 0
      %1796 = vmatpush1.bf16.msra.mxu0 0
      %1797 = vmatprep.subr.bf16.mxu0 0
      %1798 = vmatpush1.bf16.msra.mxu0 0
      %1799 = vmatprep.mubr.bf16.mxu0 0
      %1800 = vmatmul.mubr.bf16.gmra.mrb[0].mxu0 %v1762
      %v1801 = vpop.f32.mrb[0].mxu0
      %v1802 = vadd.f32 0.0, %v1801
      %v1803 = vpop.f32.mrb[0].mxu0
      %v1804 = vpop.f32.mrb[0].mxu0
      %v1805 = vpop.f32.mrb[0].mxu0
      %1806 = vdwg.mxu0
      %v1808 = vsel %vm1629, %v1708, 0
      %v1811 = vsel %vm1717, %v1712, 0
      %1813 = vmatprep.subr.bf16.mxu0 0
      %1814 = vmatpush1.bf16.msra.mxu0 %v1811
      %1815 = vmatprep.subr.bf16.mxu0 0
      %1816 = vmatpush1.bf16.msra.mxu0 0
      %1817 = vmatprep.subr.bf16.mxu0 0
      %1818 = vmatpush1.bf16.msra.mxu0 0
      %1819 = vmatprep.subr.bf16.mxu0 0
      %1820 = vmatpush1.bf16.msra.mxu0 0
      %1821 = vmatprep.subr.bf16.mxu0 0
      %1822 = vmatpush1.bf16.msra.mxu0 0
      %1823 = vmatprep.subr.bf16.mxu0 0
      %1824 = vmatpush1.bf16.msra.mxu0 0
      %1825 = vmatprep.subr.bf16.mxu0 0
      %1826 = vmatpush1.bf16.msra.mxu0 0
      %1827 = vmatprep.subr.bf16.mxu0 0
      %1828 = vmatpush1.bf16.msra.mxu0 0
      %1829 = vmatprep.subr.bf16.mxu0 0
      %1830 = vmatpush1.bf16.msra.mxu0 0
      %1831 = vmatprep.subr.bf16.mxu0 0
      %1832 = vmatpush1.bf16.msra.mxu0 0
      %1833 = vmatprep.subr.bf16.mxu0 0
      %1834 = vmatpush1.bf16.msra.mxu0 0
      %1835 = vmatprep.subr.bf16.mxu0 0
      %1836 = vmatpush1.bf16.msra.mxu0 0
      %1837 = vmatprep.subr.bf16.mxu0 0
      %1838 = vmatpush1.bf16.msra.mxu0 0
      %1839 = vmatprep.subr.bf16.mxu0 0
      %1840 = vmatpush1.bf16.msra.mxu0 0
      %1841 = vmatprep.subr.bf16.mxu0 0
      %1842 = vmatpush1.bf16.msra.mxu0 0
      %1843 = vmatprep.subr.bf16.mxu0 0
      %1844 = vmatpush1.bf16.msra.mxu0 0
      %1845 = vmatprep.mubr.bf16.mxu0 0
      %1846 = vmatmul.mubr.bf16.gmra.mrb[0].mxu0 %v1808
      %v1847 = vpop.f32.mrb[0].mxu0
      %v1848 = vadd.f32 0.0, %v1847
      %v1849 = vpop.f32.mrb[0].mxu0
      %v1850 = vpop.f32.mrb[0].mxu0
      %v1851 = vpop.f32.mrb[0].mxu0
      %1852 = vdwg.mxu0
      %v1854 = vsel %vm1629, %v1709, 0
      %v1857 = vsel %vm1717, %v1713, 0
      %1859 = vmatprep.subr.bf16.mxu0 0
      %1860 = vmatpush1.bf16.msra.mxu0 %v1857
      %1861 = vmatprep.subr.bf16.mxu0 0
      %1862 = vmatpush1.bf16.msra.mxu0 0
      %1863 = vmatprep.subr.bf16.mxu0 0
      %1864 = vmatpush1.bf16.msra.mxu0 0
      %1865 = vmatprep.subr.bf16.mxu0 0
      %1866 = vmatpush1.bf16.msra.mxu0 0
      %1867 = vmatprep.subr.bf16.mxu0 0
      %1868 = vmatpush1.bf16.msra.mxu0 0
      %1869 = vmatprep.subr.bf16.mxu0 0
      %1870 = vmatpush1.bf16.msra.mxu0 0
      %1871 = vmatprep.subr.bf16.mxu0 0
      %1872 = vmatpush1.bf16.msra.mxu0 0
      %1873 = vmatprep.subr.bf16.mxu0 0
      %1874 = vmatpush1.bf16.msra.mxu0 0
      %1875 = vmatprep.subr.bf16.mxu0 0
      %1876 = vmatpush1.bf16.msra.mxu0 0
      %1877 = vmatprep.subr.bf16.mxu0 0
      %1878 = vmatpush1.bf16.msra.mxu0 0
      %1879 = vmatprep.subr.bf16.mxu0 0
      %1880 = vmatpush1.bf16.msra.mxu0 0
      %1881 = vmatprep.subr.bf16.mxu0 0
      %1882 = vmatpush1.bf16.msra.mxu0 0
      %1883 = vmatprep.subr.bf16.mxu0 0
      %1884 = vmatpush1.bf16.msra.mxu0 0
      %1885 = vmatprep.subr.bf16.mxu0 0
      %1886 = vmatpush1.bf16.msra.mxu0 0
      %1887 = vmatprep.subr.bf16.mxu0 0
      %1888 = vmatpush1.bf16.msra.mxu0 0
      %1889 = vmatprep.subr.bf16.mxu0 0
      %1890 = vmatpush1.bf16.msra.mxu0 0
      %1891 = vmatprep.mubr.bf16.mxu0 0
      %1892 = vmatmul.mubr.bf16.gmra.mrb[0].mxu0 %v1854
      %v1893 = vpop.f32.mrb[0].mxu0
      %v1894 = vadd.f32 0.0, %v1893
      %v1895 = vpop.f32.mrb[0].mxu0
      %v1896 = vpop.f32.mrb[0].mxu0
      %v1897 = vpop.f32.mrb[0].mxu0
      %1898 = vdwg.mxu0
      %v1900 = vsel %vm1238, %v1702, 0
      %vm1902 = vcmask 1043456
      %v1904 = vsel %vm1902, %v1234, 0
      %1906 = vmatprep.subr.bf16.mxu0 0
      %1907 = vmatpush1.bf16.msra.mxu0 %v1904
      %1908 = vmatprep.subr.bf16.mxu0 0
      %1909 = vmatpush1.bf16.msra.mxu0 0
      %1910 = vmatprep.subr.bf16.mxu0 0
      %1911 = vmatpush1.bf16.msra.mxu0 0
      %1912 = vmatprep.subr.bf16.mxu0 0
      %1913 = vmatpush1.bf16.msra.mxu0 0
      %1914 = vmatprep.subr.bf16.mxu0 0
      %1915 = vmatpush1.bf16.msra.mxu0 0
      %1916 = vmatprep.subr.bf16.mxu0 0
      %1917 = vmatpush1.bf16.msra.mxu0 0
      %1918 = vmatprep.subr.bf16.mxu0 0
      %1919 = vmatpush1.bf16.msra.mxu0 0
      %1920 = vmatprep.subr.bf16.mxu0 0
      %1921 = vmatpush1.bf16.msra.mxu0 0
      %1922 = vmatprep.subr.bf16.mxu0 0
      %1923 = vmatpush1.bf16.msra.mxu0 0
      %1924 = vmatprep.subr.bf16.mxu0 0
      %1925 = vmatpush1.bf16.msra.mxu0 0
      %1926 = vmatprep.subr.bf16.mxu0 0
      %1927 = vmatpush1.bf16.msra.mxu0 0
      %1928 = vmatprep.subr.bf16.mxu0 0
      %1929 = vmatpush1.bf16.msra.mxu0 0
      %1930 = vmatprep.subr.bf16.mxu0 0
      %1931 = vmatpush1.bf16.msra.mxu0 0
      %1932 = vmatprep.subr.bf16.mxu0 0
      %1933 = vmatpush1.bf16.msra.mxu0 0
      %1934 = vmatprep.subr.bf16.mxu0 0
      %1935 = vmatpush1.bf16.msra.mxu0 0
      %1936 = vmatprep.subr.bf16.mxu0 0
      %1937 = vmatpush1.bf16.msra.mxu0 0
      %1938 = vmatprep.mubr.bf16.mxu0 0
      %1939 = vmatmul.mubr.bf16.gmra.mrb[0].mxu0 %v1900
      %v1940 = vpop.f32.mrb[0].mxu0
      %v1941 = vadd.f32 %v1756, %v1940
      %v1942 = vpop.f32.mrb[0].mxu0
      %v1943 = vpop.f32.mrb[0].mxu0
      %v1944 = vpop.f32.mrb[0].mxu0
      %1945 = vdwg.mxu0
      %v1947 = vsel %vm1238, %v1703, 0
      %v1950 = vsel %vm1902, %v1235, 0
      %1952 = vmatprep.subr.bf16.mxu0 0
      %1953 = vmatpush1.bf16.msra.mxu0 %v1950
      %1954 = vmatprep.subr.bf16.mxu0 0
      %1955 = vmatpush1.bf16.msra.mxu0 0
      %1956 = vmatprep.subr.bf16.mxu0 0
      %1957 = vmatpush1.bf16.msra.mxu0 0
      %1958 = vmatprep.subr.bf16.mxu0 0
      %1959 = vmatpush1.bf16.msra.mxu0 0
      %1960 = vmatprep.subr.bf16.mxu0 0
      %1961 = vmatpush1.bf16.msra.mxu0 0
      %1962 = vmatprep.subr.bf16.mxu0 0
      %1963 = vmatpush1.bf16.msra.mxu0 0
      %1964 = vmatprep.subr.bf16.mxu0 0
      %1965 = vmatpush1.bf16.msra.mxu0 0
      %1966 = vmatprep.subr.bf16.mxu0 0
      %1967 = vmatpush1.bf16.msra.mxu0 0
      %1968 = vmatprep.subr.bf16.mxu0 0
      %1969 = vmatpush1.bf16.msra.mxu0 0
      %1970 = vmatprep.subr.bf16.mxu0 0
      %1971 = vmatpush1.bf16.msra.mxu0 0
      %1972 = vmatprep.subr.bf16.mxu0 0
      %1973 = vmatpush1.bf16.msra.mxu0 0
      %1974 = vmatprep.subr.bf16.mxu0 0
      %1975 = vmatpush1.bf16.msra.mxu0 0
      %1976 = vmatprep.subr.bf16.mxu0 0
      %1977 = vmatpush1.bf16.msra.mxu0 0
      %1978 = vmatprep.subr.bf16.mxu0 0
      %1979 = vmatpush1.bf16.msra.mxu0 0
      %1980 = vmatprep.subr.bf16.mxu0 0
      %1981 = vmatpush1.bf16.msra.mxu0 0
      %1982 = vmatprep.subr.bf16.mxu0 0
      %1983 = vmatpush1.bf16.msra.mxu0 0
      %1984 = vmatprep.mubr.bf16.mxu0 0
      %1985 = vmatmul.mubr.bf16.gmra.mrb[0].mxu0 %v1947
      %v1986 = vpop.f32.mrb[0].mxu0
      %v1987 = vadd.f32 %v1802, %v1986
      %v1988 = vpop.f32.mrb[0].mxu0
      %v1989 = vpop.f32.mrb[0].mxu0
      %v1990 = vpop.f32.mrb[0].mxu0
      %1991 = vdwg.mxu0
      %v1993 = vsel %vm1238, %v1704, 0
      %v1996 = vsel %vm1902, %v1236, 0
      %1998 = vmatprep.subr.bf16.mxu0 0
      %1999 = vmatpush1.bf16.msra.mxu0 %v1996
      %2000 = vmatprep.subr.bf16.mxu0 0
      %2001 = vmatpush1.bf16.msra.mxu0 0
      %2002 = vmatprep.subr.bf16.mxu0 0
      %2003 = vmatpush1.bf16.msra.mxu0 0
      %2004 = vmatprep.subr.bf16.mxu0 0
      %2005 = vmatpush1.bf16.msra.mxu0 0
      %2006 = vmatprep.subr.bf16.mxu0 0
      %2007 = vmatpush1.bf16.msra.mxu0 0
      %2008 = vmatprep.subr.bf16.mxu0 0
      %2009 = vmatpush1.bf16.msra.mxu0 0
      %2010 = vmatprep.subr.bf16.mxu0 0
      %2011 = vmatpush1.bf16.msra.mxu0 0
      %2012 = vmatprep.subr.bf16.mxu0 0
      %2013 = vmatpush1.bf16.msra.mxu0 0
      %2014 = vmatprep.subr.bf16.mxu0 0
      %2015 = vmatpush1.bf16.msra.mxu0 0
      %2016 = vmatprep.subr.bf16.mxu0 0
      %2017 = vmatpush1.bf16.msra.mxu0 0
      %2018 = vmatprep.subr.bf16.mxu0 0
      %2019 = vmatpush1.bf16.msra.mxu0 0
      %2020 = vmatprep.subr.bf16.mxu0 0
      %2021 = vmatpush1.bf16.msra.mxu0 0
      %2022 = vmatprep.subr.bf16.mxu0 0
      %2023 = vmatpush1.bf16.msra.mxu0 0
      %2024 = vmatprep.subr.bf16.mxu0 0
      %2025 = vmatpush1.bf16.msra.mxu0 0
      %2026 = vmatprep.subr.bf16.mxu0 0
      %2027 = vmatpush1.bf16.msra.mxu0 0
      %2028 = vmatprep.subr.bf16.mxu0 0
      %2029 = vmatpush1.bf16.msra.mxu0 0
      %2030 = vmatprep.mubr.bf16.mxu0 0
      %2031 = vmatmul.mubr.bf16.gmra.mrb[0].mxu0 %v1993
      %v2032 = vpop.f32.mrb[0].mxu0
      %v2033 = vadd.f32 %v1848, %v2032
      %v2034 = vpop.f32.mrb[0].mxu0
      %v2035 = vpop.f32.mrb[0].mxu0
      %v2036 = vpop.f32.mrb[0].mxu0
      %2037 = vdwg.mxu0
      %v2039 = vsel %vm1238, %v1705, 0
      %v2042 = vsel %vm1902, %v1237, 0
      %2044 = vmatprep.subr.bf16.mxu0 0
      %2045 = vmatpush1.bf16.msra.mxu0 %v2042
      %2046 = vmatprep.subr.bf16.mxu0 0
      %2047 = vmatpush1.bf16.msra.mxu0 0
      %2048 = vmatprep.subr.bf16.mxu0 0
      %2049 = vmatpush1.bf16.msra.mxu0 0
      %2050 = vmatprep.subr.bf16.mxu0 0
      %2051 = vmatpush1.bf16.msra.mxu0 0
      %2052 = vmatprep.subr.bf16.mxu0 0
      %2053 = vmatpush1.bf16.msra.mxu0 0
      %2054 = vmatprep.subr.bf16.mxu0 0
      %2055 = vmatpush1.bf16.msra.mxu0 0
      %2056 = vmatprep.subr.bf16.mxu0 0
      %2057 = vmatpush1.bf16.msra.mxu0 0
      %2058 = vmatprep.subr.bf16.mxu0 0
      %2059 = vmatpush1.bf16.msra.mxu0 0
      %2060 = vmatprep.subr.bf16.mxu0 0
      %2061 = vmatpush1.bf16.msra.mxu0 0
      %2062 = vmatprep.subr.bf16.mxu0 0
      %2063 = vmatpush1.bf16.msra.mxu0 0
      %2064 = vmatprep.subr.bf16.mxu0 0
      %2065 = vmatpush1.bf16.msra.mxu0 0
      %2066 = vmatprep.subr.bf16.mxu0 0
      %2067 = vmatpush1.bf16.msra.mxu0 0
      %2068 = vmatprep.subr.bf16.mxu0 0
      %2069 = vmatpush1.bf16.msra.mxu0 0
      %2070 = vmatprep.subr.bf16.mxu0 0
      %2071 = vmatpush1.bf16.msra.mxu0 0
      %2072 = vmatprep.subr.bf16.mxu0 0
      %2073 = vmatpush1.bf16.msra.mxu0 0
      %2074 = vmatprep.subr.bf16.mxu0 0
      %2075 = vmatpush1.bf16.msra.mxu0 0
      %2076 = vmatprep.mubr.bf16.mxu0 0
      %2077 = vmatmul.mubr.bf16.gmra.mrb[0].mxu0 %v2039
      %v2078 = vpop.f32.mrb[0].mxu0
      %v2079 = vadd.f32 %v1894, %v2078
      %v2080 = vpop.f32.mrb[0].mxu0
      %v2081 = vpop.f32.mrb[0].mxu0
      %v2082 = vpop.f32.mrb[0].mxu0
      %2083 = vdwg.mxu0
      %v2084 = vmul.f32 %v1941, %v1698
      %v2085 = vmul.f32 %v1987, %v1699
      %v2086 = vmul.f32 %v2033, %v1700
      %v2087 = vmul.f32 %v2079, %v1701
      %v2088 = vpack.c.bf16 %v2084, %v2084
      %v2089 = vpack.c.bf16 %v2085, %v2085
      %v2090 = vpack.c.bf16 %v2086, %v2086
      %v2091 = vpack.c.bf16 %v2087, %v2087
      %v2092 = vld [vmem:[%s5] sm:$0xf]
      %v2093 = vld [vmem:[%s5 + $0x4] sm:$0xf]
      %v2094 = vld [vmem:[%s5 + $0x8] sm:$0xf]
      %v2095 = vld [vmem:[%s5 + $0xc] sm:$0xf]
      %v2097 = vsel %vm1238, %v2088, 0
      %v2100 = vsel %vm1902, %v2092, 0
      %2102 = vmatprep.subr.bf16.mxu0 0
      %2103 = vmatpush1.bf16.msra.mxu0 %v2100
      %2104 = vmatprep.subr.bf16.mxu0 0
      %2105 = vmatpush1.bf16.msra.mxu0 0
      %2106 = vmatprep.subr.bf16.mxu0 0
      %2107 = vmatpush1.bf16.msra.mxu0 0
      %2108 = vmatprep.subr.bf16.mxu0 0
      %2109 = vmatpush1.bf16.msra.mxu0 0
      %2110 = vmatprep.subr.bf16.mxu0 0
      %2111 = vmatpush1.bf16.msra.mxu0 0
      %2112 = vmatprep.subr.bf16.mxu0 0
      %2113 = vmatpush1.bf16.msra.mxu0 0
      %2114 = vmatprep.subr.bf16.mxu0 0
      %2115 = vmatpush1.bf16.msra.mxu0 0
      %2116 = vmatprep.subr.bf16.mxu0 0
      %2117 = vmatpush1.bf16.msra.mxu0 0
      %2118 = vmatprep.subr.bf16.mxu0 0
      %2119 = vmatpush1.bf16.msra.mxu0 0
      %2120 = vmatprep.subr.bf16.mxu0 0
      %2121 = vmatpush1.bf16.msra.mxu0 0
      %2122 = vmatprep.subr.bf16.mxu0 0
      %2123 = vmatpush1.bf16.msra.mxu0 0
      %2124 = vmatprep.subr.bf16.mxu0 0
      %2125 = vmatpush1.bf16.msra.mxu0 0
      %2126 = vmatprep.subr.bf16.mxu0 0
      %2127 = vmatpush1.bf16.msra.mxu0 0
      %2128 = vmatprep.subr.bf16.mxu0 0
      %2129 = vmatpush1.bf16.msra.mxu0 0
      %2130 = vmatprep.subr.bf16.mxu0 0
      %2131 = vmatpush1.bf16.msra.mxu0 0
      %2132 = vmatprep.subr.bf16.mxu0 0
      %2133 = vmatpush1.bf16.msra.mxu0 0
      %2134 = vmatprep.mubr.bf16.mxu0 0
      %2135 = vmatmul.mubr.bf16.gmra.mrb[0].mxu0 %v2097
      %v2136 = vpop.f32.mrb[0].mxu0
      %v2137 = vadd.f32 0.0, %v2136
      %v2138 = vpop.f32.mrb[0].mxu0
      %v2139 = vpop.f32.mrb[0].mxu0
      %v2140 = vpop.f32.mrb[0].mxu0
      %2141 = vdwg.mxu0
      %v2143 = vsel %vm1238, %v2089, 0
      %v2146 = vsel %vm1902, %v2093, 0
      %2148 = vmatprep.subr.bf16.mxu0 0
      %2149 = vmatpush1.bf16.msra.mxu0 %v2146
      %2150 = vmatprep.subr.bf16.mxu0 0
      %2151 = vmatpush1.bf16.msra.mxu0 0
      %2152 = vmatprep.subr.bf16.mxu0 0
      %2153 = vmatpush1.bf16.msra.mxu0 0
      %2154 = vmatprep.subr.bf16.mxu0 0
      %2155 = vmatpush1.bf16.msra.mxu0 0
      %2156 = vmatprep.subr.bf16.mxu0 0
      %2157 = vmatpush1.bf16.msra.mxu0 0
      %2158 = vmatprep.subr.bf16.mxu0 0
      %2159 = vmatpush1.bf16.msra.mxu0 0
      %2160 = vmatprep.subr.bf16.mxu0 0
      %2161 = vmatpush1.bf16.msra.mxu0 0
      %2162 = vmatprep.subr.bf16.mxu0 0
      %2163 = vmatpush1.bf16.msra.mxu0 0
      %2164 = vmatprep.subr.bf16.mxu0 0
      %2165 = vmatpush1.bf16.msra.mxu0 0
      %2166 = vmatprep.subr.bf16.mxu0 0
      %2167 = vmatpush1.bf16.msra.mxu0 0
      %2168 = vmatprep.subr.bf16.mxu0 0
      %2169 = vmatpush1.bf16.msra.mxu0 0
      %2170 = vmatprep.subr.bf16.mxu0 0
      %2171 = vmatpush1.bf16.msra.mxu0 0
      %2172 = vmatprep.subr.bf16.mxu0 0
      %2173 = vmatpush1.bf16.msra.mxu0 0
      %2174 = vmatprep.subr.bf16.mxu0 0
      %2175 = vmatpush1.bf16.msra.mxu0 0
      %2176 = vmatprep.subr.bf16.mxu0 0
      %2177 = vmatpush1.bf16.msra.mxu0 0
      %2178 = vmatprep.subr.bf16.mxu0 0
      %2179 = vmatpush1.bf16.msra.mxu0 0
      %2180 = vmatprep.mubr.bf16.mxu0 0
      %2181 = vmatmul.mubr.bf16.gmra.mrb[0].mxu0 %v2143
      %v2182 = vpop.f32.mrb[0].mxu0
      %v2183 = vadd.f32 0.0, %v2182
      %v2184 = vpop.f32.mrb[0].mxu0
      %v2185 = vpop.f32.mrb[0].mxu0
      %v2186 = vpop.f32.mrb[0].mxu0
      %2187 = vdwg.mxu0
      %v2189 = vsel %vm1238, %v2090, 0
      %v2192 = vsel %vm1902, %v2094, 0
      %2194 = vmatprep.subr.bf16.mxu0 0
      %2195 = vmatpush1.bf16.msra.mxu0 %v2192
      %2196 = vmatprep.subr.bf16.mxu0 0
      %2197 = vmatpush1.bf16.msra.mxu0 0
      %2198 = vmatprep.subr.bf16.mxu0 0
      %2199 = vmatpush1.bf16.msra.mxu0 0
      %2200 = vmatprep.subr.bf16.mxu0 0
      %2201 = vmatpush1.bf16.msra.mxu0 0
      %2202 = vmatprep.subr.bf16.mxu0 0
      %2203 = vmatpush1.bf16.msra.mxu0 0
      %2204 = vmatprep.subr.bf16.mxu0 0
      %2205 = vmatpush1.bf16.msra.mxu0 0
      %2206 = vmatprep.subr.bf16.mxu0 0
      %2207 = vmatpush1.bf16.msra.mxu0 0
      %2208 = vmatprep.subr.bf16.mxu0 0
      %2209 = vmatpush1.bf16.msra.mxu0 0
      %2210 = vmatprep.subr.bf16.mxu0 0
      %2211 = vmatpush1.bf16.msra.mxu0 0
      %2212 = vmatprep.subr.bf16.mxu0 0
      %2213 = vmatpush1.bf16.msra.mxu0 0
      %2214 = vmatprep.subr.bf16.mxu0 0
      %2215 = vmatpush1.bf16.msra.mxu0 0
      %2216 = vmatprep.subr.bf16.mxu0 0
      %2217 = vmatpush1.bf16.msra.mxu0 0
      %2218 = vmatprep.subr.bf16.mxu0 0
      %2219 = vmatpush1.bf16.msra.mxu0 0
      %2220 = vmatprep.subr.bf16.mxu0 0
      %2221 = vmatpush1.bf16.msra.mxu0 0
      %2222 = vmatprep.subr.bf16.mxu0 0
      %2223 = vmatpush1.bf16.msra.mxu0 0
      %2224 = vmatprep.subr.bf16.mxu0 0
      %2225 = vmatpush1.bf16.msra.mxu0 0
      %2226 = vmatprep.mubr.bf16.mxu0 0
      %2227 = vmatmul.mubr.bf16.gmra.mrb[0].mxu0 %v2189
      %v2228 = vpop.f32.mrb[0].mxu0
      %v2229 = vadd.f32 0.0, %v2228
      %v2230 = vpop.f32.mrb[0].mxu0
      %v2231 = vpop.f32.mrb[0].mxu0
      %v2232 = vpop.f32.mrb[0].mxu0
      %2233 = vdwg.mxu0
      %v2235 = vsel %vm1238, %v2091, 0
      %v2238 = vsel %vm1902, %v2095, 0
      %2240 = vmatprep.subr.bf16.mxu0 0
      %2241 = vmatpush1.bf16.msra.mxu0 %v2238
      %2242 = vmatprep.subr.bf16.mxu0 0
      %2243 = vmatpush1.bf16.msra.mxu0 0
      %2244 = vmatprep.subr.bf16.mxu0 0
      %2245 = vmatpush1.bf16.msra.mxu0 0
      %2246 = vmatprep.subr.bf16.mxu0 0
      %2247 = vmatpush1.bf16.msra.mxu0 0
      %2248 = vmatprep.subr.bf16.mxu0 0
      %2249 = vmatpush1.bf16.msra.mxu0 0
      %2250 = vmatprep.subr.bf16.mxu0 0
      %2251 = vmatpush1.bf16.msra.mxu0 0
      %2252 = vmatprep.subr.bf16.mxu0 0
      %2253 = vmatpush1.bf16.msra.mxu0 0
      %2254 = vmatprep.subr.bf16.mxu0 0
      %2255 = vmatpush1.bf16.msra.mxu0 0
      %2256 = vmatprep.subr.bf16.mxu0 0
      %2257 = vmatpush1.bf16.msra.mxu0 0
      %2258 = vmatprep.subr.bf16.mxu0 0
      %2259 = vmatpush1.bf16.msra.mxu0 0
      %2260 = vmatprep.subr.bf16.mxu0 0
      %2261 = vmatpush1.bf16.msra.mxu0 0
      %2262 = vmatprep.subr.bf16.mxu0 0
      %2263 = vmatpush1.bf16.msra.mxu0 0
      %2264 = vmatprep.subr.bf16.mxu0 0
      %2265 = vmatpush1.bf16.msra.mxu0 0
      %2266 = vmatprep.subr.bf16.mxu0 0
      %2267 = vmatpush1.bf16.msra.mxu0 0
      %2268 = vmatprep.subr.bf16.mxu0 0
      %2269 = vmatpush1.bf16.msra.mxu0 0
      %2270 = vmatprep.subr.bf16.mxu0 0
      %2271 = vmatpush1.bf16.msra.mxu0 0
      %2272 = vmatprep.mubr.bf16.mxu0 0
      %2273 = vmatmul.mubr.bf16.gmra.mrb[0].mxu0 %v2235
      %v2274 = vpop.f32.mrb[0].mxu0
      %v2275 = vadd.f32 0.0, %v2274
      %v2276 = vpop.f32.mrb[0].mxu0
      %v2277 = vpop.f32.mrb[0].mxu0
      %v2278 = vpop.f32.mrb[0].mxu0
      %2279 = vdwg.mxu0
      %v2280 = vsel %vm439, %v2137, 0.0
      %v2281 = vsel %vm439, %v2183, 0.0
      %v2282 = vadd.f32 %v2280, %v2281
      %v2283 = vsel %vm439, %v2229, 0.0
      %v2284 = vadd.f32 %v2282, %v2283
      %v2285 = vsel %vm439, %v2275, 0.0
      %v2286 = vadd.f32 %v2284, %v2285
      %v2287 = vlaneseq
      %v2288 = vshrl.u32 %v2287, 7
      %v2289 = vsub.s32 0, %v2288
      %v2290 = vrot.slane %v465, %v2289
      %v2291 = vadd.f32 %v2286, %v2290
      %v2292 = vadd.f32 %v463, %v2291
      %v2293 = vsel %vm439, %v2292, 0.0
      %2294 = vadd.xlane.f32.xlu0 %v2293
      %v2295 = vpop.xlane.xlu0 %2294
      %v2296 = vmul.f32 %v2295, %v443
      %v2297 = vsub.f32 %v2292, %v2296
      %v2298 = vmul.f32 %v2297, %v2297
      %v2299 = vsel %vm439, %v2298, 0.0
      %2300 = vadd.xlane.f32.xlu0 %v2299
      %v2301 = vpop.xlane.xlu0 %2300
      %v2302 = vmul.f32 %v2301, %v443
      %v2303 = vadd.f32 %v2302, 1e-12
      %v2304 = vrsqrt.pop %v2303
      %v2305 = vmul.f32 %v2297, %v2304
      %v2306 = vlaneseq
      %v2307 = vshrl.u32 %v2306, 7
      %v2308 = vsub.s32 1, %v2307
      %v2309 = vrot.slane %v465, %v2308
      %v2310 = vmul.f32 %v2305, %v2309
      %v2311 = vlaneseq
      %v2312 = vshrl.u32 %v2311, 7
      %v2313 = vsub.s32 2, %v2312
      %v2314 = vrot.slane %v465, %v2313
      %v2315 = vadd.f32 %v2310, %v2314
      %v2316 = vpack.c.bf16 %v2315, %v2315
      %v2317 = vld [vmem:[%s6] sm:$0xf]
      %v2318 = vld [vmem:[%s6 + $0x4] sm:$0xf]
      %v2319 = vld [vmem:[%s6 + $0x8] sm:$0xf]
      %v2320 = vld [vmem:[%s6 + $0xc] sm:$0xf]
      %v2321 = vlaneseq
      %v2322 = vshrl.u32 %v2321, 7
      %v2323 = vsub.s32 3, %v2322
      %v2324 = vrot.slane %v465, %v2323
      %v2329 = vunpack.c.l.b16 %v2317
      %v2330 = vunpack.c.l.b16 %v2318
      %v2331 = vunpack.c.l.b16 %v2319
      %v2332 = vunpack.c.l.b16 %v2320
      %v2333 = vpack.c.b16 %v2330, %v2329
      %v2334 = vpack.c.b16 %v2332, %v2331
      %v2338 = vsel %vm439, %v2316, 0
      %2340 = vmatprep.subr.bf16.mxu0 0
      %2341 = vmatpush1.bf16.msra.mxu0 %v2333
      %2342 = vmatprep.subr.bf16.mxu0 0
      %2343 = vmatpush1.bf16.msra.mxu0 %v2334
      %2344 = vmatprep.subr.bf16.mxu0 0
      %2345 = vmatpush1.bf16.msra.mxu0 0
      %2346 = vmatprep.subr.bf16.mxu0 0
      %2347 = vmatpush1.bf16.msra.mxu0 0
      %2348 = vmatprep.subr.bf16.mxu0 0
      %2349 = vmatpush1.bf16.msra.mxu0 0
      %2350 = vmatprep.subr.bf16.mxu0 0
      %2351 = vmatpush1.bf16.msra.mxu0 0
      %2352 = vmatprep.subr.bf16.mxu0 0
      %2353 = vmatpush1.bf16.msra.mxu0 0
      %2354 = vmatprep.subr.bf16.mxu0 0
      %2355 = vmatpush1.bf16.msra.mxu0 0
      %2356 = vmatprep.subr.bf16.mxu0 0
      %2357 = vmatpush1.bf16.msra.mxu0 0
      %2358 = vmatprep.subr.bf16.mxu0 0
      %2359 = vmatpush1.bf16.msra.mxu0 0
      %2360 = vmatprep.subr.bf16.mxu0 0
      %2361 = vmatpush1.bf16.msra.mxu0 0
      %2362 = vmatprep.subr.bf16.mxu0 0
      %2363 = vmatpush1.bf16.msra.mxu0 0
      %2364 = vmatprep.subr.bf16.mxu0 0
      %2365 = vmatpush1.bf16.msra.mxu0 0
      %2366 = vmatprep.subr.bf16.mxu0 0
      %2367 = vmatpush1.bf16.msra.mxu0 0
      %2368 = vmatprep.subr.bf16.mxu0 0
      %2369 = vmatpush1.bf16.msra.mxu0 0
      %2370 = vmatprep.subr.bf16.mxu0 0
      %2371 = vmatpush1.bf16.msra.mxu0 0
      %2372 = vmatprep.mubr.bf16.mxu0 0
      %2373 = vmatmul.mubr.bf16.gmra.mrb[0].mxu0 %v2338
      %v2374 = vpop.f32.mrb[0].mxu0
      %v2375 = vadd.f32 %v2324, %v2374
      %v2376 = vpop.f32.mrb[0].mxu0
      %v2377 = vpop.f32.mrb[0].mxu0
      %v2378 = vpop.f32.mrb[0].mxu0
      %2379 = vdwg.mxu0
      %v2380 = vmul.f32 %v2375, 0.5
      %v2381 = vmul.f32 %v2375, 0.044715
      %v2382 = vmul.f32 %v2381, %v2375
      %v2383 = vmul.f32 %v2382, %v2375
      %v2384 = vadd.f32 %v2375, %v2383
      %v2385 = vmul.f32 %v2384, 0.7978846
      %v2386 = vtanh.pop %v2385
      %v2387 = vadd.f32 %v2386, 1.0
      %v2388 = vmul.f32 %v2380, %v2387
      %v2389 = vpack.c.bf16 %v2388, %v2388
      %v2390 = vld [vmem:[%s7] sm:$0xf]
      %v2391 = vld [vmem:[%s7 + $0x4] sm:$0xf]
      %v2392 = vld [vmem:[%s7 + $0x8] sm:$0xf]
      %v2393 = vld [vmem:[%s7 + $0xc] sm:$0xf]
      %v2394 = vld [vmem:[%s7 + $0x10] sm:$0xf]
      %v2395 = vld [vmem:[%s7 + $0x14] sm:$0xf]
      %v2396 = vld [vmem:[%s7 + $0x18] sm:$0xf]
      %v2397 = vld [vmem:[%s7 + $0x1c] sm:$0xf]
      %v2398 = vlaneseq
      %v2399 = vshrl.u32 %v2398, 7
      %v2400 = vsub.s32 4, %v2399
      %v2401 = vrot.slane %v465, %v2400
      %v2410 = vunpack.c.l.b16 %v2390
      %v2411 = vunpack.c.l.b16 %v2391
      %v2412 = vunpack.c.l.b16 %v2392
      %v2413 = vunpack.c.l.b16 %v2393
      %v2414 = vunpack.c.l.b16 %v2394
      %v2415 = vunpack.c.l.b16 %v2395
      %v2416 = vunpack.c.l.b16 %v2396
      %v2417 = vunpack.c.l.b16 %v2397
      %v2418 = vpack.c.b16 %v2411, %v2410
      %v2419 = vpack.c.b16 %v2413, %v2412
      %v2420 = vpack.c.b16 %v2415, %v2414
      %v2421 = vpack.c.b16 %v2417, %v2416
      %vm2426 = vcmask 523264
      %v2428 = vsel %vm2426, %v2389, 0
      %2430 = vmatprep.subr.bf16.mxu0 0
      %2431 = vmatpush1.bf16.msra.mxu0 %v2418
      %2432 = vmatprep.subr.bf16.mxu0 0
      %2433 = vmatpush1.bf16.msra.mxu0 %v2419
      %2434 = vmatprep.subr.bf16.mxu0 0
      %2435 = vmatpush1.bf16.msra.mxu0 %v2420
      %2436 = vmatprep.subr.bf16.mxu0 0
      %2437 = vmatpush1.bf16.msra.mxu0 %v2421
      %2438 = vmatprep.subr.bf16.mxu0 0
      %2439 = vmatpush1.bf16.msra.mxu0 0
      %2440 = vmatprep.subr.bf16.mxu0 0
      %2441 = vmatpush1.bf16.msra.mxu0 0
      %2442 = vmatprep.subr.bf16.mxu0 0
      %2443 = vmatpush1.bf16.msra.mxu0 0
      %2444 = vmatprep.subr.bf16.mxu0 0
      %2445 = vmatpush1.bf16.msra.mxu0 0
      %2446 = vmatprep.subr.bf16.mxu0 0
      %2447 = vmatpush1.bf16.msra.mxu0 0
      %2448 = vmatprep.subr.bf16.mxu0 0
      %2449 = vmatpush1.bf16.msra.mxu0 0
      %2450 = vmatprep.subr.bf16.mxu0 0
      %2451 = vmatpush1.bf16.msra.mxu0 0
      %2452 = vmatprep.subr.bf16.mxu0 0
      %2453 = vmatpush1.bf16.msra.mxu0 0
      %2454 = vmatprep.subr.bf16.mxu0 0
      %2455 = vmatpush1.bf16.msra.mxu0 0
      %2456 = vmatprep.subr.bf16.mxu0 0
      %2457 = vmatpush1.bf16.msra.mxu0 0
      %2458 = vmatprep.subr.bf16.mxu0 0
      %2459 = vmatpush1.bf16.msra.mxu0 0
      %2460 = vmatprep.subr.bf16.mxu0 0
      %2461 = vmatpush1.bf16.msra.mxu0 0
      %2462 = vmatprep.mubr.bf16.mxu0 0
      %2463 = vmatmul.mubr.bf16.gmra.mrb[0].mxu0 %v2428
      %v2464 = vpop.f32.mrb[0].mxu0
      %v2465 = vadd.f32 %v2401, %v2464
      %v2466 = vpop.f32.mrb[0].mxu0
      %v2467 = vpop.f32.mrb[0].mxu0
      %v2468 = vpop.f32.mrb[0].mxu0
      %2469 = vdwg.mxu0
      %v2470 = vadd.f32 %v2315, %v2465
      %v2471 = vsel %vm439, %v2470, 0.0
      %2472 = vadd.xlane.f32.xlu0 %v2471
      %v2473 = vpop.xlane.xlu0 %2472
      %v2474 = vmul.f32 %v2473, %v443
      %v2475 = vsub.f32 %v2470, %v2474
      %v2476 = vmul.f32 %v2475, %v2475
      %v2477 = vsel %vm439, %v2476, 0.0
      %2478 = vadd.xlane.f32.xlu0 %v2477
      %v2479 = vpop.xlane.xlu0 %2478
      %v2480 = vmul.f32 %v2479, %v443
      %v2481 = vadd.f32 %v2480, 1e-12
      %v2482 = vrsqrt.pop %v2481
      %v2483 = vmul.f32 %v2475, %v2482
      %v2484 = vlaneseq
      %v2485 = vshrl.u32 %v2484, 7
      %v2486 = vsub.s32 5, %v2485
      %v2487 = vrot.slane %v465, %v2486
      %v2488 = vmul.f32 %v2483, %v2487
      %v2489 = vlaneseq
      %v2490 = vshrl.u32 %v2489, 7
      %v2491 = vsub.s32 6, %v2490
      %v2492 = vrot.slane %v465, %v2491
      %v2493 = vadd.f32 %v2488, %v2492
      %s2494 = scalar_lea.vmem %s10, 8
      %v2495 = vld [vmem:[%s2494] sm:$0xff]
      %v2496 = vpack.c.bf16 %v2493, %v2493
      %s2497 = scalar_lea.vmem %s3, 192
      %v2498 = vld [vmem:[%s2497] sm:$0xf]
      %v2499 = vld [vmem:[%s2497 + $0x4] sm:$0xf]
      %v2500 = vld [vmem:[%s2497 + $0x8] sm:$0xf]
      %v2501 = vld [vmem:[%s2497 + $0xc] sm:$0xf]
      %v2502 = vld [vmem:[%s2497 + $0x10] sm:$0xf]
      %v2503 = vld [vmem:[%s2497 + $0x14] sm:$0xf]
      %v2504 = vld [vmem:[%s2497 + $0x18] sm:$0xf]
      %v2505 = vld [vmem:[%s2497 + $0x1c] sm:$0xf]
      %v2506 = vld [vmem:[%s2497 + $0x20] sm:$0xf]
      %v2507 = vld [vmem:[%s2497 + $0x24] sm:$0xf]
      %v2508 = vld [vmem:[%s2497 + $0x28] sm:$0xf]
      %v2509 = vld [vmem:[%s2497 + $0x2c] sm:$0xf]
      %v2510 = vld [vmem:[%s2497 + $0x30] sm:$0xf]
      %v2511 = vld [vmem:[%s2497 + $0x34] sm:$0xf]
      %v2512 = vld [vmem:[%s2497 + $0x38] sm:$0xf]
      %v2513 = vld [vmem:[%s2497 + $0x3c] sm:$0xf]
      %v2514 = vld [vmem:[%s2497 + $0x40] sm:$0xf]
      %v2515 = vld [vmem:[%s2497 + $0x44] sm:$0xf]
      %v2516 = vld [vmem:[%s2497 + $0x48] sm:$0xf]
      %v2517 = vld [vmem:[%s2497 + $0x4c] sm:$0xf]
      %v2518 = vld [vmem:[%s2497 + $0x50] sm:$0xf]
      %v2519 = vld [vmem:[%s2497 + $0x54] sm:$0xf]
      %v2520 = vld [vmem:[%s2497 + $0x58] sm:$0xf]
      %v2521 = vld [vmem:[%s2497 + $0x5c] sm:$0xf]
      %v2522 = vld [vmem:[%s2497 + $0x60] sm:$0xf]
      %v2523 = vld [vmem:[%s2497 + $0x64] sm:$0xf]
      %v2524 = vld [vmem:[%s2497 + $0x68] sm:$0xf]
      %v2525 = vld [vmem:[%s2497 + $0x6c] sm:$0xf]
      %v2526 = vld [vmem:[%s2497 + $0x70] sm:$0xf]
      %v2527 = vld [vmem:[%s2497 + $0x74] sm:$0xf]
      %v2528 = vld [vmem:[%s2497 + $0x78] sm:$0xf]
      %v2529 = vld [vmem:[%s2497 + $0x7c] sm:$0xf]
      %v2530 = vld [vmem:[%s2497 + $0x80] sm:$0xf]
      %v2531 = vld [vmem:[%s2497 + $0x84] sm:$0xf]
      %v2532 = vld [vmem:[%s2497 + $0x88] sm:$0xf]
      %v2533 = vld [vmem:[%s2497 + $0x8c] sm:$0xf]
      %v2534 = vld [vmem:[%s2497 + $0x90] sm:$0xf]
      %v2535 = vld [vmem:[%s2497 + $0x94] sm:$0xf]
      %v2536 = vld [vmem:[%s2497 + $0x98] sm:$0xf]
      %v2537 = vld [vmem:[%s2497 + $0x9c] sm:$0xf]
      %v2538 = vld [vmem:[%s2497 + $0xa0] sm:$0xf]
      %v2539 = vld [vmem:[%s2497 + $0xa4] sm:$0xf]
      %v2540 = vld [vmem:[%s2497 + $0xa8] sm:$0xf]
      %v2541 = vld [vmem:[%s2497 + $0xac] sm:$0xf]
      %v2542 = vld [vmem:[%s2497 + $0xb0] sm:$0xf]
      %v2543 = vld [vmem:[%s2497 + $0xb4] sm:$0xf]
      %v2544 = vld [vmem:[%s2497 + $0xb8] sm:$0xf]
      %v2545 = vld [vmem:[%s2497 + $0xbc] sm:$0xf]
      %s2546 = scalar_lea.vmem %s4, 12
      %v2547 = vld [vmem:[%s2546] sm:$0x1]
      %v2548 = vld [vmem:[%s2546 + $0x1] sm:$0x1]
      %v2549 = vld [vmem:[%s2546 + $0x2] sm:$0x1]
      %v2550 = vld [vmem:[%s2546 + $0x3] sm:$0x1]
      %v2551 = vld [vmem:[%s2546 + $0x4] sm:$0x1]
      %v2552 = vld [vmem:[%s2546 + $0x5] sm:$0x1]
      %v2553 = vld [vmem:[%s2546 + $0x6] sm:$0x1]
      %v2554 = vld [vmem:[%s2546 + $0x7] sm:$0x1]
      %v2555 = vld [vmem:[%s2546 + $0x8] sm:$0x1]
      %v2556 = vld [vmem:[%s2546 + $0x9] sm:$0x1]
      %v2557 = vld [vmem:[%s2546 + $0xa] sm:$0x1]
      %v2558 = vld [vmem:[%s2546 + $0xb] sm:$0x1]
      %v2571 = vlaneseq
      %v2572 = vshrl.u32 %v2571, 7
      %v2573 = vsub.s32 0, %v2572
      %v2574 = vrot.slane %v2547, %v2573
      %v2575 = vlaneseq
      %v2576 = vshrl.u32 %v2575, 7
      %v2577 = vsub.s32 0, %v2576
      %v2578 = vrot.slane %v2548, %v2577
      %v2579 = vlaneseq
      %v2580 = vshrl.u32 %v2579, 7
      %v2581 = vsub.s32 0, %v2580
      %v2582 = vrot.slane %v2549, %v2581
      %v2583 = vlaneseq
      %v2584 = vshrl.u32 %v2583, 7
      %v2585 = vsub.s32 0, %v2584
      %v2586 = vrot.slane %v2550, %v2585
      %v2587 = vlaneseq
      %v2588 = vshrl.u32 %v2587, 7
      %v2589 = vsub.s32 0, %v2588
      %v2590 = vrot.slane %v2551, %v2589
      %v2591 = vlaneseq
      %v2592 = vshrl.u32 %v2591, 7
      %v2593 = vsub.s32 0, %v2592
      %v2594 = vrot.slane %v2552, %v2593
      %v2595 = vlaneseq
      %v2596 = vshrl.u32 %v2595, 7
      %v2597 = vsub.s32 0, %v2596
      %v2598 = vrot.slane %v2553, %v2597
      %v2599 = vlaneseq
      %v2600 = vshrl.u32 %v2599, 7
      %v2601 = vsub.s32 0, %v2600
      %v2602 = vrot.slane %v2554, %v2601
      %v2603 = vlaneseq
      %v2604 = vshrl.u32 %v2603, 7
      %v2605 = vsub.s32 0, %v2604
      %v2606 = vrot.slane %v2555, %v2605
      %v2607 = vlaneseq
      %v2608 = vshrl.u32 %v2607, 7
      %v2609 = vsub.s32 0, %v2608
      %v2610 = vrot.slane %v2556, %v2609
      %v2611 = vlaneseq
      %v2612 = vshrl.u32 %v2611, 7
      %v2613 = vsub.s32 0, %v2612
      %v2614 = vrot.slane %v2557, %v2613
      %v2615 = vlaneseq
      %v2616 = vshrl.u32 %v2615, 7
      %v2617 = vsub.s32 0, %v2616
      %v2618 = vrot.slane %v2558, %v2617
      %v2635 = vunpack.c.l.b16 %v2498
      %v2636 = vunpack.c.l.b16 %v2499
      %v2637 = vunpack.c.l.b16 %v2500
      %v2638 = vunpack.c.l.b16 %v2501
      %v2639 = vpack.c.b16 %v2636, %v2635
      %v2640 = vpack.c.b16 %v2638, %v2637
      %v2644 = vsel %vm439, %v2496, 0
      %2646 = vmatprep.subr.bf16.mxu0 0
      %2647 = vmatpush1.bf16.msra.mxu0 %v2639
      %2648 = vmatprep.subr.bf16.mxu0 0
      %2649 = vmatpush1.bf16.msra.mxu0 %v2640
      %2650 = vmatprep.subr.bf16.mxu0 0
      %2651 = vmatpush1.bf16.msra.mxu0 0
      %2652 = vmatprep.subr.bf16.mxu0 0
      %2653 = vmatpush1.bf16.msra.mxu0 0
      %2654 = vmatprep.subr.bf16.mxu0 0
      %2655 = vmatpush1.bf16.msra.mxu0 0
      %2656 = vmatprep.subr.bf16.mxu0 0
      %2657 = vmatpush1.bf16.msra.mxu0 0
      %2658 = vmatprep.subr.bf16.mxu0 0
      %2659 = vmatpush1.bf16.msra.mxu0 0
      %2660 = vmatprep.subr.bf16.mxu0 0
      %2661 = vmatpush1.bf16.msra.mxu0 0
      %2662 = vmatprep.subr.bf16.mxu0 0
      %2663 = vmatpush1.bf16.msra.mxu0 0
      %2664 = vmatprep.subr.bf16.mxu0 0
      %2665 = vmatpush1.bf16.msra.mxu0 0
      %2666 = vmatprep.subr.bf16.mxu0 0
      %2667 = vmatpush1.bf16.msra.mxu0 0
      %2668 = vmatprep.subr.bf16.mxu0 0
      %2669 = vmatpush1.bf16.msra.mxu0 0
      %2670 = vmatprep.subr.bf16.mxu0 0
      %2671 = vmatpush1.bf16.msra.mxu0 0
      %2672 = vmatprep.subr.bf16.mxu0 0
      %2673 = vmatpush1.bf16.msra.mxu0 0
      %2674 = vmatprep.subr.bf16.mxu0 0
      %2675 = vmatpush1.bf16.msra.mxu0 0
      %2676 = vmatprep.subr.bf16.mxu0 0
      %2677 = vmatpush1.bf16.msra.mxu0 0
      %2678 = vmatprep.mubr.bf16.mxu0 0
      %2679 = vmatmul.mubr.bf16.gmra.mrb[0].mxu0 %v2644
      %v2680 = vpop.f32.mrb[0].mxu0
      %v2681 = vadd.f32 %v2574, %v2680
      %v2682 = vpop.f32.mrb[0].mxu0
      %v2683 = vpop.f32.mrb[0].mxu0
      %v2684 = vpop.f32.mrb[0].mxu0
      %2685 = vdwg.mxu0
      %v2690 = vunpack.c.l.b16 %v2502
      %v2691 = vunpack.c.l.b16 %v2503
      %v2692 = vunpack.c.l.b16 %v2504
      %v2693 = vunpack.c.l.b16 %v2505
      %v2694 = vpack.c.b16 %v2691, %v2690
      %v2695 = vpack.c.b16 %v2693, %v2692
      %2698 = vmatprep.subr.bf16.mxu0 0
      %2699 = vmatpush1.bf16.msra.mxu0 %v2694
      %2700 = vmatprep.subr.bf16.mxu0 0
      %2701 = vmatpush1.bf16.msra.mxu0 %v2695
      %2702 = vmatprep.subr.bf16.mxu0 0
      %2703 = vmatpush1.bf16.msra.mxu0 0
      %2704 = vmatprep.subr.bf16.mxu0 0
      %2705 = vmatpush1.bf16.msra.mxu0 0
      %2706 = vmatprep.subr.bf16.mxu0 0
      %2707 = vmatpush1.bf16.msra.mxu0 0
      %2708 = vmatprep.subr.bf16.mxu0 0
      %2709 = vmatpush1.bf16.msra.mxu0 0
      %2710 = vmatprep.subr.bf16.mxu0 0
      %2711 = vmatpush1.bf16.msra.mxu0 0
      %2712 = vmatprep.subr.bf16.mxu0 0
      %2713 = vmatpush1.bf16.msra.mxu0 0
      %2714 = vmatprep.subr.bf16.mxu0 0
      %2715 = vmatpush1.bf16.msra.mxu0 0
      %2716 = vmatprep.subr.bf16.mxu0 0
      %2717 = vmatpush1.bf16.msra.mxu0 0
      %2718 = vmatprep.subr.bf16.mxu0 0
      %2719 = vmatpush1.bf16.msra.mxu0 0
      %2720 = vmatprep.subr.bf16.mxu0 0
      %2721 = vmatpush1.bf16.msra.mxu0 0
      %2722 = vmatprep.subr.bf16.mxu0 0
      %2723 = vmatpush1.bf16.msra.mxu0 0
      %2724 = vmatprep.subr.bf16.mxu0 0
      %2725 = vmatpush1.bf16.msra.mxu0 0
      %2726 = vmatprep.subr.bf16.mxu0 0
      %2727 = vmatpush1.bf16.msra.mxu0 0
      %2728 = vmatprep.subr.bf16.mxu0 0
      %2729 = vmatpush1.bf16.msra.mxu0 0
      %2730 = vmatprep.mubr.bf16.mxu0 0
      %2731 = vmatmul.mubr.bf16.gmra.mrb[0].mxu0 %v2644
      %v2732 = vpop.f32.mrb[0].mxu0
      %v2733 = vadd.f32 %v2578, %v2732
      %v2734 = vpop.f32.mrb[0].mxu0
      %v2735 = vpop.f32.mrb[0].mxu0
      %v2736 = vpop.f32.mrb[0].mxu0
      %2737 = vdwg.mxu0
      %v2742 = vunpack.c.l.b16 %v2506
      %v2743 = vunpack.c.l.b16 %v2507
      %v2744 = vunpack.c.l.b16 %v2508
      %v2745 = vunpack.c.l.b16 %v2509
      %v2746 = vpack.c.b16 %v2743, %v2742
      %v2747 = vpack.c.b16 %v2745, %v2744
      %2750 = vmatprep.subr.bf16.mxu0 0
      %2751 = vmatpush1.bf16.msra.mxu0 %v2746
      %2752 = vmatprep.subr.bf16.mxu0 0
      %2753 = vmatpush1.bf16.msra.mxu0 %v2747
      %2754 = vmatprep.subr.bf16.mxu0 0
      %2755 = vmatpush1.bf16.msra.mxu0 0
      %2756 = vmatprep.subr.bf16.mxu0 0
      %2757 = vmatpush1.bf16.msra.mxu0 0
      %2758 = vmatprep.subr.bf16.mxu0 0
      %2759 = vmatpush1.bf16.msra.mxu0 0
      %2760 = vmatprep.subr.bf16.mxu0 0
      %2761 = vmatpush1.bf16.msra.mxu0 0
      %2762 = vmatprep.subr.bf16.mxu0 0
      %2763 = vmatpush1.bf16.msra.mxu0 0
      %2764 = vmatprep.subr.bf16.mxu0 0
      %2765 = vmatpush1.bf16.msra.mxu0 0
      %2766 = vmatprep.subr.bf16.mxu0 0
      %2767 = vmatpush1.bf16.msra.mxu0 0
      %2768 = vmatprep.subr.bf16.mxu0 0
      %2769 = vmatpush1.bf16.msra.mxu0 0
      %2770 = vmatprep.subr.bf16.mxu0 0
      %2771 = vmatpush1.bf16.msra.mxu0 0
      %2772 = vmatprep.subr.bf16.mxu0 0
      %2773 = vmatpush1.bf16.msra.mxu0 0
      %2774 = vmatprep.subr.bf16.mxu0 0
      %2775 = vmatpush1.bf16.msra.mxu0 0
      %2776 = vmatprep.subr.bf16.mxu0 0
      %2777 = vmatpush1.bf16.msra.mxu0 0
      %2778 = vmatprep.subr.bf16.mxu0 0
      %2779 = vmatpush1.bf16.msra.mxu0 0
      %2780 = vmatprep.subr.bf16.mxu0 0
      %2781 = vmatpush1.bf16.msra.mxu0 0
      %2782 = vmatprep.mubr.bf16.mxu0 0
      %2783 = vmatmul.mubr.bf16.gmra.mrb[0].mxu0 %v2644
      %v2784 = vpop.f32.mrb[0].mxu0
      %v2785 = vadd.f32 %v2582, %v2784
      %v2786 = vpop.f32.mrb[0].mxu0
      %v2787 = vpop.f32.mrb[0].mxu0
      %v2788 = vpop.f32.mrb[0].mxu0
      %2789 = vdwg.mxu0
      %v2794 = vunpack.c.l.b16 %v2510
      %v2795 = vunpack.c.l.b16 %v2511
      %v2796 = vunpack.c.l.b16 %v2512
      %v2797 = vunpack.c.l.b16 %v2513
      %v2798 = vpack.c.b16 %v2795, %v2794
      %v2799 = vpack.c.b16 %v2797, %v2796
      %2802 = vmatprep.subr.bf16.mxu0 0
      %2803 = vmatpush1.bf16.msra.mxu0 %v2798
      %2804 = vmatprep.subr.bf16.mxu0 0
      %2805 = vmatpush1.bf16.msra.mxu0 %v2799
      %2806 = vmatprep.subr.bf16.mxu0 0
      %2807 = vmatpush1.bf16.msra.mxu0 0
      %2808 = vmatprep.subr.bf16.mxu0 0
      %2809 = vmatpush1.bf16.msra.mxu0 0
      %2810 = vmatprep.subr.bf16.mxu0 0
      %2811 = vmatpush1.bf16.msra.mxu0 0
      %2812 = vmatprep.subr.bf16.mxu0 0
      %2813 = vmatpush1.bf16.msra.mxu0 0
      %2814 = vmatprep.subr.bf16.mxu0 0
      %2815 = vmatpush1.bf16.msra.mxu0 0
      %2816 = vmatprep.subr.bf16.mxu0 0
      %2817 = vmatpush1.bf16.msra.mxu0 0
      %2818 = vmatprep.subr.bf16.mxu0 0
      %2819 = vmatpush1.bf16.msra.mxu0 0
      %2820 = vmatprep.subr.bf16.mxu0 0
      %2821 = vmatpush1.bf16.msra.mxu0 0
      %2822 = vmatprep.subr.bf16.mxu0 0
      %2823 = vmatpush1.bf16.msra.mxu0 0
      %2824 = vmatprep.subr.bf16.mxu0 0
      %2825 = vmatpush1.bf16.msra.mxu0 0
      %2826 = vmatprep.subr.bf16.mxu0 0
      %2827 = vmatpush1.bf16.msra.mxu0 0
      %2828 = vmatprep.subr.bf16.mxu0 0
      %2829 = vmatpush1.bf16.msra.mxu0 0
      %2830 = vmatprep.subr.bf16.mxu0 0
      %2831 = vmatpush1.bf16.msra.mxu0 0
      %2832 = vmatprep.subr.bf16.mxu0 0
      %2833 = vmatpush1.bf16.msra.mxu0 0
      %2834 = vmatprep.mubr.bf16.mxu0 0
      %2835 = vmatmul.mubr.bf16.gmra.mrb[0].mxu0 %v2644
      %v2836 = vpop.f32.mrb[0].mxu0
      %v2837 = vadd.f32 %v2586, %v2836
      %v2838 = vpop.f32.mrb[0].mxu0
      %v2839 = vpop.f32.mrb[0].mxu0
      %v2840 = vpop.f32.mrb[0].mxu0
      %2841 = vdwg.mxu0
      %v2846 = vunpack.c.l.b16 %v2514
      %v2847 = vunpack.c.l.b16 %v2515
      %v2848 = vunpack.c.l.b16 %v2516
      %v2849 = vunpack.c.l.b16 %v2517
      %v2850 = vpack.c.b16 %v2847, %v2846
      %v2851 = vpack.c.b16 %v2849, %v2848
      %2854 = vmatprep.subr.bf16.mxu0 0
      %2855 = vmatpush1.bf16.msra.mxu0 %v2850
      %2856 = vmatprep.subr.bf16.mxu0 0
      %2857 = vmatpush1.bf16.msra.mxu0 %v2851
      %2858 = vmatprep.subr.bf16.mxu0 0
      %2859 = vmatpush1.bf16.msra.mxu0 0
      %2860 = vmatprep.subr.bf16.mxu0 0
      %2861 = vmatpush1.bf16.msra.mxu0 0
      %2862 = vmatprep.subr.bf16.mxu0 0
      %2863 = vmatpush1.bf16.msra.mxu0 0
      %2864 = vmatprep.subr.bf16.mxu0 0
      %2865 = vmatpush1.bf16.msra.mxu0 0
      %2866 = vmatprep.subr.bf16.mxu0 0
      %2867 = vmatpush1.bf16.msra.mxu0 0
      %2868 = vmatprep.subr.bf16.mxu0 0
      %2869 = vmatpush1.bf16.msra.mxu0 0
      %2870 = vmatprep.subr.bf16.mxu0 0
      %2871 = vmatpush1.bf16.msra.mxu0 0
      %2872 = vmatprep.subr.bf16.mxu0 0
      %2873 = vmatpush1.bf16.msra.mxu0 0
      %2874 = vmatprep.subr.bf16.mxu0 0
      %2875 = vmatpush1.bf16.msra.mxu0 0
      %2876 = vmatprep.subr.bf16.mxu0 0
      %2877 = vmatpush1.bf16.msra.mxu0 0
      %2878 = vmatprep.subr.bf16.mxu0 0
      %2879 = vmatpush1.bf16.msra.mxu0 0
      %2880 = vmatprep.subr.bf16.mxu0 0
      %2881 = vmatpush1.bf16.msra.mxu0 0
      %2882 = vmatprep.subr.bf16.mxu0 0
      %2883 = vmatpush1.bf16.msra.mxu0 0
      %2884 = vmatprep.subr.bf16.mxu0 0
      %2885 = vmatpush1.bf16.msra.mxu0 0
      %2886 = vmatprep.mubr.bf16.mxu0 0
      %2887 = vmatmul.mubr.bf16.gmra.mrb[0].mxu0 %v2644
      %v2888 = vpop.f32.mrb[0].mxu0
      %v2889 = vadd.f32 %v2590, %v2888
      %v2890 = vpop.f32.mrb[0].mxu0
      %v2891 = vpop.f32.mrb[0].mxu0
      %v2892 = vpop.f32.mrb[0].mxu0
      %2893 = vdwg.mxu0
      %v2898 = vunpack.c.l.b16 %v2518
      %v2899 = vunpack.c.l.b16 %v2519
      %v2900 = vunpack.c.l.b16 %v2520
      %v2901 = vunpack.c.l.b16 %v2521
      %v2902 = vpack.c.b16 %v2899, %v2898
      %v2903 = vpack.c.b16 %v2901, %v2900
      %2906 = vmatprep.subr.bf16.mxu0 0
      %2907 = vmatpush1.bf16.msra.mxu0 %v2902
      %2908 = vmatprep.subr.bf16.mxu0 0
      %2909 = vmatpush1.bf16.msra.mxu0 %v2903
      %2910 = vmatprep.subr.bf16.mxu0 0
      %2911 = vmatpush1.bf16.msra.mxu0 0
      %2912 = vmatprep.subr.bf16.mxu0 0
      %2913 = vmatpush1.bf16.msra.mxu0 0
      %2914 = vmatprep.subr.bf16.mxu0 0
      %2915 = vmatpush1.bf16.msra.mxu0 0
      %2916 = vmatprep.subr.bf16.mxu0 0
      %2917 = vmatpush1.bf16.msra.mxu0 0
      %2918 = vmatprep.subr.bf16.mxu0 0
      %2919 = vmatpush1.bf16.msra.mxu0 0
      %2920 = vmatprep.subr.bf16.mxu0 0
      %2921 = vmatpush1.bf16.msra.mxu0 0
      %2922 = vmatprep.subr.bf16.mxu0 0
      %2923 = vmatpush1.bf16.msra.mxu0 0
      %2924 = vmatprep.subr.bf16.mxu0 0
      %2925 = vmatpush1.bf16.msra.mxu0 0
      %2926 = vmatprep.subr.bf16.mxu0 0
      %2927 = vmatpush1.bf16.msra.mxu0 0
      %2928 = vmatprep.subr.bf16.mxu0 0
      %2929 = vmatpush1.bf16.msra.mxu0 0
      %2930 = vmatprep.subr.bf16.mxu0 0
      %2931 = vmatpush1.bf16.msra.mxu0 0
      %2932 = vmatprep.subr.bf16.mxu0 0
      %2933 = vmatpush1.bf16.msra.mxu0 0
      %2934 = vmatprep.subr.bf16.mxu0 0
      %2935 = vmatpush1.bf16.msra.mxu0 0
      %2936 = vmatprep.subr.bf16.mxu0 0
      %2937 = vmatpush1.bf16.msra.mxu0 0
      %2938 = vmatprep.mubr.bf16.mxu0 0
      %2939 = vmatmul.mubr.bf16.gmra.mrb[0].mxu0 %v2644
      %v2940 = vpop.f32.mrb[0].mxu0
      %v2941 = vadd.f32 %v2594, %v2940
      %v2942 = vpop.f32.mrb[0].mxu0
      %v2943 = vpop.f32.mrb[0].mxu0
      %v2944 = vpop.f32.mrb[0].mxu0
      %2945 = vdwg.mxu0
      %v2950 = vunpack.c.l.b16 %v2522
      %v2951 = vunpack.c.l.b16 %v2523
      %v2952 = vunpack.c.l.b16 %v2524
      %v2953 = vunpack.c.l.b16 %v2525
      %v2954 = vpack.c.b16 %v2951, %v2950
      %v2955 = vpack.c.b16 %v2953, %v2952
      %2958 = vmatprep.subr.bf16.mxu0 0
      %2959 = vmatpush1.bf16.msra.mxu0 %v2954
      %2960 = vmatprep.subr.bf16.mxu0 0
      %2961 = vmatpush1.bf16.msra.mxu0 %v2955
      %2962 = vmatprep.subr.bf16.mxu0 0
      %2963 = vmatpush1.bf16.msra.mxu0 0
      %2964 = vmatprep.subr.bf16.mxu0 0
      %2965 = vmatpush1.bf16.msra.mxu0 0
      %2966 = vmatprep.subr.bf16.mxu0 0
      %2967 = vmatpush1.bf16.msra.mxu0 0
      %2968 = vmatprep.subr.bf16.mxu0 0
      %2969 = vmatpush1.bf16.msra.mxu0 0
      %2970 = vmatprep.subr.bf16.mxu0 0
      %2971 = vmatpush1.bf16.msra.mxu0 0
      %2972 = vmatprep.subr.bf16.mxu0 0
      %2973 = vmatpush1.bf16.msra.mxu0 0
      %2974 = vmatprep.subr.bf16.mxu0 0
      %2975 = vmatpush1.bf16.msra.mxu0 0
      %2976 = vmatprep.subr.bf16.mxu0 0
      %2977 = vmatpush1.bf16.msra.mxu0 0
      %2978 = vmatprep.subr.bf16.mxu0 0
      %2979 = vmatpush1.bf16.msra.mxu0 0
      %2980 = vmatprep.subr.bf16.mxu0 0
      %2981 = vmatpush1.bf16.msra.mxu0 0
      %2982 = vmatprep.subr.bf16.mxu0 0
      %2983 = vmatpush1.bf16.msra.mxu0 0
      %2984 = vmatprep.subr.bf16.mxu0 0
      %2985 = vmatpush1.bf16.msra.mxu0 0
      %2986 = vmatprep.subr.bf16.mxu0 0
      %2987 = vmatpush1.bf16.msra.mxu0 0
      %2988 = vmatprep.subr.bf16.mxu0 0
      %2989 = vmatpush1.bf16.msra.mxu0 0
      %2990 = vmatprep.mubr.bf16.mxu0 0
      %2991 = vmatmul.mubr.bf16.gmra.mrb[0].mxu0 %v2644
      %v2992 = vpop.f32.mrb[0].mxu0
      %v2993 = vadd.f32 %v2598, %v2992
      %v2994 = vpop.f32.mrb[0].mxu0
      %v2995 = vpop.f32.mrb[0].mxu0
      %v2996 = vpop.f32.mrb[0].mxu0
      %2997 = vdwg.mxu0
      %v3002 = vunpack.c.l.b16 %v2526
      %v3003 = vunpack.c.l.b16 %v2527
      %v3004 = vunpack.c.l.b16 %v2528
      %v3005 = vunpack.c.l.b16 %v2529
      %v3006 = vpack.c.b16 %v3003, %v3002
      %v3007 = vpack.c.b16 %v3005, %v3004
      %3010 = vmatprep.subr.bf16.mxu0 0
      %3011 = vmatpush1.bf16.msra.mxu0 %v3006
      %3012 = vmatprep.subr.bf16.mxu0 0
      %3013 = vmatpush1.bf16.msra.mxu0 %v3007
      %3014 = vmatprep.subr.bf16.mxu0 0
      %3015 = vmatpush1.bf16.msra.mxu0 0
      %3016 = vmatprep.subr.bf16.mxu0 0
      %3017 = vmatpush1.bf16.msra.mxu0 0
      %3018 = vmatprep.subr.bf16.mxu0 0
      %3019 = vmatpush1.bf16.msra.mxu0 0
      %3020 = vmatprep.subr.bf16.mxu0 0
      %3021 = vmatpush1.bf16.msra.mxu0 0
      %3022 = vmatprep.subr.bf16.mxu0 0
      %3023 = vmatpush1.bf16.msra.mxu0 0
      %3024 = vmatprep.subr.bf16.mxu0 0
      %3025 = vmatpush1.bf16.msra.mxu0 0
      %3026 = vmatprep.subr.bf16.mxu0 0
      %3027 = vmatpush1.bf16.msra.mxu0 0
      %3028 = vmatprep.subr.bf16.mxu0 0
      %3029 = vmatpush1.bf16.msra.mxu0 0
      %3030 = vmatprep.subr.bf16.mxu0 0
      %3031 = vmatpush1.bf16.msra.mxu0 0
      %3032 = vmatprep.subr.bf16.mxu0 0
      %3033 = vmatpush1.bf16.msra.mxu0 0
      %3034 = vmatprep.subr.bf16.mxu0 0
      %3035 = vmatpush1.bf16.msra.mxu0 0
      %3036 = vmatprep.subr.bf16.mxu0 0
      %3037 = vmatpush1.bf16.msra.mxu0 0
      %3038 = vmatprep.subr.bf16.mxu0 0
      %3039 = vmatpush1.bf16.msra.mxu0 0
      %3040 = vmatprep.subr.bf16.mxu0 0
      %3041 = vmatpush1.bf16.msra.mxu0 0
      %3042 = vmatprep.mubr.bf16.mxu0 0
      %3043 = vmatmul.mubr.bf16.gmra.mrb[0].mxu0 %v2644
      %v3044 = vpop.f32.mrb[0].mxu0
      %v3045 = vadd.f32 %v2602, %v3044
      %v3046 = vpop.f32.mrb[0].mxu0
      %v3047 = vpop.f32.mrb[0].mxu0
      %v3048 = vpop.f32.mrb[0].mxu0
      %3049 = vdwg.mxu0
      %v3054 = vunpack.c.l.b16 %v2530
      %v3055 = vunpack.c.l.b16 %v2531
      %v3056 = vunpack.c.l.b16 %v2532
      %v3057 = vunpack.c.l.b16 %v2533
      %v3058 = vpack.c.b16 %v3055, %v3054
      %v3059 = vpack.c.b16 %v3057, %v3056
      %3062 = vmatprep.subr.bf16.mxu0 0
      %3063 = vmatpush1.bf16.msra.mxu0 %v3058
      %3064 = vmatprep.subr.bf16.mxu0 0
      %3065 = vmatpush1.bf16.msra.mxu0 %v3059
      %3066 = vmatprep.subr.bf16.mxu0 0
      %3067 = vmatpush1.bf16.msra.mxu0 0
      %3068 = vmatprep.subr.bf16.mxu0 0
      %3069 = vmatpush1.bf16.msra.mxu0 0
      %3070 = vmatprep.subr.bf16.mxu0 0
      %3071 = vmatpush1.bf16.msra.mxu0 0
      %3072 = vmatprep.subr.bf16.mxu0 0
      %3073 = vmatpush1.bf16.msra.mxu0 0
      %3074 = vmatprep.subr.bf16.mxu0 0
      %3075 = vmatpush1.bf16.msra.mxu0 0
      %3076 = vmatprep.subr.bf16.mxu0 0
      %3077 = vmatpush1.bf16.msra.mxu0 0
      %3078 = vmatprep.subr.bf16.mxu0 0
      %3079 = vmatpush1.bf16.msra.mxu0 0
      %3080 = vmatprep.subr.bf16.mxu0 0
      %3081 = vmatpush1.bf16.msra.mxu0 0
      %3082 = vmatprep.subr.bf16.mxu0 0
      %3083 = vmatpush1.bf16.msra.mxu0 0
      %3084 = vmatprep.subr.bf16.mxu0 0
      %3085 = vmatpush1.bf16.msra.mxu0 0
      %3086 = vmatprep.subr.bf16.mxu0 0
      %3087 = vmatpush1.bf16.msra.mxu0 0
      %3088 = vmatprep.subr.bf16.mxu0 0
      %3089 = vmatpush1.bf16.msra.mxu0 0
      %3090 = vmatprep.subr.bf16.mxu0 0
      %3091 = vmatpush1.bf16.msra.mxu0 0
      %3092 = vmatprep.subr.bf16.mxu0 0
      %3093 = vmatpush1.bf16.msra.mxu0 0
      %3094 = vmatprep.mubr.bf16.mxu0 0
      %3095 = vmatmul.mubr.bf16.gmra.mrb[0].mxu0 %v2644
      %v3096 = vpop.f32.mrb[0].mxu0
      %v3097 = vadd.f32 %v2606, %v3096
      %v3098 = vpop.f32.mrb[0].mxu0
      %v3099 = vpop.f32.mrb[0].mxu0
      %v3100 = vpop.f32.mrb[0].mxu0
      %3101 = vdwg.mxu0
      %v3106 = vunpack.c.l.b16 %v2534
      %v3107 = vunpack.c.l.b16 %v2535
      %v3108 = vunpack.c.l.b16 %v2536
      %v3109 = vunpack.c.l.b16 %v2537
      %v3110 = vpack.c.b16 %v3107, %v3106
      %v3111 = vpack.c.b16 %v3109, %v3108
      %3114 = vmatprep.subr.bf16.mxu0 0
      %3115 = vmatpush1.bf16.msra.mxu0 %v3110
      %3116 = vmatprep.subr.bf16.mxu0 0
      %3117 = vmatpush1.bf16.msra.mxu0 %v3111
      %3118 = vmatprep.subr.bf16.mxu0 0
      %3119 = vmatpush1.bf16.msra.mxu0 0
      %3120 = vmatprep.subr.bf16.mxu0 0
      %3121 = vmatpush1.bf16.msra.mxu0 0
      %3122 = vmatprep.subr.bf16.mxu0 0
      %3123 = vmatpush1.bf16.msra.mxu0 0
      %3124 = vmatprep.subr.bf16.mxu0 0
      %3125 = vmatpush1.bf16.msra.mxu0 0
      %3126 = vmatprep.subr.bf16.mxu0 0
      %3127 = vmatpush1.bf16.msra.mxu0 0
      %3128 = vmatprep.subr.bf16.mxu0 0
      %3129 = vmatpush1.bf16.msra.mxu0 0
      %3130 = vmatprep.subr.bf16.mxu0 0
      %3131 = vmatpush1.bf16.msra.mxu0 0
      %3132 = vmatprep.subr.bf16.mxu0 0
      %3133 = vmatpush1.bf16.msra.mxu0 0
      %3134 = vmatprep.subr.bf16.mxu0 0
      %3135 = vmatpush1.bf16.msra.mxu0 0
      %3136 = vmatprep.subr.bf16.mxu0 0
      %3137 = vmatpush1.bf16.msra.mxu0 0
      %3138 = vmatprep.subr.bf16.mxu0 0
      %3139 = vmatpush1.bf16.msra.mxu0 0
      %3140 = vmatprep.subr.bf16.mxu0 0
      %3141 = vmatpush1.bf16.msra.mxu0 0
      %3142 = vmatprep.subr.bf16.mxu0 0
      %3143 = vmatpush1.bf16.msra.mxu0 0
      %3144 = vmatprep.subr.bf16.mxu0 0
      %3145 = vmatpush1.bf16.msra.mxu0 0
      %3146 = vmatprep.mubr.bf16.mxu0 0
      %3147 = vmatmul.mubr.bf16.gmra.mrb[0].mxu0 %v2644
      %v3148 = vpop.f32.mrb[0].mxu0
      %v3149 = vadd.f32 %v2610, %v3148
      %v3150 = vpop.f32.mrb[0].mxu0
      %v3151 = vpop.f32.mrb[0].mxu0
      %v3152 = vpop.f32.mrb[0].mxu0
      %3153 = vdwg.mxu0
      %v3158 = vunpack.c.l.b16 %v2538
      %v3159 = vunpack.c.l.b16 %v2539
      %v3160 = vunpack.c.l.b16 %v2540
      %v3161 = vunpack.c.l.b16 %v2541
      %v3162 = vpack.c.b16 %v3159, %v3158
      %v3163 = vpack.c.b16 %v3161, %v3160
      %3166 = vmatprep.subr.bf16.mxu0 0
      %3167 = vmatpush1.bf16.msra.mxu0 %v3162
      %3168 = vmatprep.subr.bf16.mxu0 0
      %3169 = vmatpush1.bf16.msra.mxu0 %v3163
      %3170 = vmatprep.subr.bf16.mxu0 0
      %3171 = vmatpush1.bf16.msra.mxu0 0
      %3172 = vmatprep.subr.bf16.mxu0 0
      %3173 = vmatpush1.bf16.msra.mxu0 0
      %3174 = vmatprep.subr.bf16.mxu0 0
      %3175 = vmatpush1.bf16.msra.mxu0 0
      %3176 = vmatprep.subr.bf16.mxu0 0
      %3177 = vmatpush1.bf16.msra.mxu0 0
      %3178 = vmatprep.subr.bf16.mxu0 0
      %3179 = vmatpush1.bf16.msra.mxu0 0
      %3180 = vmatprep.subr.bf16.mxu0 0
      %3181 = vmatpush1.bf16.msra.mxu0 0
      %3182 = vmatprep.subr.bf16.mxu0 0
      %3183 = vmatpush1.bf16.msra.mxu0 0
      %3184 = vmatprep.subr.bf16.mxu0 0
      %3185 = vmatpush1.bf16.msra.mxu0 0
      %3186 = vmatprep.subr.bf16.mxu0 0
      %3187 = vmatpush1.bf16.msra.mxu0 0
      %3188 = vmatprep.subr.bf16.mxu0 0
      %3189 = vmatpush1.bf16.msra.mxu0 0
      %3190 = vmatprep.subr.bf16.mxu0 0
      %3191 = vmatpush1.bf16.msra.mxu0 0
      %3192 = vmatprep.subr.bf16.mxu0 0
      %3193 = vmatpush1.bf16.msra.mxu0 0
      %3194 = vmatprep.subr.bf16.mxu0 0
      %3195 = vmatpush1.bf16.msra.mxu0 0
      %3196 = vmatprep.subr.bf16.mxu0 0
      %3197 = vmatpush1.bf16.msra.mxu0 0
      %3198 = vmatprep.mubr.bf16.mxu0 0
      %3199 = vmatmul.mubr.bf16.gmra.mrb[0].mxu0 %v2644
      %v3200 = vpop.f32.mrb[0].mxu0
      %v3201 = vadd.f32 %v2614, %v3200
      %v3202 = vpop.f32.mrb[0].mxu0
      %v3203 = vpop.f32.mrb[0].mxu0
      %v3204 = vpop.f32.mrb[0].mxu0
      %3205 = vdwg.mxu0
      %v3210 = vunpack.c.l.b16 %v2542
      %v3211 = vunpack.c.l.b16 %v2543
      %v3212 = vunpack.c.l.b16 %v2544
      %v3213 = vunpack.c.l.b16 %v2545
      %v3214 = vpack.c.b16 %v3211, %v3210
      %v3215 = vpack.c.b16 %v3213, %v3212
      %3218 = vmatprep.subr.bf16.mxu0 0
      %3219 = vmatpush1.bf16.msra.mxu0 %v3214
      %3220 = vmatprep.subr.bf16.mxu0 0
      %3221 = vmatpush1.bf16.msra.mxu0 %v3215
      %3222 = vmatprep.subr.bf16.mxu0 0
      %3223 = vmatpush1.bf16.msra.mxu0 0
      %3224 = vmatprep.subr.bf16.mxu0 0
      %3225 = vmatpush1.bf16.msra.mxu0 0
      %3226 = vmatprep.subr.bf16.mxu0 0
      %3227 = vmatpush1.bf16.msra.mxu0 0
      %3228 = vmatprep.subr.bf16.mxu0 0
      %3229 = vmatpush1.bf16.msra.mxu0 0
      %3230 = vmatprep.subr.bf16.mxu0 0
      %3231 = vmatpush1.bf16.msra.mxu0 0
      %3232 = vmatprep.subr.bf16.mxu0 0
      %3233 = vmatpush1.bf16.msra.mxu0 0
      %3234 = vmatprep.subr.bf16.mxu0 0
      %3235 = vmatpush1.bf16.msra.mxu0 0
      %3236 = vmatprep.subr.bf16.mxu0 0
      %3237 = vmatpush1.bf16.msra.mxu0 0
      %3238 = vmatprep.subr.bf16.mxu0 0
      %3239 = vmatpush1.bf16.msra.mxu0 0
      %3240 = vmatprep.subr.bf16.mxu0 0
      %3241 = vmatpush1.bf16.msra.mxu0 0
      %3242 = vmatprep.subr.bf16.mxu0 0
      %3243 = vmatpush1.bf16.msra.mxu0 0
      %3244 = vmatprep.subr.bf16.mxu0 0
      %3245 = vmatpush1.bf16.msra.mxu0 0
      %3246 = vmatprep.subr.bf16.mxu0 0
      %3247 = vmatpush1.bf16.msra.mxu0 0
      %3248 = vmatprep.subr.bf16.mxu0 0
      %3249 = vmatpush1.bf16.msra.mxu0 0
      %3250 = vmatprep.mubr.bf16.mxu0 0
      %3251 = vmatmul.mubr.bf16.gmra.mrb[0].mxu0 %v2644
      %v3252 = vpop.f32.mrb[0].mxu0
      %v3253 = vadd.f32 %v2618, %v3252
      %v3254 = vpop.f32.mrb[0].mxu0
      %v3255 = vpop.f32.mrb[0].mxu0
      %v3256 = vpop.f32.mrb[0].mxu0
      %3257 = vdwg.mxu0
      %v3258 = vpack.c.bf16 %v2681, %v2681
      %v3259 = vpack.c.bf16 %v2733, %v2733
      %v3260 = vpack.c.bf16 %v2785, %v2785
      %v3261 = vpack.c.bf16 %v2837, %v2837
      %v3262 = vpack.c.bf16 %v2889, %v2889
      %v3263 = vpack.c.bf16 %v2941, %v2941
      %v3264 = vpack.c.bf16 %v2993, %v2993
      %v3265 = vpack.c.bf16 %v3045, %v3045
      %v3266 = vpack.c.bf16 %v3097, %v3097
      %v3267 = vpack.c.bf16 %v3149, %v3149
      %v3268 = vpack.c.bf16 %v3201, %v3201
      %v3269 = vpack.c.bf16 %v3253, %v3253
      %v3271 = vsel %vm1238, %v3258, 0
      %v3274 = vsel %vm1238, %v3262, 0
      %3276 = vmatprep.subr.bf16.mxu0 0
      %3277 = vmatpush1.bf16.xpose.msra.mxu0 %v3274
      %3278 = vmatprep.subr.bf16.mxu0 0
      %3279 = vmatpush1.bf16.xpose.msra.mxu0 0
      %3280 = vmatprep.subr.bf16.mxu0 0
      %3281 = vmatpush1.bf16.xpose.msra.mxu0 0
      %3282 = vmatprep.subr.bf16.mxu0 0
      %3283 = vmatpush1.bf16.xpose.msra.mxu0 0
      %3284 = vmatprep.subr.bf16.mxu0 0
      %3285 = vmatpush1.bf16.xpose.msra.mxu0 0
      %3286 = vmatprep.subr.bf16.mxu0 0
      %3287 = vmatpush1.bf16.xpose.msra.mxu0 0
      %3288 = vmatprep.subr.bf16.mxu0 0
      %3289 = vmatpush1.bf16.xpose.msra.mxu0 0
      %3290 = vmatprep.subr.bf16.mxu0 0
      %3291 = vmatpush1.bf16.xpose.msra.mxu0 0
      %3292 = vmatprep.subr.bf16.mxu0 0
      %3293 = vmatpush1.bf16.xpose.msra.mxu0 0
      %3294 = vmatprep.subr.bf16.mxu0 0
      %3295 = vmatpush1.bf16.xpose.msra.mxu0 0
      %3296 = vmatprep.subr.bf16.mxu0 0
      %3297 = vmatpush1.bf16.xpose.msra.mxu0 0
      %3298 = vmatprep.subr.bf16.mxu0 0
      %3299 = vmatpush1.bf16.xpose.msra.mxu0 0
      %3300 = vmatprep.subr.bf16.mxu0 0
      %3301 = vmatpush1.bf16.xpose.msra.mxu0 0
      %3302 = vmatprep.subr.bf16.mxu0 0
      %3303 = vmatpush1.bf16.xpose.msra.mxu0 0
      %3304 = vmatprep.subr.bf16.mxu0 0
      %3305 = vmatpush1.bf16.xpose.msra.mxu0 0
      %3306 = vmatprep.subr.bf16.mxu0 0
      %3307 = vmatpush1.bf16.xpose.msra.mxu0 0
      %3308 = vmatprep.mubr.bf16.mxu0 0
      %3309 = vmatmul.mubr.bf16.gmra.mrb[0].mxu0 %v3271
      %v3310 = vpop.f32.mrb[0].mxu0
      %v3311 = vadd.f32 0.0, %v3310
      %v3312 = vpop.f32.mrb[0].mxu0
      %v3313 = vpop.f32.mrb[0].mxu0
      %v3314 = vpop.f32.mrb[0].mxu0
      %3315 = vdwg.mxu0
      %v3317 = vsel %vm1238, %v3259, 0
      %v3320 = vsel %vm1238, %v3263, 0
      %3322 = vmatprep.subr.bf16.mxu0 0
      %3323 = vmatpush1.bf16.xpose.msra.mxu0 %v3320
      %3324 = vmatprep.subr.bf16.mxu0 0
      %3325 = vmatpush1.bf16.xpose.msra.mxu0 0
      %3326 = vmatprep.subr.bf16.mxu0 0
      %3327 = vmatpush1.bf16.xpose.msra.mxu0 0
      %3328 = vmatprep.subr.bf16.mxu0 0
      %3329 = vmatpush1.bf16.xpose.msra.mxu0 0
      %3330 = vmatprep.subr.bf16.mxu0 0
      %3331 = vmatpush1.bf16.xpose.msra.mxu0 0
      %3332 = vmatprep.subr.bf16.mxu0 0
      %3333 = vmatpush1.bf16.xpose.msra.mxu0 0
      %3334 = vmatprep.subr.bf16.mxu0 0
      %3335 = vmatpush1.bf16.xpose.msra.mxu0 0
      %3336 = vmatprep.subr.bf16.mxu0 0
      %3337 = vmatpush1.bf16.xpose.msra.mxu0 0
      %3338 = vmatprep.subr.bf16.mxu0 0
      %3339 = vmatpush1.bf16.xpose.msra.mxu0 0
      %3340 = vmatprep.subr.bf16.mxu0 0
      %3341 = vmatpush1.bf16.xpose.msra.mxu0 0
      %3342 = vmatprep.subr.bf16.mxu0 0
      %3343 = vmatpush1.bf16.xpose.msra.mxu0 0
      %3344 = vmatprep.subr.bf16.mxu0 0
      %3345 = vmatpush1.bf16.xpose.msra.mxu0 0
      %3346 = vmatprep.subr.bf16.mxu0 0
      %3347 = vmatpush1.bf16.xpose.msra.mxu0 0
      %3348 = vmatprep.subr.bf16.mxu0 0
      %3349 = vmatpush1.bf16.xpose.msra.mxu0 0
      %3350 = vmatprep.subr.bf16.mxu0 0
      %3351 = vmatpush1.bf16.xpose.msra.mxu0 0
      %3352 = vmatprep.subr.bf16.mxu0 0
      %3353 = vmatpush1.bf16.xpose.msra.mxu0 0
      %3354 = vmatprep.mubr.bf16.mxu0 0
      %3355 = vmatmul.mubr.bf16.gmra.mrb[0].mxu0 %v3317
      %v3356 = vpop.f32.mrb[0].mxu0
      %v3357 = vadd.f32 0.0, %v3356
      %v3358 = vpop.f32.mrb[0].mxu0
      %v3359 = vpop.f32.mrb[0].mxu0
      %v3360 = vpop.f32.mrb[0].mxu0
      %3361 = vdwg.mxu0
      %v3363 = vsel %vm1238, %v3260, 0
      %v3366 = vsel %vm1238, %v3264, 0
      %3368 = vmatprep.subr.bf16.mxu0 0
      %3369 = vmatpush1.bf16.xpose.msra.mxu0 %v3366
      %3370 = vmatprep.subr.bf16.mxu0 0
      %3371 = vmatpush1.bf16.xpose.msra.mxu0 0
      %3372 = vmatprep.subr.bf16.mxu0 0
      %3373 = vmatpush1.bf16.xpose.msra.mxu0 0
      %3374 = vmatprep.subr.bf16.mxu0 0
      %3375 = vmatpush1.bf16.xpose.msra.mxu0 0
      %3376 = vmatprep.subr.bf16.mxu0 0
      %3377 = vmatpush1.bf16.xpose.msra.mxu0 0
      %3378 = vmatprep.subr.bf16.mxu0 0
      %3379 = vmatpush1.bf16.xpose.msra.mxu0 0
      %3380 = vmatprep.subr.bf16.mxu0 0
      %3381 = vmatpush1.bf16.xpose.msra.mxu0 0
      %3382 = vmatprep.subr.bf16.mxu0 0
      %3383 = vmatpush1.bf16.xpose.msra.mxu0 0
      %3384 = vmatprep.subr.bf16.mxu0 0
      %3385 = vmatpush1.bf16.xpose.msra.mxu0 0
      %3386 = vmatprep.subr.bf16.mxu0 0
      %3387 = vmatpush1.bf16.xpose.msra.mxu0 0
      %3388 = vmatprep.subr.bf16.mxu0 0
      %3389 = vmatpush1.bf16.xpose.msra.mxu0 0
      %3390 = vmatprep.subr.bf16.mxu0 0
      %3391 = vmatpush1.bf16.xpose.msra.mxu0 0
      %3392 = vmatprep.subr.bf16.mxu0 0
      %3393 = vmatpush1.bf16.xpose.msra.mxu0 0
      %3394 = vmatprep.subr.bf16.mxu0 0
      %3395 = vmatpush1.bf16.xpose.msra.mxu0 0
      %3396 = vmatprep.subr.bf16.mxu0 0
      %3397 = vmatpush1.bf16.xpose.msra.mxu0 0
      %3398 = vmatprep.subr.bf16.mxu0 0
      %3399 = vmatpush1.bf16.xpose.msra.mxu0 0
      %3400 = vmatprep.mubr.bf16.mxu0 0
      %3401 = vmatmul.mubr.bf16.gmra.mrb[0].mxu0 %v3363
      %v3402 = vpop.f32.mrb[0].mxu0
      %v3403 = vadd.f32 0.0, %v3402
      %v3404 = vpop.f32.mrb[0].mxu0
      %v3405 = vpop.f32.mrb[0].mxu0
      %v3406 = vpop.f32.mrb[0].mxu0
      %3407 = vdwg.mxu0
      %v3409 = vsel %vm1238, %v3261, 0
      %v3412 = vsel %vm1238, %v3265, 0
      %3414 = vmatprep.subr.bf16.mxu0 0
      %3415 = vmatpush1.bf16.xpose.msra.mxu0 %v3412
      %3416 = vmatprep.subr.bf16.mxu0 0
      %3417 = vmatpush1.bf16.xpose.msra.mxu0 0
      %3418 = vmatprep.subr.bf16.mxu0 0
      %3419 = vmatpush1.bf16.xpose.msra.mxu0 0
      %3420 = vmatprep.subr.bf16.mxu0 0
      %3421 = vmatpush1.bf16.xpose.msra.mxu0 0
      %3422 = vmatprep.subr.bf16.mxu0 0
      %3423 = vmatpush1.bf16.xpose.msra.mxu0 0
      %3424 = vmatprep.subr.bf16.mxu0 0
      %3425 = vmatpush1.bf16.xpose.msra.mxu0 0
      %3426 = vmatprep.subr.bf16.mxu0 0
      %3427 = vmatpush1.bf16.xpose.msra.mxu0 0
      %3428 = vmatprep.subr.bf16.mxu0 0
      %3429 = vmatpush1.bf16.xpose.msra.mxu0 0
      %3430 = vmatprep.subr.bf16.mxu0 0
      %3431 = vmatpush1.bf16.xpose.msra.mxu0 0
      %3432 = vmatprep.subr.bf16.mxu0 0
      %3433 = vmatpush1.bf16.xpose.msra.mxu0 0
      %3434 = vmatprep.subr.bf16.mxu0 0
      %3435 = vmatpush1.bf16.xpose.msra.mxu0 0
      %3436 = vmatprep.subr.bf16.mxu0 0
      %3437 = vmatpush1.bf16.xpose.msra.mxu0 0
      %3438 = vmatprep.subr.bf16.mxu0 0
      %3439 = vmatpush1.bf16.xpose.msra.mxu0 0
      %3440 = vmatprep.subr.bf16.mxu0 0
      %3441 = vmatpush1.bf16.xpose.msra.mxu0 0
      %3442 = vmatprep.subr.bf16.mxu0 0
      %3443 = vmatpush1.bf16.xpose.msra.mxu0 0
      %3444 = vmatprep.subr.bf16.mxu0 0
      %3445 = vmatpush1.bf16.xpose.msra.mxu0 0
      %3446 = vmatprep.mubr.bf16.mxu0 0
      %3447 = vmatmul.mubr.bf16.gmra.mrb[0].mxu0 %v3409
      %v3448 = vpop.f32.mrb[0].mxu0
      %v3449 = vadd.f32 0.0, %v3448
      %v3450 = vpop.f32.mrb[0].mxu0
      %v3451 = vpop.f32.mrb[0].mxu0
      %v3452 = vpop.f32.mrb[0].mxu0
      %3453 = vdwg.mxu0
      %v3454 = vmul.f32 %v3311, 0.35355338
      %v3455 = vmul.f32 %v3357, 0.35355338
      %v3456 = vmul.f32 %v3403, 0.35355338
      %v3457 = vmul.f32 %v3449, 0.35355338
      %v3458 = vadd.f32 %v3454, %v1431
      %v3459 = vadd.f32 %v3455, %v1431
      %v3460 = vadd.f32 %v3456, %v1431
      %v3461 = vadd.f32 %v3457, %v1431
      %s3462 = scalar_lea.vmem %s8, 8
      %v3463 = vld [vmem:[%s3462] sm:$0x3]
      %v3464 = vld [vmem:[%s3462 + $0x2] sm:$0x3]
      %v3465 = vld [vmem:[%s3462 + $0x4] sm:$0x3]
      %v3466 = vld [vmem:[%s3462 + $0x6] sm:$0x3]
      %v3468 = vsel %vm1238, %v3463, 0
      %3470 = vmatprep.subr.bf16.mxu0 0
      %3471 = vmatpush1.bf16.xpose.msra.mxu0 %v3468
      %3472 = vmatprep.subr.bf16.mxu0 0
      %3473 = vmatpush1.bf16.xpose.msra.mxu0 0
      %3474 = vmatprep.subr.bf16.mxu0 0
      %3475 = vmatpush1.bf16.xpose.msra.mxu0 0
      %3476 = vmatprep.subr.bf16.mxu0 0
      %3477 = vmatpush1.bf16.xpose.msra.mxu0 0
      %3478 = vmatprep.subr.bf16.mxu0 0
      %3479 = vmatpush1.bf16.xpose.msra.mxu0 0
      %3480 = vmatprep.subr.bf16.mxu0 0
      %3481 = vmatpush1.bf16.xpose.msra.mxu0 0
      %3482 = vmatprep.subr.bf16.mxu0 0
      %3483 = vmatpush1.bf16.xpose.msra.mxu0 0
      %3484 = vmatprep.subr.bf16.mxu0 0
      %3485 = vmatpush1.bf16.xpose.msra.mxu0 0
      %3486 = vmatprep.subr.bf16.mxu0 0
      %3487 = vmatpush1.bf16.xpose.msra.mxu0 0
      %3488 = vmatprep.subr.bf16.mxu0 0
      %3489 = vmatpush1.bf16.xpose.msra.mxu0 0
      %3490 = vmatprep.subr.bf16.mxu0 0
      %3491 = vmatpush1.bf16.xpose.msra.mxu0 0
      %3492 = vmatprep.subr.bf16.mxu0 0
      %3493 = vmatpush1.bf16.xpose.msra.mxu0 0
      %3494 = vmatprep.subr.bf16.mxu0 0
      %3495 = vmatpush1.bf16.xpose.msra.mxu0 0
      %3496 = vmatprep.subr.bf16.mxu0 0
      %3497 = vmatpush1.bf16.xpose.msra.mxu0 0
      %3498 = vmatprep.subr.bf16.mxu0 0
      %3499 = vmatpush1.bf16.xpose.msra.mxu0 0
      %3500 = vmatprep.subr.bf16.mxu0 0
      %3501 = vmatpush1.bf16.xpose.msra.mxu0 0
      %3502 = vmatprep.mubr.bf16.mxu0 0
      %3503 = vmatmul.mubr.bf16.gmra.mrb[0].mxu0 %v3271
      %v3504 = vpop.f32.mrb[0].mxu0
      %v3505 = vadd.f32 0.0, %v3504
      %v3506 = vpop.f32.mrb[0].mxu0
      %v3507 = vpop.f32.mrb[0].mxu0
      %v3508 = vpop.f32.mrb[0].mxu0
      %3509 = vdwg.mxu0
      %v3511 = vsel %vm1238, %v3464, 0
      %3513 = vmatprep.subr.bf16.mxu0 0
      %3514 = vmatpush1.bf16.xpose.msra.mxu0 %v3511
      %3515 = vmatprep.subr.bf16.mxu0 0
      %3516 = vmatpush1.bf16.xpose.msra.mxu0 0
      %3517 = vmatprep.subr.bf16.mxu0 0
      %3518 = vmatpush1.bf16.xpose.msra.mxu0 0
      %3519 = vmatprep.subr.bf16.mxu0 0
      %3520 = vmatpush1.bf16.xpose.msra.mxu0 0
      %3521 = vmatprep.subr.bf16.mxu0 0
      %3522 = vmatpush1.bf16.xpose.msra.mxu0 0
      %3523 = vmatprep.subr.bf16.mxu0 0
      %3524 = vmatpush1.bf16.xpose.msra.mxu0 0
      %3525 = vmatprep.subr.bf16.mxu0 0
      %3526 = vmatpush1.bf16.xpose.msra.mxu0 0
      %3527 = vmatprep.subr.bf16.mxu0 0
      %3528 = vmatpush1.bf16.xpose.msra.mxu0 0
      %3529 = vmatprep.subr.bf16.mxu0 0
      %3530 = vmatpush1.bf16.xpose.msra.mxu0 0
      %3531 = vmatprep.subr.bf16.mxu0 0
      %3532 = vmatpush1.bf16.xpose.msra.mxu0 0
      %3533 = vmatprep.subr.bf16.mxu0 0
      %3534 = vmatpush1.bf16.xpose.msra.mxu0 0
      %3535 = vmatprep.subr.bf16.mxu0 0
      %3536 = vmatpush1.bf16.xpose.msra.mxu0 0
      %3537 = vmatprep.subr.bf16.mxu0 0
      %3538 = vmatpush1.bf16.xpose.msra.mxu0 0
      %3539 = vmatprep.subr.bf16.mxu0 0
      %3540 = vmatpush1.bf16.xpose.msra.mxu0 0
      %3541 = vmatprep.subr.bf16.mxu0 0
      %3542 = vmatpush1.bf16.xpose.msra.mxu0 0
      %3543 = vmatprep.subr.bf16.mxu0 0
      %3544 = vmatpush1.bf16.xpose.msra.mxu0 0
      %3545 = vmatprep.mubr.bf16.mxu0 0
      %3546 = vmatmul.mubr.bf16.gmra.mrb[0].mxu0 %v3317
      %v3547 = vpop.f32.mrb[0].mxu0
      %v3548 = vadd.f32 0.0, %v3547
      %v3549 = vpop.f32.mrb[0].mxu0
      %v3550 = vpop.f32.mrb[0].mxu0
      %v3551 = vpop.f32.mrb[0].mxu0
      %3552 = vdwg.mxu0
      %v3554 = vsel %vm1238, %v3465, 0
      %3556 = vmatprep.subr.bf16.mxu0 0
      %3557 = vmatpush1.bf16.xpose.msra.mxu0 %v3554
      %3558 = vmatprep.subr.bf16.mxu0 0
      %3559 = vmatpush1.bf16.xpose.msra.mxu0 0
      %3560 = vmatprep.subr.bf16.mxu0 0
      %3561 = vmatpush1.bf16.xpose.msra.mxu0 0
      %3562 = vmatprep.subr.bf16.mxu0 0
      %3563 = vmatpush1.bf16.xpose.msra.mxu0 0
      %3564 = vmatprep.subr.bf16.mxu0 0
      %3565 = vmatpush1.bf16.xpose.msra.mxu0 0
      %3566 = vmatprep.subr.bf16.mxu0 0
      %3567 = vmatpush1.bf16.xpose.msra.mxu0 0
      %3568 = vmatprep.subr.bf16.mxu0 0
      %3569 = vmatpush1.bf16.xpose.msra.mxu0 0
      %3570 = vmatprep.subr.bf16.mxu0 0
      %3571 = vmatpush1.bf16.xpose.msra.mxu0 0
      %3572 = vmatprep.subr.bf16.mxu0 0
      %3573 = vmatpush1.bf16.xpose.msra.mxu0 0
      %3574 = vmatprep.subr.bf16.mxu0 0
      %3575 = vmatpush1.bf16.xpose.msra.mxu0 0
      %3576 = vmatprep.subr.bf16.mxu0 0
      %3577 = vmatpush1.bf16.xpose.msra.mxu0 0
      %3578 = vmatprep.subr.bf16.mxu0 0
      %3579 = vmatpush1.bf16.xpose.msra.mxu0 0
      %3580 = vmatprep.subr.bf16.mxu0 0
      %3581 = vmatpush1.bf16.xpose.msra.mxu0 0
      %3582 = vmatprep.subr.bf16.mxu0 0
      %3583 = vmatpush1.bf16.xpose.msra.mxu0 0
      %3584 = vmatprep.subr.bf16.mxu0 0
      %3585 = vmatpush1.bf16.xpose.msra.mxu0 0
      %3586 = vmatprep.subr.bf16.mxu0 0
      %3587 = vmatpush1.bf16.xpose.msra.mxu0 0
      %3588 = vmatprep.mubr.bf16.mxu0 0
      %3589 = vmatmul.mubr.bf16.gmra.mrb[0].mxu0 %v3363
      %v3590 = vpop.f32.mrb[0].mxu0
      %v3591 = vadd.f32 0.0, %v3590
      %v3592 = vpop.f32.mrb[0].mxu0
      %v3593 = vpop.f32.mrb[0].mxu0
      %v3594 = vpop.f32.mrb[0].mxu0
      %3595 = vdwg.mxu0
      %v3597 = vsel %vm1238, %v3466, 0
      %3599 = vmatprep.subr.bf16.mxu0 0
      %3600 = vmatpush1.bf16.xpose.msra.mxu0 %v3597
      %3601 = vmatprep.subr.bf16.mxu0 0
      %3602 = vmatpush1.bf16.xpose.msra.mxu0 0
      %3603 = vmatprep.subr.bf16.mxu0 0
      %3604 = vmatpush1.bf16.xpose.msra.mxu0 0
      %3605 = vmatprep.subr.bf16.mxu0 0
      %3606 = vmatpush1.bf16.xpose.msra.mxu0 0
      %3607 = vmatprep.subr.bf16.mxu0 0
      %3608 = vmatpush1.bf16.xpose.msra.mxu0 0
      %3609 = vmatprep.subr.bf16.mxu0 0
      %3610 = vmatpush1.bf16.xpose.msra.mxu0 0
      %3611 = vmatprep.subr.bf16.mxu0 0
      %3612 = vmatpush1.bf16.xpose.msra.mxu0 0
      %3613 = vmatprep.subr.bf16.mxu0 0
      %3614 = vmatpush1.bf16.xpose.msra.mxu0 0
      %3615 = vmatprep.subr.bf16.mxu0 0
      %3616 = vmatpush1.bf16.xpose.msra.mxu0 0
      %3617 = vmatprep.subr.bf16.mxu0 0
      %3618 = vmatpush1.bf16.xpose.msra.mxu0 0
      %3619 = vmatprep.subr.bf16.mxu0 0
      %3620 = vmatpush1.bf16.xpose.msra.mxu0 0
      %3621 = vmatprep.subr.bf16.mxu0 0
      %3622 = vmatpush1.bf16.xpose.msra.mxu0 0
      %3623 = vmatprep.subr.bf16.mxu0 0
      %3624 = vmatpush1.bf16.xpose.msra.mxu0 0
      %3625 = vmatprep.subr.bf16.mxu0 0
      %3626 = vmatpush1.bf16.xpose.msra.mxu0 0
      %3627 = vmatprep.subr.bf16.mxu0 0
      %3628 = vmatpush1.bf16.xpose.msra.mxu0 0
      %3629 = vmatprep.subr.bf16.mxu0 0
      %3630 = vmatpush1.bf16.xpose.msra.mxu0 0
      %3631 = vmatprep.mubr.bf16.mxu0 0
      %3632 = vmatmul.mubr.bf16.gmra.mrb[0].mxu0 %v3409
      %v3633 = vpop.f32.mrb[0].mxu0
      %v3634 = vadd.f32 0.0, %v3633
      %v3635 = vpop.f32.mrb[0].mxu0
      %v3636 = vpop.f32.mrb[0].mxu0
      %v3637 = vpop.f32.mrb[0].mxu0
      %3638 = vdwg.mxu0
      %v3639 = vmul.f32 %v3505, 0.35355338
      %v3640 = vmul.f32 %v3548, 0.35355338
      %v3641 = vmul.f32 %v3591, 0.35355338
      %v3642 = vmul.f32 %v3634, 0.35355338
      %v3643 = vsel %vm1238, %v3458, -inf
      %3644 = vmax.xlane.f32.xlu0 %v3643
      %v3645 = vpop.xlane.xlu0 %3644
      %v3646 = vsel %vm1238, %v3459, -inf
      %3647 = vmax.xlane.f32.xlu0 %v3646
      %v3648 = vpop.xlane.xlu0 %3647
      %v3649 = vsel %vm1238, %v3460, -inf
      %3650 = vmax.xlane.f32.xlu0 %v3649
      %v3651 = vpop.xlane.xlu0 %3650
      %v3652 = vsel %vm1238, %v3461, -inf
      %3653 = vmax.xlane.f32.xlu0 %v3652
      %v3654 = vpop.xlane.xlu0 %3653
      %v3655 = vsel %vm1629, %v3639, -inf
      %3656 = vmax.xlane.f32.xlu0 %v3655
      %v3657 = vpop.xlane.xlu0 %3656
      %v3658 = vsel %vm1629, %v3640, -inf
      %3659 = vmax.xlane.f32.xlu0 %v3658
      %v3660 = vpop.xlane.xlu0 %3659
      %v3661 = vsel %vm1629, %v3641, -inf
      %3662 = vmax.xlane.f32.xlu0 %v3661
      %v3663 = vpop.xlane.xlu0 %3662
      %v3664 = vsel %vm1629, %v3642, -inf
      %3665 = vmax.xlane.f32.xlu0 %v3664
      %v3666 = vpop.xlane.xlu0 %3665
      %v3667 = vmax.f32 %v3645, %v3657
      %v3668 = vmax.f32 %v3648, %v3660
      %v3669 = vmax.f32 %v3651, %v3663
      %v3670 = vmax.f32 %v3654, %v3666
      %v3671 = vsub.f32 %v3458, %v3667
      %v3672 = vsub.f32 %v3459, %v3668
      %v3673 = vsub.f32 %v3460, %v3669
      %v3674 = vsub.f32 %v3461, %v3670
      %v3675 = vmul.f32 %v3671, 1.442695
      %v3676 = vpow.pop %v3675
      %v3677 = vmul.f32 %v3672, 1.442695
      %v3678 = vpow.pop %v3677
      %v3679 = vmul.f32 %v3673, 1.442695
      %v3680 = vpow.pop %v3679
      %v3681 = vmul.f32 %v3674, 1.442695
      %v3682 = vpow.pop %v3681
      %v3683 = vsub.f32 %v3639, %v3667
      %v3684 = vsub.f32 %v3640, %v3668
      %v3685 = vsub.f32 %v3641, %v3669
      %v3686 = vsub.f32 %v3642, %v3670
      %v3687 = vmul.f32 %v3683, 1.442695
      %v3688 = vpow.pop %v3687
      %v3689 = vmul.f32 %v3684, 1.442695
      %v3690 = vpow.pop %v3689
      %v3691 = vmul.f32 %v3685, 1.442695
      %v3692 = vpow.pop %v3691
      %v3693 = vmul.f32 %v3686, 1.442695
      %v3694 = vpow.pop %v3693
      %v3695 = vsel %vm1238, %v3676, 0.0
      %3696 = vadd.xlane.f32.xlu0 %v3695
      %v3697 = vpop.xlane.xlu0 %3696
      %v3698 = vsel %vm1238, %v3678, 0.0
      %3699 = vadd.xlane.f32.xlu0 %v3698
      %v3700 = vpop.xlane.xlu0 %3699
      %v3701 = vsel %vm1238, %v3680, 0.0
      %3702 = vadd.xlane.f32.xlu0 %v3701
      %v3703 = vpop.xlane.xlu0 %3702
      %v3704 = vsel %vm1238, %v3682, 0.0
      %3705 = vadd.xlane.f32.xlu0 %v3704
      %v3706 = vpop.xlane.xlu0 %3705
      %v3707 = vsel %vm1629, %v3688, 0.0
      %3708 = vadd.xlane.f32.xlu0 %v3707
      %v3709 = vpop.xlane.xlu0 %3708
      %v3710 = vsel %vm1629, %v3690, 0.0
      %3711 = vadd.xlane.f32.xlu0 %v3710
      %v3712 = vpop.xlane.xlu0 %3711
      %v3713 = vsel %vm1629, %v3692, 0.0
      %3714 = vadd.xlane.f32.xlu0 %v3713
      %v3715 = vpop.xlane.xlu0 %3714
      %v3716 = vsel %vm1629, %v3694, 0.0
      %3717 = vadd.xlane.f32.xlu0 %v3716
      %v3718 = vpop.xlane.xlu0 %3717
      %v3719 = vadd.f32 %v3697, %v3709
      %v3720 = vadd.f32 %v3700, %v3712
      %v3721 = vadd.f32 %v3703, %v3715
      %v3722 = vadd.f32 %v3706, %v3718
      %v3723 = vrcp.pop %v3719
      %v3724 = vrcp.pop %v3720
      %v3725 = vrcp.pop %v3721
      %v3726 = vrcp.pop %v3722
      %v3727 = vpack.c.bf16 %v3676, %v3676
      %v3728 = vpack.c.bf16 %v3678, %v3678
      %v3729 = vpack.c.bf16 %v3680, %v3680
      %v3730 = vpack.c.bf16 %v3682, %v3682
      %v3731 = vpack.c.bf16 %v3688, %v3688
      %v3732 = vpack.c.bf16 %v3690, %v3690
      %v3733 = vpack.c.bf16 %v3692, %v3692
      %v3734 = vpack.c.bf16 %v3694, %v3694
      %s3735 = scalar_lea.vmem %s9, 8
      %v3736 = vld [vmem:[%s3735] sm:$0x3]
      %v3737 = vld [vmem:[%s3735 + $0x2] sm:$0x3]
      %v3738 = vld [vmem:[%s3735 + $0x4] sm:$0x3]
      %v3739 = vld [vmem:[%s3735 + $0x6] sm:$0x3]
      %v3741 = vsel %vm1629, %v3731, 0
      %v3744 = vsel %vm1717, %v3736, 0
      %3746 = vmatprep.subr.bf16.mxu0 0
      %3747 = vmatpush1.bf16.msra.mxu0 %v3744
      %3748 = vmatprep.subr.bf16.mxu0 0
      %3749 = vmatpush1.bf16.msra.mxu0 0
      %3750 = vmatprep.subr.bf16.mxu0 0
      %3751 = vmatpush1.bf16.msra.mxu0 0
      %3752 = vmatprep.subr.bf16.mxu0 0
      %3753 = vmatpush1.bf16.msra.mxu0 0
      %3754 = vmatprep.subr.bf16.mxu0 0
      %3755 = vmatpush1.bf16.msra.mxu0 0
      %3756 = vmatprep.subr.bf16.mxu0 0
      %3757 = vmatpush1.bf16.msra.mxu0 0
      %3758 = vmatprep.subr.bf16.mxu0 0
      %3759 = vmatpush1.bf16.msra.mxu0 0
      %3760 = vmatprep.subr.bf16.mxu0 0
      %3761 = vmatpush1.bf16.msra.mxu0 0
      %3762 = vmatprep.subr.bf16.mxu0 0
      %3763 = vmatpush1.bf16.msra.mxu0 0
      %3764 = vmatprep.subr.bf16.mxu0 0
      %3765 = vmatpush1.bf16.msra.mxu0 0
      %3766 = vmatprep.subr.bf16.mxu0 0
      %3767 = vmatpush1.bf16.msra.mxu0 0
      %3768 = vmatprep.subr.bf16.mxu0 0
      %3769 = vmatpush1.bf16.msra.mxu0 0
      %3770 = vmatprep.subr.bf16.mxu0 0
      %3771 = vmatpush1.bf16.msra.mxu0 0
      %3772 = vmatprep.subr.bf16.mxu0 0
      %3773 = vmatpush1.bf16.msra.mxu0 0
      %3774 = vmatprep.subr.bf16.mxu0 0
      %3775 = vmatpush1.bf16.msra.mxu0 0
      %3776 = vmatprep.subr.bf16.mxu0 0
      %3777 = vmatpush1.bf16.msra.mxu0 0
      %3778 = vmatprep.mubr.bf16.mxu0 0
      %3779 = vmatmul.mubr.bf16.gmra.mrb[0].mxu0 %v3741
      %v3780 = vpop.f32.mrb[0].mxu0
      %v3781 = vadd.f32 0.0, %v3780
      %v3782 = vpop.f32.mrb[0].mxu0
      %v3783 = vpop.f32.mrb[0].mxu0
      %v3784 = vpop.f32.mrb[0].mxu0
      %3785 = vdwg.mxu0
      %v3787 = vsel %vm1629, %v3732, 0
      %v3790 = vsel %vm1717, %v3737, 0
      %3792 = vmatprep.subr.bf16.mxu0 0
      %3793 = vmatpush1.bf16.msra.mxu0 %v3790
      %3794 = vmatprep.subr.bf16.mxu0 0
      %3795 = vmatpush1.bf16.msra.mxu0 0
      %3796 = vmatprep.subr.bf16.mxu0 0
      %3797 = vmatpush1.bf16.msra.mxu0 0
      %3798 = vmatprep.subr.bf16.mxu0 0
      %3799 = vmatpush1.bf16.msra.mxu0 0
      %3800 = vmatprep.subr.bf16.mxu0 0
      %3801 = vmatpush1.bf16.msra.mxu0 0
      %3802 = vmatprep.subr.bf16.mxu0 0
      %3803 = vmatpush1.bf16.msra.mxu0 0
      %3804 = vmatprep.subr.bf16.mxu0 0
      %3805 = vmatpush1.bf16.msra.mxu0 0
      %3806 = vmatprep.subr.bf16.mxu0 0
      %3807 = vmatpush1.bf16.msra.mxu0 0
      %3808 = vmatprep.subr.bf16.mxu0 0
      %3809 = vmatpush1.bf16.msra.mxu0 0
      %3810 = vmatprep.subr.bf16.mxu0 0
      %3811 = vmatpush1.bf16.msra.mxu0 0
      %3812 = vmatprep.subr.bf16.mxu0 0
      %3813 = vmatpush1.bf16.msra.mxu0 0
      %3814 = vmatprep.subr.bf16.mxu0 0
      %3815 = vmatpush1.bf16.msra.mxu0 0
      %3816 = vmatprep.subr.bf16.mxu0 0
      %3817 = vmatpush1.bf16.msra.mxu0 0
      %3818 = vmatprep.subr.bf16.mxu0 0
      %3819 = vmatpush1.bf16.msra.mxu0 0
      %3820 = vmatprep.subr.bf16.mxu0 0
      %3821 = vmatpush1.bf16.msra.mxu0 0
      %3822 = vmatprep.subr.bf16.mxu0 0
      %3823 = vmatpush1.bf16.msra.mxu0 0
      %3824 = vmatprep.mubr.bf16.mxu0 0
      %3825 = vmatmul.mubr.bf16.gmra.mrb[0].mxu0 %v3787
      %v3826 = vpop.f32.mrb[0].mxu0
      %v3827 = vadd.f32 0.0, %v3826
      %v3828 = vpop.f32.mrb[0].mxu0
      %v3829 = vpop.f32.mrb[0].mxu0
      %v3830 = vpop.f32.mrb[0].mxu0
      %3831 = vdwg.mxu0
      %v3833 = vsel %vm1629, %v3733, 0
      %v3836 = vsel %vm1717, %v3738, 0
      %3838 = vmatprep.subr.bf16.mxu0 0
      %3839 = vmatpush1.bf16.msra.mxu0 %v3836
      %3840 = vmatprep.subr.bf16.mxu0 0
      %3841 = vmatpush1.bf16.msra.mxu0 0
      %3842 = vmatprep.subr.bf16.mxu0 0
      %3843 = vmatpush1.bf16.msra.mxu0 0
      %3844 = vmatprep.subr.bf16.mxu0 0
      %3845 = vmatpush1.bf16.msra.mxu0 0
      %3846 = vmatprep.subr.bf16.mxu0 0
      %3847 = vmatpush1.bf16.msra.mxu0 0
      %3848 = vmatprep.subr.bf16.mxu0 0
      %3849 = vmatpush1.bf16.msra.mxu0 0
      %3850 = vmatprep.subr.bf16.mxu0 0
      %3851 = vmatpush1.bf16.msra.mxu0 0
      %3852 = vmatprep.subr.bf16.mxu0 0
      %3853 = vmatpush1.bf16.msra.mxu0 0
      %3854 = vmatprep.subr.bf16.mxu0 0
      %3855 = vmatpush1.bf16.msra.mxu0 0
      %3856 = vmatprep.subr.bf16.mxu0 0
      %3857 = vmatpush1.bf16.msra.mxu0 0
      %3858 = vmatprep.subr.bf16.mxu0 0
      %3859 = vmatpush1.bf16.msra.mxu0 0
      %3860 = vmatprep.subr.bf16.mxu0 0
      %3861 = vmatpush1.bf16.msra.mxu0 0
      %3862 = vmatprep.subr.bf16.mxu0 0
      %3863 = vmatpush1.bf16.msra.mxu0 0
      %3864 = vmatprep.subr.bf16.mxu0 0
      %3865 = vmatpush1.bf16.msra.mxu0 0
      %3866 = vmatprep.subr.bf16.mxu0 0
      %3867 = vmatpush1.bf16.msra.mxu0 0
      %3868 = vmatprep.subr.bf16.mxu0 0
      %3869 = vmatpush1.bf16.msra.mxu0 0
      %3870 = vmatprep.mubr.bf16.mxu0 0
      %3871 = vmatmul.mubr.bf16.gmra.mrb[0].mxu0 %v3833
      %v3872 = vpop.f32.mrb[0].mxu0
      %v3873 = vadd.f32 0.0, %v3872
      %v3874 = vpop.f32.mrb[0].mxu0
      %v3875 = vpop.f32.mrb[0].mxu0
      %v3876 = vpop.f32.mrb[0].mxu0
      %3877 = vdwg.mxu0
      %v3879 = vsel %vm1629, %v3734, 0
      %v3882 = vsel %vm1717, %v3739, 0
      %3884 = vmatprep.subr.bf16.mxu0 0
      %3885 = vmatpush1.bf16.msra.mxu0 %v3882
      %3886 = vmatprep.subr.bf16.mxu0 0
      %3887 = vmatpush1.bf16.msra.mxu0 0
      %3888 = vmatprep.subr.bf16.mxu0 0
      %3889 = vmatpush1.bf16.msra.mxu0 0
      %3890 = vmatprep.subr.bf16.mxu0 0
      %3891 = vmatpush1.bf16.msra.mxu0 0
      %3892 = vmatprep.subr.bf16.mxu0 0
      %3893 = vmatpush1.bf16.msra.mxu0 0
      %3894 = vmatprep.subr.bf16.mxu0 0
      %3895 = vmatpush1.bf16.msra.mxu0 0
      %3896 = vmatprep.subr.bf16.mxu0 0
      %3897 = vmatpush1.bf16.msra.mxu0 0
      %3898 = vmatprep.subr.bf16.mxu0 0
      %3899 = vmatpush1.bf16.msra.mxu0 0
      %3900 = vmatprep.subr.bf16.mxu0 0
      %3901 = vmatpush1.bf16.msra.mxu0 0
      %3902 = vmatprep.subr.bf16.mxu0 0
      %3903 = vmatpush1.bf16.msra.mxu0 0
      %3904 = vmatprep.subr.bf16.mxu0 0
      %3905 = vmatpush1.bf16.msra.mxu0 0
      %3906 = vmatprep.subr.bf16.mxu0 0
      %3907 = vmatpush1.bf16.msra.mxu0 0
      %3908 = vmatprep.subr.bf16.mxu0 0
      %3909 = vmatpush1.bf16.msra.mxu0 0
      %3910 = vmatprep.subr.bf16.mxu0 0
      %3911 = vmatpush1.bf16.msra.mxu0 0
      %3912 = vmatprep.subr.bf16.mxu0 0
      %3913 = vmatpush1.bf16.msra.mxu0 0
      %3914 = vmatprep.subr.bf16.mxu0 0
      %3915 = vmatpush1.bf16.msra.mxu0 0
      %3916 = vmatprep.mubr.bf16.mxu0 0
      %3917 = vmatmul.mubr.bf16.gmra.mrb[0].mxu0 %v3879
      %v3918 = vpop.f32.mrb[0].mxu0
      %v3919 = vadd.f32 0.0, %v3918
      %v3920 = vpop.f32.mrb[0].mxu0
      %v3921 = vpop.f32.mrb[0].mxu0
      %v3922 = vpop.f32.mrb[0].mxu0
      %3923 = vdwg.mxu0
      %v3925 = vsel %vm1238, %v3727, 0
      %v3928 = vsel %vm1902, %v3266, 0
      %3930 = vmatprep.subr.bf16.mxu0 0
      %3931 = vmatpush1.bf16.msra.mxu0 %v3928
      %3932 = vmatprep.subr.bf16.mxu0 0
      %3933 = vmatpush1.bf16.msra.mxu0 0
      %3934 = vmatprep.subr.bf16.mxu0 0
      %3935 = vmatpush1.bf16.msra.mxu0 0
      %3936 = vmatprep.subr.bf16.mxu0 0
      %3937 = vmatpush1.bf16.msra.mxu0 0
      %3938 = vmatprep.subr.bf16.mxu0 0
      %3939 = vmatpush1.bf16.msra.mxu0 0
      %3940 = vmatprep.subr.bf16.mxu0 0
      %3941 = vmatpush1.bf16.msra.mxu0 0
      %3942 = vmatprep.subr.bf16.mxu0 0
      %3943 = vmatpush1.bf16.msra.mxu0 0
      %3944 = vmatprep.subr.bf16.mxu0 0
      %3945 = vmatpush1.bf16.msra.mxu0 0
      %3946 = vmatprep.subr.bf16.mxu0 0
      %3947 = vmatpush1.bf16.msra.mxu0 0
      %3948 = vmatprep.subr.bf16.mxu0 0
      %3949 = vmatpush1.bf16.msra.mxu0 0
      %3950 = vmatprep.subr.bf16.mxu0 0
      %3951 = vmatpush1.bf16.msra.mxu0 0
      %3952 = vmatprep.subr.bf16.mxu0 0
      %3953 = vmatpush1.bf16.msra.mxu0 0
      %3954 = vmatprep.subr.bf16.mxu0 0
      %3955 = vmatpush1.bf16.msra.mxu0 0
      %3956 = vmatprep.subr.bf16.mxu0 0
      %3957 = vmatpush1.bf16.msra.mxu0 0
      %3958 = vmatprep.subr.bf16.mxu0 0
      %3959 = vmatpush1.bf16.msra.mxu0 0
      %3960 = vmatprep.subr.bf16.mxu0 0
      %3961 = vmatpush1.bf16.msra.mxu0 0
      %3962 = vmatprep.mubr.bf16.mxu0 0
      %3963 = vmatmul.mubr.bf16.gmra.mrb[0].mxu0 %v3925
      %v3964 = vpop.f32.mrb[0].mxu0
      %v3965 = vadd.f32 %v3781, %v3964
      %v3966 = vpop.f32.mrb[0].mxu0
      %v3967 = vpop.f32.mrb[0].mxu0
      %v3968 = vpop.f32.mrb[0].mxu0
      %3969 = vdwg.mxu0
      %v3971 = vsel %vm1238, %v3728, 0
      %v3974 = vsel %vm1902, %v3267, 0
      %3976 = vmatprep.subr.bf16.mxu0 0
      %3977 = vmatpush1.bf16.msra.mxu0 %v3974
      %3978 = vmatprep.subr.bf16.mxu0 0
      %3979 = vmatpush1.bf16.msra.mxu0 0
      %3980 = vmatprep.subr.bf16.mxu0 0
      %3981 = vmatpush1.bf16.msra.mxu0 0
      %3982 = vmatprep.subr.bf16.mxu0 0
      %3983 = vmatpush1.bf16.msra.mxu0 0
      %3984 = vmatprep.subr.bf16.mxu0 0
      %3985 = vmatpush1.bf16.msra.mxu0 0
      %3986 = vmatprep.subr.bf16.mxu0 0
      %3987 = vmatpush1.bf16.msra.mxu0 0
      %3988 = vmatprep.subr.bf16.mxu0 0
      %3989 = vmatpush1.bf16.msra.mxu0 0
      %3990 = vmatprep.subr.bf16.mxu0 0
      %3991 = vmatpush1.bf16.msra.mxu0 0
      %3992 = vmatprep.subr.bf16.mxu0 0
      %3993 = vmatpush1.bf16.msra.mxu0 0
      %3994 = vmatprep.subr.bf16.mxu0 0
      %3995 = vmatpush1.bf16.msra.mxu0 0
      %3996 = vmatprep.subr.bf16.mxu0 0
      %3997 = vmatpush1.bf16.msra.mxu0 0
      %3998 = vmatprep.subr.bf16.mxu0 0
      %3999 = vmatpush1.bf16.msra.mxu0 0
      %4000 = vmatprep.subr.bf16.mxu0 0
      %4001 = vmatpush1.bf16.msra.mxu0 0
      %4002 = vmatprep.subr.bf16.mxu0 0
      %4003 = vmatpush1.bf16.msra.mxu0 0
      %4004 = vmatprep.subr.bf16.mxu0 0
      %4005 = vmatpush1.bf16.msra.mxu0 0
      %4006 = vmatprep.subr.bf16.mxu0 0
      %4007 = vmatpush1.bf16.msra.mxu0 0
      %4008 = vmatprep.mubr.bf16.mxu0 0
      %4009 = vmatmul.mubr.bf16.gmra.mrb[0].mxu0 %v3971
      %v4010 = vpop.f32.mrb[0].mxu0
      %v4011 = vadd.f32 %v3827, %v4010
      %v4012 = vpop.f32.mrb[0].mxu0
      %v4013 = vpop.f32.mrb[0].mxu0
      %v4014 = vpop.f32.mrb[0].mxu0
      %4015 = vdwg.mxu0
      %v4017 = vsel %vm1238, %v3729, 0
      %v4020 = vsel %vm1902, %v3268, 0
      %4022 = vmatprep.subr.bf16.mxu0 0
      %4023 = vmatpush1.bf16.msra.mxu0 %v4020
      %4024 = vmatprep.subr.bf16.mxu0 0
      %4025 = vmatpush1.bf16.msra.mxu0 0
      %4026 = vmatprep.subr.bf16.mxu0 0
      %4027 = vmatpush1.bf16.msra.mxu0 0
      %4028 = vmatprep.subr.bf16.mxu0 0
      %4029 = vmatpush1.bf16.msra.mxu0 0
      %4030 = vmatprep.subr.bf16.mxu0 0
      %4031 = vmatpush1.bf16.msra.mxu0 0
      %4032 = vmatprep.subr.bf16.mxu0 0
      %4033 = vmatpush1.bf16.msra.mxu0 0
      %4034 = vmatprep.subr.bf16.mxu0 0
      %4035 = vmatpush1.bf16.msra.mxu0 0
      %4036 = vmatprep.subr.bf16.mxu0 0
      %4037 = vmatpush1.bf16.msra.mxu0 0
      %4038 = vmatprep.subr.bf16.mxu0 0
      %4039 = vmatpush1.bf16.msra.mxu0 0
      %4040 = vmatprep.subr.bf16.mxu0 0
      %4041 = vmatpush1.bf16.msra.mxu0 0
      %4042 = vmatprep.subr.bf16.mxu0 0
      %4043 = vmatpush1.bf16.msra.mxu0 0
      %4044 = vmatprep.subr.bf16.mxu0 0
      %4045 = vmatpush1.bf16.msra.mxu0 0
      %4046 = vmatprep.subr.bf16.mxu0 0
      %4047 = vmatpush1.bf16.msra.mxu0 0
      %4048 = vmatprep.subr.bf16.mxu0 0
      %4049 = vmatpush1.bf16.msra.mxu0 0
      %4050 = vmatprep.subr.bf16.mxu0 0
      %4051 = vmatpush1.bf16.msra.mxu0 0
      %4052 = vmatprep.subr.bf16.mxu0 0
      %4053 = vmatpush1.bf16.msra.mxu0 0
      %4054 = vmatprep.mubr.bf16.mxu0 0
      %4055 = vmatmul.mubr.bf16.gmra.mrb[0].mxu0 %v4017
      %v4056 = vpop.f32.mrb[0].mxu0
      %v4057 = vadd.f32 %v3873, %v4056
      %v4058 = vpop.f32.mrb[0].mxu0
      %v4059 = vpop.f32.mrb[0].mxu0
      %v4060 = vpop.f32.mrb[0].mxu0
      %4061 = vdwg.mxu0
      %v4063 = vsel %vm1238, %v3730, 0
      %v4066 = vsel %vm1902, %v3269, 0
      %4068 = vmatprep.subr.bf16.mxu0 0
      %4069 = vmatpush1.bf16.msra.mxu0 %v4066
      %4070 = vmatprep.subr.bf16.mxu0 0
      %4071 = vmatpush1.bf16.msra.mxu0 0
      %4072 = vmatprep.subr.bf16.mxu0 0
      %4073 = vmatpush1.bf16.msra.mxu0 0
      %4074 = vmatprep.subr.bf16.mxu0 0
      %4075 = vmatpush1.bf16.msra.mxu0 0
      %4076 = vmatprep.subr.bf16.mxu0 0
      %4077 = vmatpush1.bf16.msra.mxu0 0
      %4078 = vmatprep.subr.bf16.mxu0 0
      %4079 = vmatpush1.bf16.msra.mxu0 0
      %4080 = vmatprep.subr.bf16.mxu0 0
      %4081 = vmatpush1.bf16.msra.mxu0 0
      %4082 = vmatprep.subr.bf16.mxu0 0
      %4083 = vmatpush1.bf16.msra.mxu0 0
      %4084 = vmatprep.subr.bf16.mxu0 0
      %4085 = vmatpush1.bf16.msra.mxu0 0
      %4086 = vmatprep.subr.bf16.mxu0 0
      %4087 = vmatpush1.bf16.msra.mxu0 0
      %4088 = vmatprep.subr.bf16.mxu0 0
      %4089 = vmatpush1.bf16.msra.mxu0 0
      %4090 = vmatprep.subr.bf16.mxu0 0
      %4091 = vmatpush1.bf16.msra.mxu0 0
      %4092 = vmatprep.subr.bf16.mxu0 0
      %4093 = vmatpush1.bf16.msra.mxu0 0
      %4094 = vmatprep.subr.bf16.mxu0 0
      %4095 = vmatpush1.bf16.msra.mxu0 0
      %4096 = vmatprep.subr.bf16.mxu0 0
      %4097 = vmatpush1.bf16.msra.mxu0 0
      %4098 = vmatprep.subr.bf16.mxu0 0
      %4099 = vmatpush1.bf16.msra.mxu0 0
      %4100 = vmatprep.mubr.bf16.mxu0 0
      %4101 = vmatmul.mubr.bf16.gmra.mrb[0].mxu0 %v4063
      %v4102 = vpop.f32.mrb[0].mxu0
      %v4103 = vadd.f32 %v3919, %v4102
      %v4104 = vpop.f32.mrb[0].mxu0
      %v4105 = vpop.f32.mrb[0].mxu0
      %v4106 = vpop.f32.mrb[0].mxu0
      %4107 = vdwg.mxu0
      %v4108 = vmul.f32 %v3965, %v3723
      %v4109 = vmul.f32 %v4011, %v3724
      %v4110 = vmul.f32 %v4057, %v3725
      %v4111 = vmul.f32 %v4103, %v3726
      %v4112 = vpack.c.bf16 %v4108, %v4108
      %v4113 = vpack.c.bf16 %v4109, %v4109
      %v4114 = vpack.c.bf16 %v4110, %v4110
      %v4115 = vpack.c.bf16 %v4111, %v4111
      %s4116 = scalar_lea.vmem %s5, 16
      %v4117 = vld [vmem:[%s4116] sm:$0xf]
      %v4118 = vld [vmem:[%s4116 + $0x4] sm:$0xf]
      %v4119 = vld [vmem:[%s4116 + $0x8] sm:$0xf]
      %v4120 = vld [vmem:[%s4116 + $0xc] sm:$0xf]
      %v4122 = vsel %vm1238, %v4112, 0
      %v4125 = vsel %vm1902, %v4117, 0
      %4127 = vmatprep.subr.bf16.mxu0 0
      %4128 = vmatpush1.bf16.msra.mxu0 %v4125
      %4129 = vmatprep.subr.bf16.mxu0 0
      %4130 = vmatpush1.bf16.msra.mxu0 0
      %4131 = vmatprep.subr.bf16.mxu0 0
      %4132 = vmatpush1.bf16.msra.mxu0 0
      %4133 = vmatprep.subr.bf16.mxu0 0
      %4134 = vmatpush1.bf16.msra.mxu0 0
      %4135 = vmatprep.subr.bf16.mxu0 0
      %4136 = vmatpush1.bf16.msra.mxu0 0
      %4137 = vmatprep.subr.bf16.mxu0 0
      %4138 = vmatpush1.bf16.msra.mxu0 0
      %4139 = vmatprep.subr.bf16.mxu0 0
      %4140 = vmatpush1.bf16.msra.mxu0 0
      %4141 = vmatprep.subr.bf16.mxu0 0
      %4142 = vmatpush1.bf16.msra.mxu0 0
      %4143 = vmatprep.subr.bf16.mxu0 0
      %4144 = vmatpush1.bf16.msra.mxu0 0
      %4145 = vmatprep.subr.bf16.mxu0 0
      %4146 = vmatpush1.bf16.msra.mxu0 0
      %4147 = vmatprep.subr.bf16.mxu0 0
      %4148 = vmatpush1.bf16.msra.mxu0 0
      %4149 = vmatprep.subr.bf16.mxu0 0
      %4150 = vmatpush1.bf16.msra.mxu0 0
      %4151 = vmatprep.subr.bf16.mxu0 0
      %4152 = vmatpush1.bf16.msra.mxu0 0
      %4153 = vmatprep.subr.bf16.mxu0 0
      %4154 = vmatpush1.bf16.msra.mxu0 0
      %4155 = vmatprep.subr.bf16.mxu0 0
      %4156 = vmatpush1.bf16.msra.mxu0 0
      %4157 = vmatprep.subr.bf16.mxu0 0
      %4158 = vmatpush1.bf16.msra.mxu0 0
      %4159 = vmatprep.mubr.bf16.mxu0 0
      %4160 = vmatmul.mubr.bf16.gmra.mrb[0].mxu0 %v4122
      %v4161 = vpop.f32.mrb[0].mxu0
      %v4162 = vadd.f32 0.0, %v4161
      %v4163 = vpop.f32.mrb[0].mxu0
      %v4164 = vpop.f32.mrb[0].mxu0
      %v4165 = vpop.f32.mrb[0].mxu0
      %4166 = vdwg.mxu0
      %v4168 = vsel %vm1238, %v4113, 0
      %v4171 = vsel %vm1902, %v4118, 0
      %4173 = vmatprep.subr.bf16.mxu0 0
      %4174 = vmatpush1.bf16.msra.mxu0 %v4171
      %4175 = vmatprep.subr.bf16.mxu0 0
      %4176 = vmatpush1.bf16.msra.mxu0 0
      %4177 = vmatprep.subr.bf16.mxu0 0
      %4178 = vmatpush1.bf16.msra.mxu0 0
      %4179 = vmatprep.subr.bf16.mxu0 0
      %4180 = vmatpush1.bf16.msra.mxu0 0
      %4181 = vmatprep.subr.bf16.mxu0 0
      %4182 = vmatpush1.bf16.msra.mxu0 0
      %4183 = vmatprep.subr.bf16.mxu0 0
      %4184 = vmatpush1.bf16.msra.mxu0 0
      %4185 = vmatprep.subr.bf16.mxu0 0
      %4186 = vmatpush1.bf16.msra.mxu0 0
      %4187 = vmatprep.subr.bf16.mxu0 0
      %4188 = vmatpush1.bf16.msra.mxu0 0
      %4189 = vmatprep.subr.bf16.mxu0 0
      %4190 = vmatpush1.bf16.msra.mxu0 0
      %4191 = vmatprep.subr.bf16.mxu0 0
      %4192 = vmatpush1.bf16.msra.mxu0 0
      %4193 = vmatprep.subr.bf16.mxu0 0
      %4194 = vmatpush1.bf16.msra.mxu0 0
      %4195 = vmatprep.subr.bf16.mxu0 0
      %4196 = vmatpush1.bf16.msra.mxu0 0
      %4197 = vmatprep.subr.bf16.mxu0 0
      %4198 = vmatpush1.bf16.msra.mxu0 0
      %4199 = vmatprep.subr.bf16.mxu0 0
      %4200 = vmatpush1.bf16.msra.mxu0 0
      %4201 = vmatprep.subr.bf16.mxu0 0
      %4202 = vmatpush1.bf16.msra.mxu0 0
      %4203 = vmatprep.subr.bf16.mxu0 0
      %4204 = vmatpush1.bf16.msra.mxu0 0
      %4205 = vmatprep.mubr.bf16.mxu0 0
      %4206 = vmatmul.mubr.bf16.gmra.mrb[0].mxu0 %v4168
      %v4207 = vpop.f32.mrb[0].mxu0
      %v4208 = vadd.f32 0.0, %v4207
      %v4209 = vpop.f32.mrb[0].mxu0
      %v4210 = vpop.f32.mrb[0].mxu0
      %v4211 = vpop.f32.mrb[0].mxu0
      %4212 = vdwg.mxu0
      %v4214 = vsel %vm1238, %v4114, 0
      %v4217 = vsel %vm1902, %v4119, 0
      %4219 = vmatprep.subr.bf16.mxu0 0
      %4220 = vmatpush1.bf16.msra.mxu0 %v4217
      %4221 = vmatprep.subr.bf16.mxu0 0
      %4222 = vmatpush1.bf16.msra.mxu0 0
      %4223 = vmatprep.subr.bf16.mxu0 0
      %4224 = vmatpush1.bf16.msra.mxu0 0
      %4225 = vmatprep.subr.bf16.mxu0 0
      %4226 = vmatpush1.bf16.msra.mxu0 0
      %4227 = vmatprep.subr.bf16.mxu0 0
      %4228 = vmatpush1.bf16.msra.mxu0 0
      %4229 = vmatprep.subr.bf16.mxu0 0
      %4230 = vmatpush1.bf16.msra.mxu0 0
      %4231 = vmatprep.subr.bf16.mxu0 0
      %4232 = vmatpush1.bf16.msra.mxu0 0
      %4233 = vmatprep.subr.bf16.mxu0 0
      %4234 = vmatpush1.bf16.msra.mxu0 0
      %4235 = vmatprep.subr.bf16.mxu0 0
      %4236 = vmatpush1.bf16.msra.mxu0 0
      %4237 = vmatprep.subr.bf16.mxu0 0
      %4238 = vmatpush1.bf16.msra.mxu0 0
      %4239 = vmatprep.subr.bf16.mxu0 0
      %4240 = vmatpush1.bf16.msra.mxu0 0
      %4241 = vmatprep.subr.bf16.mxu0 0
      %4242 = vmatpush1.bf16.msra.mxu0 0
      %4243 = vmatprep.subr.bf16.mxu0 0
      %4244 = vmatpush1.bf16.msra.mxu0 0
      %4245 = vmatprep.subr.bf16.mxu0 0
      %4246 = vmatpush1.bf16.msra.mxu0 0
      %4247 = vmatprep.subr.bf16.mxu0 0
      %4248 = vmatpush1.bf16.msra.mxu0 0
      %4249 = vmatprep.subr.bf16.mxu0 0
      %4250 = vmatpush1.bf16.msra.mxu0 0
      %4251 = vmatprep.mubr.bf16.mxu0 0
      %4252 = vmatmul.mubr.bf16.gmra.mrb[0].mxu0 %v4214
      %v4253 = vpop.f32.mrb[0].mxu0
      %v4254 = vadd.f32 0.0, %v4253
      %v4255 = vpop.f32.mrb[0].mxu0
      %v4256 = vpop.f32.mrb[0].mxu0
      %v4257 = vpop.f32.mrb[0].mxu0
      %4258 = vdwg.mxu0
      %v4260 = vsel %vm1238, %v4115, 0
      %v4263 = vsel %vm1902, %v4120, 0
      %4265 = vmatprep.subr.bf16.mxu0 0
      %4266 = vmatpush1.bf16.msra.mxu0 %v4263
      %4267 = vmatprep.subr.bf16.mxu0 0
      %4268 = vmatpush1.bf16.msra.mxu0 0
      %4269 = vmatprep.subr.bf16.mxu0 0
      %4270 = vmatpush1.bf16.msra.mxu0 0
      %4271 = vmatprep.subr.bf16.mxu0 0
      %4272 = vmatpush1.bf16.msra.mxu0 0
      %4273 = vmatprep.subr.bf16.mxu0 0
      %4274 = vmatpush1.bf16.msra.mxu0 0
      %4275 = vmatprep.subr.bf16.mxu0 0
      %4276 = vmatpush1.bf16.msra.mxu0 0
      %4277 = vmatprep.subr.bf16.mxu0 0
      %4278 = vmatpush1.bf16.msra.mxu0 0
      %4279 = vmatprep.subr.bf16.mxu0 0
      %4280 = vmatpush1.bf16.msra.mxu0 0
      %4281 = vmatprep.subr.bf16.mxu0 0
      %4282 = vmatpush1.bf16.msra.mxu0 0
      %4283 = vmatprep.subr.bf16.mxu0 0
      %4284 = vmatpush1.bf16.msra.mxu0 0
      %4285 = vmatprep.subr.bf16.mxu0 0
      %4286 = vmatpush1.bf16.msra.mxu0 0
      %4287 = vmatprep.subr.bf16.mxu0 0
      %4288 = vmatpush1.bf16.msra.mxu0 0
      %4289 = vmatprep.subr.bf16.mxu0 0
      %4290 = vmatpush1.bf16.msra.mxu0 0
      %4291 = vmatprep.subr.bf16.mxu0 0
      %4292 = vmatpush1.bf16.msra.mxu0 0
      %4293 = vmatprep.subr.bf16.mxu0 0
      %4294 = vmatpush1.bf16.msra.mxu0 0
      %4295 = vmatprep.subr.bf16.mxu0 0
      %4296 = vmatpush1.bf16.msra.mxu0 0
      %4297 = vmatprep.mubr.bf16.mxu0 0
      %4298 = vmatmul.mubr.bf16.gmra.mrb[0].mxu0 %v4260
      %v4299 = vpop.f32.mrb[0].mxu0
      %v4300 = vadd.f32 0.0, %v4299
      %v4301 = vpop.f32.mrb[0].mxu0
      %v4302 = vpop.f32.mrb[0].mxu0
      %v4303 = vpop.f32.mrb[0].mxu0
      %4304 = vdwg.mxu0
      %v4305 = vsel %vm439, %v4162, 0.0
      %v4306 = vsel %vm439, %v4208, 0.0
      %v4307 = vadd.f32 %v4305, %v4306
      %v4308 = vsel %vm439, %v4254, 0.0
      %v4309 = vadd.f32 %v4307, %v4308
      %v4310 = vsel %vm439, %v4300, 0.0
      %v4311 = vadd.f32 %v4309, %v4310
      %v4312 = vlaneseq
      %v4313 = vshrl.u32 %v4312, 7
      %v4314 = vsub.s32 0, %v4313
      %v4315 = vrot.slane %v2495, %v4314
      %v4316 = vadd.f32 %v4311, %v4315
      %v4317 = vadd.f32 %v2493, %v4316
      %v4318 = vsel %vm439, %v4317, 0.0
      %4319 = vadd.xlane.f32.xlu0 %v4318
      %v4320 = vpop.xlane.xlu0 %4319
      %v4321 = vmul.f32 %v4320, %v443
      %v4322 = vsub.f32 %v4317, %v4321
      %v4323 = vmul.f32 %v4322, %v4322
      %v4324 = vsel %vm439, %v4323, 0.0
      %4325 = vadd.xlane.f32.xlu0 %v4324
      %v4326 = vpop.xlane.xlu0 %4325
      %v4327 = vmul.f32 %v4326, %v443
      %v4328 = vadd.f32 %v4327, 1e-12
      %v4329 = vrsqrt.pop %v4328
      %v4330 = vmul.f32 %v4322, %v4329
      %v4331 = vlaneseq
      %v4332 = vshrl.u32 %v4331, 7
      %v4333 = vsub.s32 1, %v4332
      %v4334 = vrot.slane %v2495, %v4333
      %v4335 = vmul.f32 %v4330, %v4334
      %v4336 = vlaneseq
      %v4337 = vshrl.u32 %v4336, 7
      %v4338 = vsub.s32 2, %v4337
      %v4339 = vrot.slane %v2495, %v4338
      %v4340 = vadd.f32 %v4335, %v4339
      %v4341 = vpack.c.bf16 %v4340, %v4340
      %s4342 = scalar_lea.vmem %s6, 16
      %v4343 = vld [vmem:[%s4342] sm:$0xf]
      %v4344 = vld [vmem:[%s4342 + $0x4] sm:$0xf]
      %v4345 = vld [vmem:[%s4342 + $0x8] sm:$0xf]
      %v4346 = vld [vmem:[%s4342 + $0xc] sm:$0xf]
      %v4347 = vlaneseq
      %v4348 = vshrl.u32 %v4347, 7
      %v4349 = vsub.s32 3, %v4348
      %v4350 = vrot.slane %v2495, %v4349
      %v4355 = vunpack.c.l.b16 %v4343
      %v4356 = vunpack.c.l.b16 %v4344
      %v4357 = vunpack.c.l.b16 %v4345
      %v4358 = vunpack.c.l.b16 %v4346
      %v4359 = vpack.c.b16 %v4356, %v4355
      %v4360 = vpack.c.b16 %v4358, %v4357
      %v4364 = vsel %vm439, %v4341, 0
      %4366 = vmatprep.subr.bf16.mxu0 0
      %4367 = vmatpush1.bf16.msra.mxu0 %v4359
      %4368 = vmatprep.subr.bf16.mxu0 0
      %4369 = vmatpush1.bf16.msra.mxu0 %v4360
      %4370 = vmatprep.subr.bf16.mxu0 0
      %4371 = vmatpush1.bf16.msra.mxu0 0
      %4372 = vmatprep.subr.bf16.mxu0 0
      %4373 = vmatpush1.bf16.msra.mxu0 0
      %4374 = vmatprep.subr.bf16.mxu0 0
      %4375 = vmatpush1.bf16.msra.mxu0 0
      %4376 = vmatprep.subr.bf16.mxu0 0
      %4377 = vmatpush1.bf16.msra.mxu0 0
      %4378 = vmatprep.subr.bf16.mxu0 0
      %4379 = vmatpush1.bf16.msra.mxu0 0
      %4380 = vmatprep.subr.bf16.mxu0 0
      %4381 = vmatpush1.bf16.msra.mxu0 0
      %4382 = vmatprep.subr.bf16.mxu0 0
      %4383 = vmatpush1.bf16.msra.mxu0 0
      %4384 = vmatprep.subr.bf16.mxu0 0
      %4385 = vmatpush1.bf16.msra.mxu0 0
      %4386 = vmatprep.subr.bf16.mxu0 0
      %4387 = vmatpush1.bf16.msra.mxu0 0
      %4388 = vmatprep.subr.bf16.mxu0 0
      %4389 = vmatpush1.bf16.msra.mxu0 0
      %4390 = vmatprep.subr.bf16.mxu0 0
      %4391 = vmatpush1.bf16.msra.mxu0 0
      %4392 = vmatprep.subr.bf16.mxu0 0
      %4393 = vmatpush1.bf16.msra.mxu0 0
      %4394 = vmatprep.subr.bf16.mxu0 0
      %4395 = vmatpush1.bf16.msra.mxu0 0
      %4396 = vmatprep.subr.bf16.mxu0 0
      %4397 = vmatpush1.bf16.msra.mxu0 0
      %4398 = vmatprep.mubr.bf16.mxu0 0
      %4399 = vmatmul.mubr.bf16.gmra.mrb[0].mxu0 %v4364
      %v4400 = vpop.f32.mrb[0].mxu0
      %v4401 = vadd.f32 %v4350, %v4400
      %v4402 = vpop.f32.mrb[0].mxu0
      %v4403 = vpop.f32.mrb[0].mxu0
      %v4404 = vpop.f32.mrb[0].mxu0
      %4405 = vdwg.mxu0
      %v4406 = vmul.f32 %v4401, 0.5
      %v4407 = vmul.f32 %v4401, 0.044715
      %v4408 = vmul.f32 %v4407, %v4401
      %v4409 = vmul.f32 %v4408, %v4401
      %v4410 = vadd.f32 %v4401, %v4409
      %v4411 = vmul.f32 %v4410, 0.7978846
      %v4412 = vtanh.pop %v4411
      %v4413 = vadd.f32 %v4412, 1.0
      %v4414 = vmul.f32 %v4406, %v4413
      %v4415 = vpack.c.bf16 %v4414, %v4414
      %s4416 = scalar_lea.vmem %s7, 32
      %v4417 = vld [vmem:[%s4416] sm:$0xf]
      %v4418 = vld [vmem:[%s4416 + $0x4] sm:$0xf]
      %v4419 = vld [vmem:[%s4416 + $0x8] sm:$0xf]
      %v4420 = vld [vmem:[%s4416 + $0xc] sm:$0xf]
      %v4421 = vld [vmem:[%s4416 + $0x10] sm:$0xf]
      %v4422 = vld [vmem:[%s4416 + $0x14] sm:$0xf]
      %v4423 = vld [vmem:[%s4416 + $0x18] sm:$0xf]
      %v4424 = vld [vmem:[%s4416 + $0x1c] sm:$0xf]
      %v4425 = vlaneseq
      %v4426 = vshrl.u32 %v4425, 7
      %v4427 = vsub.s32 4, %v4426
      %v4428 = vrot.slane %v2495, %v4427
      %v4437 = vunpack.c.l.b16 %v4417
      %v4438 = vunpack.c.l.b16 %v4418
      %v4439 = vunpack.c.l.b16 %v4419
      %v4440 = vunpack.c.l.b16 %v4420
      %v4441 = vunpack.c.l.b16 %v4421
      %v4442 = vunpack.c.l.b16 %v4422
      %v4443 = vunpack.c.l.b16 %v4423
      %v4444 = vunpack.c.l.b16 %v4424
      %v4445 = vpack.c.b16 %v4438, %v4437
      %v4446 = vpack.c.b16 %v4440, %v4439
      %v4447 = vpack.c.b16 %v4442, %v4441
      %v4448 = vpack.c.b16 %v4444, %v4443
      %v4454 = vsel %vm2426, %v4415, 0
      %4456 = vmatprep.subr.bf16.mxu0 0
      %4457 = vmatpush1.bf16.msra.mxu0 %v4445
      %4458 = vmatprep.subr.bf16.mxu0 0
      %4459 = vmatpush1.bf16.msra.mxu0 %v4446
      %4460 = vmatprep.subr.bf16.mxu0 0
      %4461 = vmatpush1.bf16.msra.mxu0 %v4447
      %4462 = vmatprep.subr.bf16.mxu0 0
      %4463 = vmatpush1.bf16.msra.mxu0 %v4448
      %4464 = vmatprep.subr.bf16.mxu0 0
      %4465 = vmatpush1.bf16.msra.mxu0 0
      %4466 = vmatprep.subr.bf16.mxu0 0
      %4467 = vmatpush1.bf16.msra.mxu0 0
      %4468 = vmatprep.subr.bf16.mxu0 0
      %4469 = vmatpush1.bf16.msra.mxu0 0
      %4470 = vmatprep.subr.bf16.mxu0 0
      %4471 = vmatpush1.bf16.msra.mxu0 0
      %4472 = vmatprep.subr.bf16.mxu0 0
      %4473 = vmatpush1.bf16.msra.mxu0 0
      %4474 = vmatprep.subr.bf16.mxu0 0
      %4475 = vmatpush1.bf16.msra.mxu0 0
      %4476 = vmatprep.subr.bf16.mxu0 0
      %4477 = vmatpush1.bf16.msra.mxu0 0
      %4478 = vmatprep.subr.bf16.mxu0 0
      %4479 = vmatpush1.bf16.msra.mxu0 0
      %4480 = vmatprep.subr.bf16.mxu0 0
      %4481 = vmatpush1.bf16.msra.mxu0 0
      %4482 = vmatprep.subr.bf16.mxu0 0
      %4483 = vmatpush1.bf16.msra.mxu0 0
      %4484 = vmatprep.subr.bf16.mxu0 0
      %4485 = vmatpush1.bf16.msra.mxu0 0
      %4486 = vmatprep.subr.bf16.mxu0 0
      %4487 = vmatpush1.bf16.msra.mxu0 0
      %4488 = vmatprep.mubr.bf16.mxu0 0
      %4489 = vmatmul.mubr.bf16.gmra.mrb[0].mxu0 %v4454
      %v4490 = vpop.f32.mrb[0].mxu0
      %v4491 = vadd.f32 %v4428, %v4490
      %v4492 = vpop.f32.mrb[0].mxu0
      %v4493 = vpop.f32.mrb[0].mxu0
      %v4494 = vpop.f32.mrb[0].mxu0
      %4495 = vdwg.mxu0
      %v4496 = vadd.f32 %v4340, %v4491
      %v4497 = vsel %vm439, %v4496, 0.0
      %4498 = vadd.xlane.f32.xlu0 %v4497
      %v4499 = vpop.xlane.xlu0 %4498
      %v4500 = vmul.f32 %v4499, %v443
      %v4501 = vsub.f32 %v4496, %v4500
      %v4502 = vmul.f32 %v4501, %v4501
      %v4503 = vsel %vm439, %v4502, 0.0
      %4504 = vadd.xlane.f32.xlu0 %v4503
      %v4505 = vpop.xlane.xlu0 %4504
      %v4506 = vmul.f32 %v4505, %v443
      %v4507 = vadd.f32 %v4506, 1e-12
      %v4508 = vrsqrt.pop %v4507
      %v4509 = vmul.f32 %v4501, %v4508
      %v4510 = vlaneseq
      %v4511 = vshrl.u32 %v4510, 7
      %v4512 = vsub.s32 5, %v4511
      %v4513 = vrot.slane %v2495, %v4512
      %v4514 = vmul.f32 %v4509, %v4513
      %v4515 = vlaneseq
      %v4516 = vshrl.u32 %v4515, 7
      %v4517 = vsub.s32 6, %v4516
      %v4518 = vrot.slane %v2495, %v4517
      %v4519 = vadd.f32 %v4514, %v4518
      %v4520 = vpack.c.bf16 %v4519, %v4519
      %v4521 = vld [vmem:[%s11] sm:$0xf]
      %v4522 = vld [vmem:[%s11 + $0x4] sm:$0xf]
      %v4523 = vld [vmem:[%s11 + $0x8] sm:$0xf]
      %v4524 = vld [vmem:[%s11 + $0xc] sm:$0xf]
      %v4529 = vunpack.c.l.b16 %v4521
      %v4530 = vunpack.c.l.b16 %v4522
      %v4531 = vunpack.c.l.b16 %v4523
      %v4532 = vunpack.c.l.b16 %v4524
      %v4533 = vpack.c.b16 %v4530, %v4529
      %v4534 = vpack.c.b16 %v4532, %v4531
      %v4538 = vrot.slane %v437, 2
      %v4541 = vsel %vm439, %v4520, 0
      %4543 = vmatprep.subr.bf16.mxu0 0
      %4544 = vmatpush1.bf16.msra.mxu0 %v4533
      %4545 = vmatprep.subr.bf16.mxu0 0
      %4546 = vmatpush1.bf16.msra.mxu0 %v4534
      %4547 = vmatprep.subr.bf16.mxu0 0
      %4548 = vmatpush1.bf16.msra.mxu0 0
      %4549 = vmatprep.subr.bf16.mxu0 0
      %4550 = vmatpush1.bf16.msra.mxu0 0
      %4551 = vmatprep.subr.bf16.mxu0 0
      %4552 = vmatpush1.bf16.msra.mxu0 0
      %4553 = vmatprep.subr.bf16.mxu0 0
      %4554 = vmatpush1.bf16.msra.mxu0 0
      %4555 = vmatprep.subr.bf16.mxu0 0
      %4556 = vmatpush1.bf16.msra.mxu0 0
      %4557 = vmatprep.subr.bf16.mxu0 0
      %4558 = vmatpush1.bf16.msra.mxu0 0
      %4559 = vmatprep.subr.bf16.mxu0 0
      %4560 = vmatpush1.bf16.msra.mxu0 0
      %4561 = vmatprep.subr.bf16.mxu0 0
      %4562 = vmatpush1.bf16.msra.mxu0 0
      %4563 = vmatprep.subr.bf16.mxu0 0
      %4564 = vmatpush1.bf16.msra.mxu0 0
      %4565 = vmatprep.subr.bf16.mxu0 0
      %4566 = vmatpush1.bf16.msra.mxu0 0
      %4567 = vmatprep.subr.bf16.mxu0 0
      %4568 = vmatpush1.bf16.msra.mxu0 0
      %4569 = vmatprep.subr.bf16.mxu0 0
      %4570 = vmatpush1.bf16.msra.mxu0 0
      %4571 = vmatprep.subr.bf16.mxu0 0
      %4572 = vmatpush1.bf16.msra.mxu0 0
      %4573 = vmatprep.subr.bf16.mxu0 0
      %4574 = vmatpush1.bf16.msra.mxu0 0
      %4575 = vmatprep.mubr.bf16.mxu0 0
      %4576 = vmatmul.mubr.bf16.gmra.mrb[0].mxu0 %v4541
      %v4577 = vpop.f32.mrb[0].mxu0
      %v4578 = vadd.f32 %v4538, %v4577
      %v4579 = vpop.f32.mrb[0].mxu0
      %v4580 = vpop.f32.mrb[0].mxu0
      %v4581 = vpop.f32.mrb[0].mxu0
      %4582 = vdwg.mxu0
      %vm4583 = vcmask 16384
      %v4584 = vsel %vm4583, %v4578, -inf
      %4585 = vmax.xlane.f32.xlu0 %v4584
      %v4586 = vpop.xlane.xlu0 %4585
      %v4587 = vsub.f32 %v4578, %v4586
      %v4588 = vmul.f32 %v4587, 1.442695
      %v4589 = vpow.pop %v4588
      %v4590 = vsel %vm4583, %v4589, 0.0
      %4591 = vadd.xlane.f32.xlu0 %v4590
      %v4592 = vpop.xlane.xlu0 %4591
      %v4593 = vlog2.pop %v4592
      %v4594 = vmul.f32 %v4593, 0.6931472
      %v4595 = vadd.f32 %v4594, %v4586
      %v4596 = vld [vmem:[%s431] sm:$0x1]
      %v4597 = vsub.f32 %v4578, %v4595
      %v4598 = vmul.f32 %v4596, %v4597
      %v4599 = vsel %vm4583, %v4598, 0.0
      %4600 = vadd.xlane.f32.xlu0 %v4599
      %v4601 = vpop.xlane.xlu0 %4600
      %v4602 = vsub.f32 0.0, %v4601
      %4603 = vst [vmem:[%s434] sm:$0x1] 0.0
      %4604 = vst.msk [vmem:[%s434] sm:$0x1] %vm4583, %v4578
      %vm4605 = vcmask 24600
      %4606 = vst.msk [vmem:[%s434] sm:$0x1] %vm4605, %v4602
      %p4607 = scmp.lt.s32.totalorder %s23, 1
      %s4608 = scalar_select %p4607, %s23, 1
      %s4609 = scalar_lea.vmem %s12, %s4608
      // Predicated region
      $region69: #{forward.1} parent=67 // pred_check
        %p4610 = pneg %p308
      $region70: #{forward.1} parent=67 // pred_check_branch
        %4612 = sbr.rel (%p4610) target = $region72
      $region71: #{forward.1} parent=67 // pred_region
        _
      $region72: #{forward.1} parent=67 // pred_fallthru
        _
    $region68: #{forward.1} parent=5 // pred_fallthru
      _
    %p4613 = scmp.le.s32.totalorder 2, %s18
    // Predicated region
    $region73: #{forward.1} parent=5 // pred_check
      %p4614 = pneg %p4613
    $region74: #{forward.1} parent=5 // pred_check_branch
      %4616 = sbr.rel (%p4614) target = $region76
    $region75: #{forward.1} parent=5 // pred_region
      %s4617 = ssub.s32 %s18, 2
      // Predicated region
      $region77: #{forward.1} parent=75 // pred_check
        %p4618 = pneg %p314
      $region78: #{forward.1} parent=75 // pred_check_branch
        %4620 = sbr.rel (%p4618) target = $region80
      $region79: #{forward.1} parent=75 // pred_region
        %p4621 = scmp.lt.s32.totalorder %s24, 1
        %s4622 = scalar_select %p4621, %s24, 1
        %s4623 = scalar_lea.vmem %s12, %s4622
      $region80: #{forward.1} parent=75 // pred_fallthru
        _
    $region76: #{forward.1} parent=5 // pred_fallthru
      _
  $region6: #{forward.1} parent=0 // loop_footer
    %s22 = sadd.s32 1, %s18
  $region7: #{forward.1} parent=0 // loop_footer_branch
    %17 = sbr.rel target = $region3
  $region8: #{forward.1} parent=0 // loop_exit
    _

</llo_original>
